<compile_context>
chip_gen: v5e
topology: v5e:2x2
jax: 0.10.0
libtpu: 0.0.40
codegen_flags: <defaults>
</compile_context>

<pallas_src>
import functools

import jax
import jax.numpy as jnp
from jax import lax
from jax.experimental import pallas as pl
from jax.experimental.pallas import tpu as pltpu

_EPS = 1e-5
_LANE = 128
_SUB = 8
_TAPS = tuple((dy, dx) for dy in range(3) for dx in range(3))  # row-major 3x3 taps


def _pad_up(n, m):
    return ((n + m - 1) // m) * m


def _gelu_tanh(x):
    # tanh-approximate GELU: routes through the EUP (idle VLIW slot here);
    # ~3e-4 max abs deviation from the exact erf GELU of nn.GELU().
    c = 0.7978845608028654  # sqrt(2/pi)
    return 0.5 * x * (1.0 + jnp.tanh(c * (x + 0.044715 * x * x * x)))


def _groupnorm1(acc, gamma, beta, n_real, c_real):
    """GroupNorm(num_groups=1) over (H*W, Cpad): two-pass, fused affine.

    Padded lanes of `acc`, `gamma`, `beta` are exactly zero.  `n_real` /
    `c_real` are the real element / channel counts; the lane mask keeps the
    padded lanes at exactly zero on output.
    """
    cpad = acc.shape[-1]
    mask = (lax.broadcasted_iota(jnp.int32, (1, cpad), 1) < c_real).astype(jnp.float32)
    inv_n = 1.0 / float(n_real)
    mean = jnp.sum(acc) * inv_n
    centered = acc - mean * mask                 # 0 on padded lanes
    var = jnp.sum(centered * centered) * inv_n   # centred 2nd pass (no cancellation)
    scale = gamma * lax.rsqrt(var + _EPS)        # (1, Cpad); 0 on padded lanes
    return centered * scale + beta               # 0 on padded lanes


def _double_conv_kernel(xpad_ref, w1_ref, g1_ref, b1_ref, w2_ref, g2_ref, b2_ref,
                        o_ref, hbuf,
                        *, H, W, Cin, Cmid, Cout, Cin_p, Cmid_p, Cout_p, residual):
    # xpad_ref: (1, H+2, Wx, Cin_p)   zero-padded input (bf16, lane-dense)
    # w1_ref:   (9, Cin_p, Cmid_p)    conv1 weights per tap (bf16)
    # w2_ref:   (9, Cmid_p, Cout_p)   conv2 weights per tap (bf16)
    # g*/b*:    (1, Cpad)             GroupNorm affine params (f32, zero-padded)
    # o_ref:    (1, H*W, Cout_p)      lane-dense bf16 output slab
    # hbuf:     (H+2, Wh, Cmid_p)     padded hidden scratch, 8-col left halo
    xp = xpad_ref[0]                                   # (H+2, Wx, Cin_p)

    # ---- conv1: 9 direct-slice accumulating MXU matmuls (no staging buffer) --
    acc1 = None
    for idx, (dy, dx) in enumerate(_TAPS):
        lhs = xp[dy:dy + H, dx:dx + W, :].reshape(H * W, Cin_p)
        t = jnp.dot(lhs, w1_ref[idx], preferred_element_type=jnp.float32)
        acc1 = t if acc1 is None else acc1 + t         # (H*W, Cmid_p) f32

    # ---- GroupNorm(1, Cmid) + GELU (f32) -------------------------------------
    h = _gelu_tanh(_groupnorm1(acc1, g1_ref[...], b1_ref[...], H * W * Cmid, Cmid))

    # ---- stage hidden into padded scratch (aligned stores only) --------------
    # hbuf columns: [0..7] left halo (left neighbour is col 7),
    #               [8 .. 8+W-1] interior, [8+W ..] right halo / pad.
    wh = hbuf.shape[1]
    zrow = jnp.zeros((1, wh, Cmid_p), jnp.bfloat16)
    hbuf[0:1, :, :] = zrow                             # top halo row
    hbuf[H + 1:H + 2, :, :] = zrow                     # bottom halo row
    zcol8 = jnp.zeros((H, _SUB, Cmid_p), jnp.bfloat16)
    hbuf[1:H + 1, 0:_SUB, :] = zcol8                   # aligned, covers col 7
    rs = ((_SUB + W) // _SUB) * _SUB                   # aligned block holding col 8+W
    hbuf[1:H + 1, rs:rs + _SUB, :] = zcol8             # aligned, covers col 8+W
    # interior store LAST (re-writes any real cols the right-halo zero touched);
    # starts at sublane 8 -> full-width unmasked stores.
    hbuf[1:H + 1, _SUB:_SUB + W, :] = h.astype(jnp.bfloat16).reshape(H, W, Cmid_p)

    # ---- conv2: 9 direct-slice accumulating matmuls ---------------------------
    hb = hbuf[...]
    acc2 = None
    for idx, (dy, dx) in enumerate(_TAPS):
        lhs = hb[dy:dy + H, _SUB - 1 + dx:_SUB - 1 + dx + W, :].reshape(H * W, Cmid_p)
        t = jnp.dot(lhs, w2_ref[idx], preferred_element_type=jnp.float32)
        acc2 = t if acc2 is None else acc2 + t         # (H*W, Cout_p) f32

    # ---- GroupNorm(1, Cout) [+ residual GELU] ---------------------------------
    y = _groupnorm1(acc2, g2_ref[...], b2_ref[...], H * W * Cout, Cout)
    if residual:
        # requires Cin == Cout (hence Cin_p == Cout_p); padded lanes are 0 + 0.
        # TODO(synk): stream an f32 copy of the interior input tile if the
        # bf16-rounded skip connection ever needs tightening.
        x_in = xp[1:H + 1, 1:W + 1, :].reshape(H * W, Cin_p).astype(jnp.float32)
        y = _gelu_tanh(x_in + y)

    o_ref[0] = y.astype(o_ref.dtype)                   # lane-dense bf16 store


@functools.partial(jax.jit, static_argnames=("residual",))
def double_conv(x_nchw, w1, g1, b1, w2, g2, b2, *, residual=False):
    """x_nchw: (B, Cin, H, W); w1: (Cmid, Cin, 3, 3); w2: (Cout, Cmid, 3, 3)."""
    B, Cin, H, W = x_nchw.shape
    Cmid, Cout = w1.shape[0], w2.shape[0]
    if residual and Cin != Cout:
        raise ValueError("residual path requires in_channels == out_channels")

    Cin_p, Cmid_p, Cout_p = (_pad_up(c, _LANE) for c in (Cin, Cmid, Cout))
    Wx = _pad_up(W + 2, _SUB)     # input width incl. 1-px halo, sublane-aligned
    Wh = _pad_up(W + 9, _SUB)     # hidden scratch width (8-col left halo)

    # Layout glue (pure plumbing): NCHW -> NHWC, 1-px spatial halo, sublane (W)
    # and lane (C) zero-padding, bf16 MXU inputs.
    x = jnp.transpose(x_nchw, (0, 2, 3, 1)).astype(jnp.float32)
    xpad = jnp.pad(x, ((0, 0), (1, 1), (1, Wx - (W + 1)), (0, Cin_p - Cin)))
    xpad = xpad.astype(jnp.bfloat16)

    # Conv weights OIHW -> (tap, Cin_p, C*_p), zero-padded channels, bf16.
    w1k = jnp.pad(jnp.transpose(w1, (2, 3, 1, 0)),
                  ((0, 0), (0, 0), (0, Cin_p - Cin), (0, Cmid_p - Cmid)))
    w1k = w1k.reshape(9, Cin_p, Cmid_p).astype(jnp.bfloat16)
    w2k = jnp.pad(jnp.transpose(w2, (2, 3, 1, 0)),
                  ((0, 0), (0, 0), (0, Cmid_p - Cmid), (0, Cout_p - Cout)))
    w2k = w2k.reshape(9, Cmid_p, Cout_p).astype(jnp.bfloat16)

    # GroupNorm affine params, zero-padded so padded lanes stay exactly zero.
    g1k = jnp.pad(g1.reshape(1, Cmid), ((0, 0), (0, Cmid_p - Cmid))).astype(jnp.float32)
    b1k = jnp.pad(b1.reshape(1, Cmid), ((0, 0), (0, Cmid_p - Cmid))).astype(jnp.float32)
    g2k = jnp.pad(g2.reshape(1, Cout), ((0, 0), (0, Cout_p - Cout))).astype(jnp.float32)
    b2k = jnp.pad(b2.reshape(1, Cout), ((0, 0), (0, Cout_p - Cout))).astype(jnp.float32)

    kernel = functools.partial(
        _double_conv_kernel, H=H, W=W, Cin=Cin, Cmid=Cmid, Cout=Cout,
        Cin_p=Cin_p, Cmid_p=Cmid_p, Cout_p=Cout_p, residual=residual)

    # ---- VMEM budget: resident buffers + live f32 temporaries, +50% headroom --
    x_blk = (H + 2) * Wx * Cin_p * 2 * 2                     # double-buffered input
    w_res = 9 * (Cin_p * Cmid_p + Cmid_p * Cout_p) * 2       # Buffered(1) weights
    p_res = 2 * 4 * max(Cmid_p, Cout_p) * 4                  # GN params (tiny)
    o_blk = H * W * Cout_p * 2 * 2                           # double-buffered output
    h_scr = (H + 2) * Wh * Cmid_p * 2                        # hidden scratch
    live = (2 * H * W * (Cmid_p + Cout_p) * 4                # f32 acc / GN temps
            + 2 * H * W * max(Cin_p, Cmid_p) * 2)            # materialised tap slices
    vmem_limit = int(min(max(1.5 * (x_blk + w_res + p_res + o_blk + h_scr + live),
                             32 << 20), 112 << 20))

    # Advisory cost: real (unpadded) channel counts for flops/transcendentals;
    # bytes reflect the actual (padded) HBM traffic.
    flops = 2 * B * H * W * 9 * (Cin * Cmid + Cmid * Cout)
    transcendentals = B * H * W * (Cmid + (Cout if residual else 0))
    bytes_accessed = int(xpad.size * 2 + w1k.size * 2 + w2k.size * 2
                         + (g1k.size + b1k.size + g2k.size + b2k.size) * 4
                         + B * H * W * Cout_p * 2)

    def _const_spec(shape, index_map):
        # Constant across the grid -> one VMEM buffer is enough.
        return pl.BlockSpec(shape, index_map, pipeline_mode=pl.Buffered(1))

    out_flat = pl.pallas_call(
        kernel,
        out_shape=jax.ShapeDtypeStruct((B, H * W, Cout_p), jnp.bfloat16),
        grid_spec=pltpu.PrefetchScalarGridSpec(
            num_scalar_prefetch=0,
            grid=(B,),
            in_specs=[
                pl.BlockSpec((1, H + 2, Wx, Cin_p), lambda b: (b, 0, 0, 0)),
                _const_spec((9, Cin_p, Cmid_p), lambda b: (0, 0, 0)),
                _const_spec((1, Cmid_p), lambda b: (0, 0)),
                _const_spec((1, Cmid_p), lambda b: (0, 0)),
                _const_spec((9, Cmid_p, Cout_p), lambda b: (0, 0, 0)),
                _const_spec((1, Cout_p), lambda b: (0, 0)),
                _const_spec((1, Cout_p), lambda b: (0, 0)),
            ],
            out_specs=pl.BlockSpec((1, H * W, Cout_p), lambda b: (b, 0, 0)),
            scratch_shapes=[
                pltpu.VMEM((H + 2, Wh, Cmid_p), jnp.bfloat16),   # padded hidden
            ],
        ),
        compiler_params=pltpu.CompilerParams(
            dimension_semantics=("parallel",),          # batch steps independent
            vmem_limit_bytes=vmem_limit),
        cost_estimate=pl.CostEstimate(
            flops=flops, transcendentals=transcendentals,
            bytes_accessed=bytes_accessed),
    )(xpad, w1k, g1k, b1k, w2k, g2k, b2k)

    out = out_flat.reshape(B, H, W, Cout_p)[:, :, :, :Cout]
    return jnp.transpose(out, (0, 3, 1, 2)).astype(jnp.float32)   # back to NCHW


def _ref_double_conv(x, w1, g1, b1, w2, g2, b2, *, residual=False):
    """Pure-JAX f32 reference matching the PyTorch module (NCHW, exact GELU)."""
    def conv(x_, w_):
        return lax.conv_general_dilated(
            x_, w_, window_strides=(1, 1), padding=((1, 1), (1, 1)),
            dimension_numbers=("NCHW", "OIHW", "NCHW"))

    def gn1(x_, g_, b_):
        mean = jnp.mean(x_, axis=(1, 2, 3), keepdims=True)
        var = jnp.mean((x_ - mean) ** 2, axis=(1, 2, 3), keepdims=True)
        xn = (x_ - mean) / jnp.sqrt(var + _EPS)
        return xn * g_.reshape(1, -1, 1, 1) + b_.reshape(1, -1, 1, 1)

    h = conv(x, w1)
    h = gn1(h, g1, b1)
    h = jax.nn.gelu(h, approximate=False)
    y = conv(h, w2)
    y = gn1(y, g2, b2)
    if residual:
        y = jax.nn.gelu(x + y, approximate=False)
    return y


def _run_case(key, B, Cin, Cmid, Cout, H, W, residual):
    k = jax.random.split(key, 7)
    x = jax.random.normal(k[0], (B, Cin, H, W), jnp.float32)
    w1 = 0.2 * jax.random.normal(k[1], (Cmid, Cin, 3, 3), jnp.float32)
    w2 = 0.2 * jax.random.normal(k[2], (Cout, Cmid, 3, 3), jnp.float32)
    g1 = 1.0 + 0.1 * jax.random.normal(k[3], (Cmid,), jnp.float32)
    b1 = 0.1 * jax.random.normal(k[4], (Cmid,), jnp.float32)
    g2 = 1.0 + 0.1 * jax.random.normal(k[5], (Cout,), jnp.float32)
    b2 = 0.1 * jax.random.normal(k[6], (Cout,), jnp.float32)

    out = jax.block_until_ready(
        double_conv(x, w1, g1, b1, w2, g2, b2, residual=residual))
    ref = jax.block_until_ready(
        _ref_double_conv(x, w1, g1, b1, w2, g2, b2, residual=residual))

    assert out.shape == (B, Cout, H, W), out.shape
    # bf16 MXU inputs/hidden/output + tanh GELU (documented deviations from the
    # all-f32 / erf-GELU PyTorch module) -> slightly loosened tolerance.
    err = float(jnp.max(jnp.abs(out - ref)))
    assert jnp.allclose(out, ref, atol=7.5e-2, rtol=5e-2), err


if __name__ == "__main__":
    key = jax.random.PRNGKey(0)
    k_res, k_plain = jax.random.split(key)
    _run_case(k_res, B=2, Cin=4, Cmid=8, Cout=4, H=16, W=16, residual=True)
    _run_case(k_plain, B=2, Cin=3, Cmid=8, Cout=6, H=16, W=16, residual=False)
    print("KERNEL_OK")
</pallas_src>

<mosaic_0001>
module attributes {stable_mosaic.version = 11 : i64} {
  func.func @_double_conv_kernel(%arg0: i32, %arg1: memref<1x18x24x128xbf16, #tpu.memory_space<vmem>>, %arg2: memref<9x128x128xbf16, #tpu.memory_space<vmem>>, %arg3: memref<1x128xf32, #tpu.memory_space<vmem>>, %arg4: memref<1x128xf32, #tpu.memory_space<vmem>>, %arg5: memref<9x128x128xbf16, #tpu.memory_space<vmem>>, %arg6: memref<1x128xf32, #tpu.memory_space<vmem>>, %arg7: memref<1x128xf32, #tpu.memory_space<vmem>>, %arg8: memref<1x256x128xbf16, #tpu.memory_space<vmem>>, %arg9: memref<18x32x128xbf16, #tpu.memory_space<vmem>>) attributes {dimension_semantics = [#tpu.dimension_semantics<parallel>], iteration_bounds = array<i64: 2>, scalar_prefetch = 0 : i64, scratch_operands = 1 : i64, tpu.core_type = #tpu.core_type<tc>, window_params = [{transform_indices = @transform_0, window_bounds = array<i64: 1, 18, 24, 128>}, {pipeline_mode = #tpu.pipeline_mode<synchronous>, transform_indices = @transform_1, window_bounds = array<i64: 9, 128, 128>}, {pipeline_mode = #tpu.pipeline_mode<synchronous>, transform_indices = @transform_2, window_bounds = array<i64: 1, 128>}, {pipeline_mode = #tpu.pipeline_mode<synchronous>, transform_indices = @transform_3, window_bounds = array<i64: 1, 128>}, {pipeline_mode = #tpu.pipeline_mode<synchronous>, transform_indices = @transform_4, window_bounds = array<i64: 9, 128, 128>}, {pipeline_mode = #tpu.pipeline_mode<synchronous>, transform_indices = @transform_5, window_bounds = array<i64: 1, 128>}, {pipeline_mode = #tpu.pipeline_mode<synchronous>, transform_indices = @transform_6, window_bounds = array<i64: 1, 128>}, {transform_indices = @transform_7, window_bounds = array<i64: 1, 256, 128>}]} {
    %c0 = arith.constant 0 : index
    %c0_0 = arith.constant 0 : index
    %c0_1 = arith.constant 0 : index
    %c0_2 = arith.constant 0 : index
    %0 = vector.load %arg1[%c0, %c0_0, %c0_1, %c0_2] : memref<1x18x24x128xbf16, #tpu.memory_space<vmem>>, vector<1x18x24x128xbf16>
    %1 = vector.shape_cast %0 : vector<1x18x24x128xbf16> to vector<18x24x128xbf16>
    %2 = vector.extract_strided_slice %1 {offsets = [0, 0, 0], sizes = [16, 16, 128], strides = [1, 1, 1]} : vector<18x24x128xbf16> to vector<16x16x128xbf16>
    %3 = vector.shape_cast %2 : vector<16x16x128xbf16> to vector<256x128xbf16>
    %c0_3 = arith.constant 0 : index
    %c0_4 = arith.constant 0 : index
    %c0_5 = arith.constant 0 : index
    %4 = vector.load %arg2[%c0_3, %c0_4, %c0_5] : memref<9x128x128xbf16, #tpu.memory_space<vmem>>, vector<1x128x128xbf16>
    %5 = vector.shape_cast %4 : vector<1x128x128xbf16> to vector<128x128xbf16>
    %cst = arith.constant dense<0.000000e+00> : vector<256x128xf32>
    %6 = tpu.matmul %3, %5, %cst {dimension_numbers = #tpu.dot_dimension_numbers<[1], [0], [0], [1], [0, 0, 1, 1], [], []>} : vector<256x128xbf16>, vector<128x128xbf16>, vector<256x128xf32> -> vector<256x128xf32>
    %7 = vector.extract_strided_slice %1 {offsets = [0, 1, 0], sizes = [16, 16, 128], strides = [1, 1, 1]} : vector<18x24x128xbf16> to vector<16x16x128xbf16>
    %8 = vector.shape_cast %7 : vector<16x16x128xbf16> to vector<256x128xbf16>
    %c1 = arith.constant 1 : index
    %c0_6 = arith.constant 0 : index
    %c0_7 = arith.constant 0 : index
    %9 = vector.load %arg2[%c1, %c0_6, %c0_7] : memref<9x128x128xbf16, #tpu.memory_space<vmem>>, vector<1x128x128xbf16>
    %10 = vector.shape_cast %9 : vector<1x128x128xbf16> to vector<128x128xbf16>
    %cst_8 = arith.constant dense<0.000000e+00> : vector<256x128xf32>
    %11 = tpu.matmul %8, %10, %cst_8 {dimension_numbers = #tpu.dot_dimension_numbers<[1], [0], [0], [1], [0, 0, 1, 1], [], []>} : vector<256x128xbf16>, vector<128x128xbf16>, vector<256x128xf32> -> vector<256x128xf32>
    %12 = arith.addf %6, %11 : vector<256x128xf32>
    %13 = vector.extract_strided_slice %1 {offsets = [0, 2, 0], sizes = [16, 16, 128], strides = [1, 1, 1]} : vector<18x24x128xbf16> to vector<16x16x128xbf16>
    %14 = vector.shape_cast %13 : vector<16x16x128xbf16> to vector<256x128xbf16>
    %c2 = arith.constant 2 : index
    %c0_9 = arith.constant 0 : index
    %c0_10 = arith.constant 0 : index
    %15 = vector.load %arg2[%c2, %c0_9, %c0_10] : memref<9x128x128xbf16, #tpu.memory_space<vmem>>, vector<1x128x128xbf16>
    %16 = vector.shape_cast %15 : vector<1x128x128xbf16> to vector<128x128xbf16>
    %cst_11 = arith.constant dense<0.000000e+00> : vector<256x128xf32>
    %17 = tpu.matmul %14, %16, %cst_11 {dimension_numbers = #tpu.dot_dimension_numbers<[1], [0], [0], [1], [0, 0, 1, 1], [], []>} : vector<256x128xbf16>, vector<128x128xbf16>, vector<256x128xf32> -> vector<256x128xf32>
    %18 = arith.addf %12, %17 : vector<256x128xf32>
    %19 = vector.extract_strided_slice %1 {offsets = [1, 0, 0], sizes = [16, 16, 128], strides = [1, 1, 1]} : vector<18x24x128xbf16> to vector<16x16x128xbf16>
    %20 = vector.shape_cast %19 : vector<16x16x128xbf16> to vector<256x128xbf16>
    %c3 = arith.constant 3 : index
    %c0_12 = arith.constant 0 : index
    %c0_13 = arith.constant 0 : index
    %21 = vector.load %arg2[%c3, %c0_12, %c0_13] : memref<9x128x128xbf16, #tpu.memory_space<vmem>>, vector<1x128x128xbf16>
    %22 = vector.shape_cast %21 : vector<1x128x128xbf16> to vector<128x128xbf16>
    %cst_14 = arith.constant dense<0.000000e+00> : vector<256x128xf32>
    %23 = tpu.matmul %20, %22, %cst_14 {dimension_numbers = #tpu.dot_dimension_numbers<[1], [0], [0], [1], [0, 0, 1, 1], [], []>} : vector<256x128xbf16>, vector<128x128xbf16>, vector<256x128xf32> -> vector<256x128xf32>
    %24 = arith.addf %18, %23 : vector<256x128xf32>
    %25 = vector.extract_strided_slice %1 {offsets = [1, 1, 0], sizes = [16, 16, 128], strides = [1, 1, 1]} : vector<18x24x128xbf16> to vector<16x16x128xbf16>
    %26 = vector.shape_cast %25 : vector<16x16x128xbf16> to vector<256x128xbf16>
    %c4 = arith.constant 4 : index
    %c0_15 = arith.constant 0 : index
    %c0_16 = arith.constant 0 : index
    %27 = vector.load %arg2[%c4, %c0_15, %c0_16] : memref<9x128x128xbf16, #tpu.memory_space<vmem>>, vector<1x128x128xbf16>
    %28 = vector.shape_cast %27 : vector<1x128x128xbf16> to vector<128x128xbf16>
    %cst_17 = arith.constant dense<0.000000e+00> : vector<256x128xf32>
    %29 = tpu.matmul %26, %28, %cst_17 {dimension_numbers = #tpu.dot_dimension_numbers<[1], [0], [0], [1], [0, 0, 1, 1], [], []>} : vector<256x128xbf16>, vector<128x128xbf16>, vector<256x128xf32> -> vector<256x128xf32>
    %30 = arith.addf %24, %29 : vector<256x128xf32>
    %31 = vector.extract_strided_slice %1 {offsets = [1, 2, 0], sizes = [16, 16, 128], strides = [1, 1, 1]} : vector<18x24x128xbf16> to vector<16x16x128xbf16>
    %32 = vector.shape_cast %31 : vector<16x16x128xbf16> to vector<256x128xbf16>
    %c5 = arith.constant 5 : index
    %c0_18 = arith.constant 0 : index
    %c0_19 = arith.constant 0 : index
    %33 = vector.load %arg2[%c5, %c0_18, %c0_19] : memref<9x128x128xbf16, #tpu.memory_space<vmem>>, vector<1x128x128xbf16>
    %34 = vector.shape_cast %33 : vector<1x128x128xbf16> to vector<128x128xbf16>
    %cst_20 = arith.constant dense<0.000000e+00> : vector<256x128xf32>
    %35 = tpu.matmul %32, %34, %cst_20 {dimension_numbers = #tpu.dot_dimension_numbers<[1], [0], [0], [1], [0, 0, 1, 1], [], []>} : vector<256x128xbf16>, vector<128x128xbf16>, vector<256x128xf32> -> vector<256x128xf32>
    %36 = arith.addf %30, %35 : vector<256x128xf32>
    %37 = vector.extract_strided_slice %1 {offsets = [2, 0, 0], sizes = [16, 16, 128], strides = [1, 1, 1]} : vector<18x24x128xbf16> to vector<16x16x128xbf16>
    %38 = vector.shape_cast %37 : vector<16x16x128xbf16> to vector<256x128xbf16>
    %c6 = arith.constant 6 : index
    %c0_21 = arith.constant 0 : index
    %c0_22 = arith.constant 0 : index
    %39 = vector.load %arg2[%c6, %c0_21, %c0_22] : memref<9x128x128xbf16, #tpu.memory_space<vmem>>, vector<1x128x128xbf16>
    %40 = vector.shape_cast %39 : vector<1x128x128xbf16> to vector<128x128xbf16>
    %cst_23 = arith.constant dense<0.000000e+00> : vector<256x128xf32>
    %41 = tpu.matmul %38, %40, %cst_23 {dimension_numbers = #tpu.dot_dimension_numbers<[1], [0], [0], [1], [0, 0, 1, 1], [], []>} : vector<256x128xbf16>, vector<128x128xbf16>, vector<256x128xf32> -> vector<256x128xf32>
    %42 = arith.addf %36, %41 : vector<256x128xf32>
    %43 = vector.extract_strided_slice %1 {offsets = [2, 1, 0], sizes = [16, 16, 128], strides = [1, 1, 1]} : vector<18x24x128xbf16> to vector<16x16x128xbf16>
    %44 = vector.shape_cast %43 : vector<16x16x128xbf16> to vector<256x128xbf16>
    %c7 = arith.constant 7 : index
    %c0_24 = arith.constant 0 : index
    %c0_25 = arith.constant 0 : index
    %45 = vector.load %arg2[%c7, %c0_24, %c0_25] : memref<9x128x128xbf16, #tpu.memory_space<vmem>>, vector<1x128x128xbf16>
    %46 = vector.shape_cast %45 : vector<1x128x128xbf16> to vector<128x128xbf16>
    %cst_26 = arith.constant dense<0.000000e+00> : vector<256x128xf32>
    %47 = tpu.matmul %44, %46, %cst_26 {dimension_numbers = #tpu.dot_dimension_numbers<[1], [0], [0], [1], [0, 0, 1, 1], [], []>} : vector<256x128xbf16>, vector<128x128xbf16>, vector<256x128xf32> -> vector<256x128xf32>
    %48 = arith.addf %42, %47 : vector<256x128xf32>
    %49 = vector.extract_strided_slice %1 {offsets = [2, 2, 0], sizes = [16, 16, 128], strides = [1, 1, 1]} : vector<18x24x128xbf16> to vector<16x16x128xbf16>
    %50 = vector.shape_cast %49 : vector<16x16x128xbf16> to vector<256x128xbf16>
    %c8 = arith.constant 8 : index
    %c0_27 = arith.constant 0 : index
    %c0_28 = arith.constant 0 : index
    %51 = vector.load %arg2[%c8, %c0_27, %c0_28] : memref<9x128x128xbf16, #tpu.memory_space<vmem>>, vector<1x128x128xbf16>
    %52 = vector.shape_cast %51 : vector<1x128x128xbf16> to vector<128x128xbf16>
    %cst_29 = arith.constant dense<0.000000e+00> : vector<256x128xf32>
    %53 = tpu.matmul %50, %52, %cst_29 {dimension_numbers = #tpu.dot_dimension_numbers<[1], [0], [0], [1], [0, 0, 1, 1], [], []>} : vector<256x128xbf16>, vector<128x128xbf16>, vector<256x128xf32> -> vector<256x128xf32>
    %54 = arith.addf %48, %53 : vector<256x128xf32>
    %c0_30 = arith.constant 0 : index
    %c0_31 = arith.constant 0 : index
    %55 = vector.load %arg3[%c0_30, %c0_31] : memref<1x128xf32, #tpu.memory_space<vmem>>, vector<1x128xf32>
    %c0_32 = arith.constant 0 : index
    %c0_33 = arith.constant 0 : index
    %56 = vector.load %arg4[%c0_32, %c0_33] : memref<1x128xf32, #tpu.memory_space<vmem>>, vector<1x128xf32>
    %57 = tpu.iota {dimensions = array<i32: 1>} : vector<1x128xi32>
    %c8_i32 = arith.constant 8 : i32
    %58 = vector.broadcast %c8_i32 : i32 to vector<1x128xi32>
    %59 = arith.cmpi slt, %57, %58 : vector<1x128xi32>
    %60 = arith.extui %59 : vector<1x128xi1> to vector<1x128xi32>
    %61 = arith.sitofp %60 : vector<1x128xi32> to vector<1x128xf32>
    %62 = vector.shape_cast %54 : vector<256x128xf32> to vector<1x256x128xf32>
    %cst_34 = arith.constant dense<0.000000e+00> : vector<1xf32>
    %63 = vector.multi_reduction <add>, %62, %cst_34 [1, 2] : vector<1x256x128xf32> to vector<1xf32>
    %64 = vector.shape_cast %63 : vector<1xf32> to vector<1x1x1xf32>
    %65 = vector.extract %64[0, 0, 0] : f32 from vector<1x1x1xf32>
    %cst_35 = arith.constant 4.8828125E-4 : f32
    %66 = arith.mulf %65, %cst_35 : f32
    %67 = vector.broadcast %66 : f32 to vector<1x128xf32>
    %68 = arith.mulf %67, %61 : vector<1x128xf32>
    %69 = vector.broadcast %68 : vector<1x128xf32> to vector<256x128xf32>
    %70 = arith.subf %54, %69 : vector<256x128xf32>
    %71 = arith.mulf %70, %70 : vector<256x128xf32>
    %72 = vector.shape_cast %71 : vector<256x128xf32> to vector<1x256x128xf32>
    %cst_36 = arith.constant dense<0.000000e+00> : vector<1xf32>
    %73 = vector.multi_reduction <add>, %72, %cst_36 [1, 2] : vector<1x256x128xf32> to vector<1xf32>
    %74 = vector.shape_cast %73 : vector<1xf32> to vector<1x1x1xf32>
    %75 = vector.extract %74[0, 0, 0] : f32 from vector<1x1x1xf32>
    %cst_37 = arith.constant 4.8828125E-4 : f32
    %76 = arith.mulf %75, %cst_37 : f32
    %cst_38 = arith.constant 9.99999974E-6 : f32
    %77 = arith.addf %76, %cst_38 : f32
    %78 = math.rsqrt %77 : f32
    %79 = vector.broadcast %78 : f32 to vector<1x128xf32>
    %80 = arith.mulf %55, %79 : vector<1x128xf32>
    %81 = vector.broadcast %80 : vector<1x128xf32> to vector<256x128xf32>
    %82 = arith.mulf %70, %81 : vector<256x128xf32>
    %83 = vector.broadcast %56 : vector<1x128xf32> to vector<256x128xf32>
    %84 = arith.addf %82, %83 : vector<256x128xf32>
    %cst_39 = arith.constant 5.000000e-01 : f32
    %85 = vector.broadcast %cst_39 : f32 to vector<256x128xf32>
    %86 = arith.mulf %85, %84 : vector<256x128xf32>
    %cst_40 = arith.constant 4.471500e-02 : f32
    %87 = vector.broadcast %cst_40 : f32 to vector<256x128xf32>
    %88 = arith.mulf %87, %84 : vector<256x128xf32>
    %89 = arith.mulf %88, %84 : vector<256x128xf32>
    %90 = arith.mulf %89, %84 : vector<256x128xf32>
    %91 = arith.addf %84, %90 : vector<256x128xf32>
    %cst_41 = arith.constant 0.797884583 : f32
    %92 = vector.broadcast %cst_41 : f32 to vector<256x128xf32>
    %93 = arith.mulf %92, %91 : vector<256x128xf32>
    %94 = math.tanh %93 : vector<256x128xf32>
    %cst_42 = arith.constant 1.000000e+00 : f32
    %95 = vector.broadcast %cst_42 : f32 to vector<256x128xf32>
    %96 = arith.addf %95, %94 : vector<256x128xf32>
    %97 = arith.mulf %86, %96 : vector<256x128xf32>
    %cst_43 = arith.constant 0.000000e+00 : bf16
    %98 = vector.broadcast %cst_43 : bf16 to vector<1x32x128xbf16>
    %c0_44 = arith.constant 0 : index
    %c0_45 = arith.constant 0 : index
    %c0_46 = arith.constant 0 : index
    %99 = vector.load %arg9[%c0_44, %c0_45, %c0_46] : memref<18x32x128xbf16, #tpu.memory_space<vmem>>, vector<1x32x128xbf16>
    tpu.vector_store %arg9[%c0_44, %c0_45, %c0_46], %98 {strides = array<i32>} : memref<18x32x128xbf16, #tpu.memory_space<vmem>>, vector<1x32x128xbf16>,
    %c17 = arith.constant 17 : index
    %c0_47 = arith.constant 0 : index
    %c0_48 = arith.constant 0 : index
    %100 = vector.load %arg9[%c17, %c0_47, %c0_48] : memref<18x32x128xbf16, #tpu.memory_space<vmem>>, vector<1x32x128xbf16>
    tpu.vector_store %arg9[%c17, %c0_47, %c0_48], %98 {strides = array<i32>} : memref<18x32x128xbf16, #tpu.memory_space<vmem>>, vector<1x32x128xbf16>,
    %cst_49 = arith.constant 0.000000e+00 : bf16
    %101 = vector.broadcast %cst_49 : bf16 to vector<16x8x128xbf16>
    %c1_50 = arith.constant 1 : index
    %c0_51 = arith.constant 0 : index
    %c0_52 = arith.constant 0 : index
    %102 = vector.load %arg9[%c1_50, %c0_51, %c0_52] : memref<18x32x128xbf16, #tpu.memory_space<vmem>>, vector<16x8x128xbf16>
    tpu.vector_store %arg9[%c1_50, %c0_51, %c0_52], %101 {strides = array<i32>} : memref<18x32x128xbf16, #tpu.memory_space<vmem>>, vector<16x8x128xbf16>,
    %c1_53 = arith.constant 1 : index
    %c24 = arith.constant 24 : index
    %c0_54 = arith.constant 0 : index
    %103 = vector.load %arg9[%c1_53, %c24, %c0_54] : memref<18x32x128xbf16, #tpu.memory_space<vmem>>, vector<16x8x128xbf16>
    tpu.vector_store %arg9[%c1_53, %c24, %c0_54], %101 {strides = array<i32>} : memref<18x32x128xbf16, #tpu.memory_space<vmem>>, vector<16x8x128xbf16>,
    %104 = arith.truncf %97 : vector<256x128xf32> to vector<256x128xbf16>
    %105 = vector.shape_cast %104 : vector<256x128xbf16> to vector<16x16x128xbf16>
    %c1_55 = arith.constant 1 : index
    %c8_56 = arith.constant 8 : index
    %c0_57 = arith.constant 0 : index
    %106 = vector.load %arg9[%c1_55, %c8_56, %c0_57] : memref<18x32x128xbf16, #tpu.memory_space<vmem>>, vector<16x16x128xbf16>
    tpu.vector_store %arg9[%c1_55, %c8_56, %c0_57], %105 {strides = array<i32>} : memref<18x32x128xbf16, #tpu.memory_space<vmem>>, vector<16x16x128xbf16>,
    %c0_58 = arith.constant 0 : index
    %c0_59 = arith.constant 0 : index
    %c0_60 = arith.constant 0 : index
    %107 = vector.load %arg9[%c0_58, %c0_59, %c0_60] : memref<18x32x128xbf16, #tpu.memory_space<vmem>>, vector<18x32x128xbf16>
    %108 = vector.extract_strided_slice %107 {offsets = [0, 7, 0], sizes = [16, 16, 128], strides = [1, 1, 1]} : vector<18x32x128xbf16> to vector<16x16x128xbf16>
    %109 = vector.shape_cast %108 : vector<16x16x128xbf16> to vector<256x128xbf16>
    %c0_61 = arith.constant 0 : index
    %c0_62 = arith.constant 0 : index
    %c0_63 = arith.constant 0 : index
    %110 = vector.load %arg5[%c0_61, %c0_62, %c0_63] : memref<9x128x128xbf16, #tpu.memory_space<vmem>>, vector<1x128x128xbf16>
    %111 = vector.shape_cast %110 : vector<1x128x128xbf16> to vector<128x128xbf16>
    %cst_64 = arith.constant dense<0.000000e+00> : vector<256x128xf32>
    %112 = tpu.matmul %109, %111, %cst_64 {dimension_numbers = #tpu.dot_dimension_numbers<[1], [0], [0], [1], [0, 0, 1, 1], [], []>} : vector<256x128xbf16>, vector<128x128xbf16>, vector<256x128xf32> -> vector<256x128xf32>
    %113 = vector.extract_strided_slice %107 {offsets = [0, 8, 0], sizes = [16, 16, 128], strides = [1, 1, 1]} : vector<18x32x128xbf16> to vector<16x16x128xbf16>
    %114 = vector.shape_cast %113 : vector<16x16x128xbf16> to vector<256x128xbf16>
    %c1_65 = arith.constant 1 : index
    %c0_66 = arith.constant 0 : index
    %c0_67 = arith.constant 0 : index
    %115 = vector.load %arg5[%c1_65, %c0_66, %c0_67] : memref<9x128x128xbf16, #tpu.memory_space<vmem>>, vector<1x128x128xbf16>
    %116 = vector.shape_cast %115 : vector<1x128x128xbf16> to vector<128x128xbf16>
    %cst_68 = arith.constant dense<0.000000e+00> : vector<256x128xf32>
    %117 = tpu.matmul %114, %116, %cst_68 {dimension_numbers = #tpu.dot_dimension_numbers<[1], [0], [0], [1], [0, 0, 1, 1], [], []>} : vector<256x128xbf16>, vector<128x128xbf16>, vector<256x128xf32> -> vector<256x128xf32>
    %118 = arith.addf %112, %117 : vector<256x128xf32>
    %119 = vector.extract_strided_slice %107 {offsets = [0, 9, 0], sizes = [16, 16, 128], strides = [1, 1, 1]} : vector<18x32x128xbf16> to vector<16x16x128xbf16>
    %120 = vector.shape_cast %119 : vector<16x16x128xbf16> to vector<256x128xbf16>
    %c2_69 = arith.constant 2 : index
    %c0_70 = arith.constant 0 : index
    %c0_71 = arith.constant 0 : index
    %121 = vector.load %arg5[%c2_69, %c0_70, %c0_71] : memref<9x128x128xbf16, #tpu.memory_space<vmem>>, vector<1x128x128xbf16>
    %122 = vector.shape_cast %121 : vector<1x128x128xbf16> to vector<128x128xbf16>
    %cst_72 = arith.constant dense<0.000000e+00> : vector<256x128xf32>
    %123 = tpu.matmul %120, %122, %cst_72 {dimension_numbers = #tpu.dot_dimension_numbers<[1], [0], [0], [1], [0, 0, 1, 1], [], []>} : vector<256x128xbf16>, vector<128x128xbf16>, vector<256x128xf32> -> vector<256x128xf32>
    %124 = arith.addf %118, %123 : vector<256x128xf32>
    %125 = vector.extract_strided_slice %107 {offsets = [1, 7, 0], sizes = [16, 16, 128], strides = [1, 1, 1]} : vector<18x32x128xbf16> to vector<16x16x128xbf16>
    %126 = vector.shape_cast %125 : vector<16x16x128xbf16> to vector<256x128xbf16>
    %c3_73 = arith.constant 3 : index
    %c0_74 = arith.constant 0 : index
    %c0_75 = arith.constant 0 : index
    %127 = vector.load %arg5[%c3_73, %c0_74, %c0_75] : memref<9x128x128xbf16, #tpu.memory_space<vmem>>, vector<1x128x128xbf16>
    %128 = vector.shape_cast %127 : vector<1x128x128xbf16> to vector<128x128xbf16>
    %cst_76 = arith.constant dense<0.000000e+00> : vector<256x128xf32>
    %129 = tpu.matmul %126, %128, %cst_76 {dimension_numbers = #tpu.dot_dimension_numbers<[1], [0], [0], [1], [0, 0, 1, 1], [], []>} : vector<256x128xbf16>, vector<128x128xbf16>, vector<256x128xf32> -> vector<256x128xf32>
    %130 = arith.addf %124, %129 : vector<256x128xf32>
    %131 = vector.extract_strided_slice %107 {offsets = [1, 8, 0], sizes = [16, 16, 128], strides = [1, 1, 1]} : vector<18x32x128xbf16> to vector<16x16x128xbf16>
    %132 = vector.shape_cast %131 : vector<16x16x128xbf16> to vector<256x128xbf16>
    %c4_77 = arith.constant 4 : index
    %c0_78 = arith.constant 0 : index
    %c0_79 = arith.constant 0 : index
    %133 = vector.load %arg5[%c4_77, %c0_78, %c0_79] : memref<9x128x128xbf16, #tpu.memory_space<vmem>>, vector<1x128x128xbf16>
    %134 = vector.shape_cast %133 : vector<1x128x128xbf16> to vector<128x128xbf16>
    %cst_80 = arith.constant dense<0.000000e+00> : vector<256x128xf32>
    %135 = tpu.matmul %132, %134, %cst_80 {dimension_numbers = #tpu.dot_dimension_numbers<[1], [0], [0], [1], [0, 0, 1, 1], [], []>} : vector<256x128xbf16>, vector<128x128xbf16>, vector<256x128xf32> -> vector<256x128xf32>
    %136 = arith.addf %130, %135 : vector<256x128xf32>
    %137 = vector.extract_strided_slice %107 {offsets = [1, 9, 0], sizes = [16, 16, 128], strides = [1, 1, 1]} : vector<18x32x128xbf16> to vector<16x16x128xbf16>
    %138 = vector.shape_cast %137 : vector<16x16x128xbf16> to vector<256x128xbf16>
    %c5_81 = arith.constant 5 : index
    %c0_82 = arith.constant 0 : index
    %c0_83 = arith.constant 0 : index
    %139 = vector.load %arg5[%c5_81, %c0_82, %c0_83] : memref<9x128x128xbf16, #tpu.memory_space<vmem>>, vector<1x128x128xbf16>
    %140 = vector.shape_cast %139 : vector<1x128x128xbf16> to vector<128x128xbf16>
    %cst_84 = arith.constant dense<0.000000e+00> : vector<256x128xf32>
    %141 = tpu.matmul %138, %140, %cst_84 {dimension_numbers = #tpu.dot_dimension_numbers<[1], [0], [0], [1], [0, 0, 1, 1], [], []>} : vector<256x128xbf16>, vector<128x128xbf16>, vector<256x128xf32> -> vector<256x128xf32>
    %142 = arith.addf %136, %141 : vector<256x128xf32>
    %143 = vector.extract_strided_slice %107 {offsets = [2, 7, 0], sizes = [16, 16, 128], strides = [1, 1, 1]} : vector<18x32x128xbf16> to vector<16x16x128xbf16>
    %144 = vector.shape_cast %143 : vector<16x16x128xbf16> to vector<256x128xbf16>
    %c6_85 = arith.constant 6 : index
    %c0_86 = arith.constant 0 : index
    %c0_87 = arith.constant 0 : index
    %145 = vector.load %arg5[%c6_85, %c0_86, %c0_87] : memref<9x128x128xbf16, #tpu.memory_space<vmem>>, vector<1x128x128xbf16>
    %146 = vector.shape_cast %145 : vector<1x128x128xbf16> to vector<128x128xbf16>
    %cst_88 = arith.constant dense<0.000000e+00> : vector<256x128xf32>
    %147 = tpu.matmul %144, %146, %cst_88 {dimension_numbers = #tpu.dot_dimension_numbers<[1], [0], [0], [1], [0, 0, 1, 1], [], []>} : vector<256x128xbf16>, vector<128x128xbf16>, vector<256x128xf32> -> vector<256x128xf32>
    %148 = arith.addf %142, %147 : vector<256x128xf32>
    %149 = vector.extract_strided_slice %107 {offsets = [2, 8, 0], sizes = [16, 16, 128], strides = [1, 1, 1]} : vector<18x32x128xbf16> to vector<16x16x128xbf16>
    %150 = vector.shape_cast %149 : vector<16x16x128xbf16> to vector<256x128xbf16>
    %c7_89 = arith.constant 7 : index
    %c0_90 = arith.constant 0 : index
    %c0_91 = arith.constant 0 : index
    %151 = vector.load %arg5[%c7_89, %c0_90, %c0_91] : memref<9x128x128xbf16, #tpu.memory_space<vmem>>, vector<1x128x128xbf16>
    %152 = vector.shape_cast %151 : vector<1x128x128xbf16> to vector<128x128xbf16>
    %cst_92 = arith.constant dense<0.000000e+00> : vector<256x128xf32>
    %153 = tpu.matmul %150, %152, %cst_92 {dimension_numbers = #tpu.dot_dimension_numbers<[1], [0], [0], [1], [0, 0, 1, 1], [], []>} : vector<256x128xbf16>, vector<128x128xbf16>, vector<256x128xf32> -> vector<256x128xf32>
    %154 = arith.addf %148, %153 : vector<256x128xf32>
    %155 = vector.extract_strided_slice %107 {offsets = [2, 9, 0], sizes = [16, 16, 128], strides = [1, 1, 1]} : vector<18x32x128xbf16> to vector<16x16x128xbf16>
    %156 = vector.shape_cast %155 : vector<16x16x128xbf16> to vector<256x128xbf16>
    %c8_93 = arith.constant 8 : index
    %c0_94 = arith.constant 0 : index
    %c0_95 = arith.constant 0 : index
    %157 = vector.load %arg5[%c8_93, %c0_94, %c0_95] : memref<9x128x128xbf16, #tpu.memory_space<vmem>>, vector<1x128x128xbf16>
    %158 = vector.shape_cast %157 : vector<1x128x128xbf16> to vector<128x128xbf16>
    %cst_96 = arith.constant dense<0.000000e+00> : vector<256x128xf32>
    %159 = tpu.matmul %156, %158, %cst_96 {dimension_numbers = #tpu.dot_dimension_numbers<[1], [0], [0], [1], [0, 0, 1, 1], [], []>} : vector<256x128xbf16>, vector<128x128xbf16>, vector<256x128xf32> -> vector<256x128xf32>
    %160 = arith.addf %154, %159 : vector<256x128xf32>
    %c0_97 = arith.constant 0 : index
    %c0_98 = arith.constant 0 : index
    %161 = vector.load %arg6[%c0_97, %c0_98] : memref<1x128xf32, #tpu.memory_space<vmem>>, vector<1x128xf32>
    %c0_99 = arith.constant 0 : index
    %c0_100 = arith.constant 0 : index
    %162 = vector.load %arg7[%c0_99, %c0_100] : memref<1x128xf32, #tpu.memory_space<vmem>>, vector<1x128xf32>
    %163 = tpu.iota {dimensions = array<i32: 1>} : vector<1x128xi32>
    %c4_i32 = arith.constant 4 : i32
    %164 = vector.broadcast %c4_i32 : i32 to vector<1x128xi32>
    %165 = arith.cmpi slt, %163, %164 : vector<1x128xi32>
    %166 = arith.extui %165 : vector<1x128xi1> to vector<1x128xi32>
    %167 = arith.sitofp %166 : vector<1x128xi32> to vector<1x128xf32>
    %168 = vector.shape_cast %160 : vector<256x128xf32> to vector<1x256x128xf32>
    %cst_101 = arith.constant dense<0.000000e+00> : vector<1xf32>
    %169 = vector.multi_reduction <add>, %168, %cst_101 [1, 2] : vector<1x256x128xf32> to vector<1xf32>
    %170 = vector.shape_cast %169 : vector<1xf32> to vector<1x1x1xf32>
    %171 = vector.extract %170[0, 0, 0] : f32 from vector<1x1x1xf32>
    %cst_102 = arith.constant 9.765625E-4 : f32
    %172 = arith.mulf %171, %cst_102 : f32
    %173 = vector.broadcast %172 : f32 to vector<1x128xf32>
    %174 = arith.mulf %173, %167 : vector<1x128xf32>
    %175 = vector.broadcast %174 : vector<1x128xf32> to vector<256x128xf32>
    %176 = arith.subf %160, %175 : vector<256x128xf32>
    %177 = arith.mulf %176, %176 : vector<256x128xf32>
    %178 = vector.shape_cast %177 : vector<256x128xf32> to vector<1x256x128xf32>
    %cst_103 = arith.constant dense<0.000000e+00> : vector<1xf32>
    %179 = vector.multi_reduction <add>, %178, %cst_103 [1, 2] : vector<1x256x128xf32> to vector<1xf32>
    %180 = vector.shape_cast %179 : vector<1xf32> to vector<1x1x1xf32>
    %181 = vector.extract %180[0, 0, 0] : f32 from vector<1x1x1xf32>
    %cst_104 = arith.constant 9.765625E-4 : f32
    %182 = arith.mulf %181, %cst_104 : f32
    %cst_105 = arith.constant 9.99999974E-6 : f32
    %183 = arith.addf %182, %cst_105 : f32
    %184 = math.rsqrt %183 : f32
    %185 = vector.broadcast %184 : f32 to vector<1x128xf32>
    %186 = arith.mulf %161, %185 : vector<1x128xf32>
    %187 = vector.broadcast %186 : vector<1x128xf32> to vector<256x128xf32>
    %188 = arith.mulf %176, %187 : vector<256x128xf32>
    %189 = vector.broadcast %162 : vector<1x128xf32> to vector<256x128xf32>
    %190 = arith.addf %188, %189 : vector<256x128xf32>
    %191 = vector.extract_strided_slice %1 {offsets = [1, 1, 0], sizes = [16, 16, 128], strides = [1, 1, 1]} : vector<18x24x128xbf16> to vector<16x16x128xbf16>
    %192 = vector.shape_cast %191 : vector<16x16x128xbf16> to vector<256x128xbf16>
    %193 = arith.extf %192 : vector<256x128xbf16> to vector<256x128xf32>
    %194 = arith.addf %193, %190 : vector<256x128xf32>
    %cst_106 = arith.constant 5.000000e-01 : f32
    %195 = vector.broadcast %cst_106 : f32 to vector<256x128xf32>
    %196 = arith.mulf %195, %194 : vector<256x128xf32>
    %cst_107 = arith.constant 4.471500e-02 : f32
    %197 = vector.broadcast %cst_107 : f32 to vector<256x128xf32>
    %198 = arith.mulf %197, %194 : vector<256x128xf32>
    %199 = arith.mulf %198, %194 : vector<256x128xf32>
    %200 = arith.mulf %199, %194 : vector<256x128xf32>
    %201 = arith.addf %194, %200 : vector<256x128xf32>
    %cst_108 = arith.constant 0.797884583 : f32
    %202 = vector.broadcast %cst_108 : f32 to vector<256x128xf32>
    %203 = arith.mulf %202, %201 : vector<256x128xf32>
    %204 = math.tanh %203 : vector<256x128xf32>
    %cst_109 = arith.constant 1.000000e+00 : f32
    %205 = vector.broadcast %cst_109 : f32 to vector<256x128xf32>
    %206 = arith.addf %205, %204 : vector<256x128xf32>
    %207 = arith.mulf %196, %206 : vector<256x128xf32>
    %208 = arith.truncf %207 : vector<256x128xf32> to vector<256x128xbf16>
    %c0_110 = arith.constant 0 : index
    %c0_111 = arith.constant 0 : index
    %c0_112 = arith.constant 0 : index
    %209 = vector.load %arg8[%c0_110, %c0_111, %c0_112] : memref<1x256x128xbf16, #tpu.memory_space<vmem>>, vector<1x256x128xbf16>
    %210 = vector.shape_cast %209 : vector<1x256x128xbf16> to vector<256x128xbf16>
    %211 = vector.shape_cast %208 : vector<256x128xbf16> to vector<1x256x128xbf16>
    tpu.vector_store %arg8[%c0_110, %c0_111, %c0_112], %211 {strides = array<i32>} : memref<1x256x128xbf16, #tpu.memory_space<vmem>>, vector<1x256x128xbf16>,
    return
  }
  func.func @transform_0(%arg0: i32) -> (i32, i32, i32, i32) {
    %c0_i32 = arith.constant 0 : i32
    %c0_i32_0 = arith.constant 0 : i32
    %c0_i32_1 = arith.constant 0 : i32
    %c0_i32_2 = arith.constant 0 : i32
    return %arg0, %c0_i32, %c0_i32_0, %c0_i32_1 : i32, i32, i32, i32
  }
  func.func @transform_1(%arg0: i32) -> (i32, i32, i32) {
    %c0_i32 = arith.constant 0 : i32
    %c0_i32_0 = arith.constant 0 : i32
    %c0_i32_1 = arith.constant 0 : i32
    %c0_i32_2 = arith.constant 0 : i32
    return %c0_i32, %c0_i32_0, %c0_i32_1 : i32, i32, i32
  }
  func.func @transform_2(%arg0: i32) -> (i32, i32) {
    %c0_i32 = arith.constant 0 : i32
    %c0_i32_0 = arith.constant 0 : i32
    %c0_i32_1 = arith.constant 0 : i32
    return %c0_i32, %c0_i32_0 : i32, i32
  }
  func.func @transform_3(%arg0: i32) -> (i32, i32) {
    %c0_i32 = arith.constant 0 : i32
    %c0_i32_0 = arith.constant 0 : i32
    %c0_i32_1 = arith.constant 0 : i32
    return %c0_i32, %c0_i32_0 : i32, i32
  }
  func.func @transform_4(%arg0: i32) -> (i32, i32, i32) {
    %c0_i32 = arith.constant 0 : i32
    %c0_i32_0 = arith.constant 0 : i32
    %c0_i32_1 = arith.constant 0 : i32
    %c0_i32_2 = arith.constant 0 : i32
    return %c0_i32, %c0_i32_0, %c0_i32_1 : i32, i32, i32
  }
  func.func @transform_5(%arg0: i32) -> (i32, i32) {
    %c0_i32 = arith.constant 0 : i32
    %c0_i32_0 = arith.constant 0 : i32
    %c0_i32_1 = arith.constant 0 : i32
    return %c0_i32, %c0_i32_0 : i32, i32
  }
  func.func @transform_6(%arg0: i32) -> (i32, i32) {
    %c0_i32 = arith.constant 0 : i32
    %c0_i32_0 = arith.constant 0 : i32
    %c0_i32_1 = arith.constant 0 : i32
    return %c0_i32, %c0_i32_0 : i32, i32
  }
  func.func @transform_7(%arg0: i32) -> (i32, i32, i32) {
    %c0_i32 = arith.constant 0 : i32
    %c0_i32_0 = arith.constant 0 : i32
    %c0_i32_1 = arith.constant 0 : i32
    return %arg0, %c0_i32, %c0_i32_0 : i32, i32, i32
  }
}

</mosaic_0001>

<llo_original>
// kernel: double_conv.1
$region0: #{double_conv.1}
  #allocation0 [shape = 'u32[]', space=smem, size = 0x4, offset = 0x4, fixed_abs, tag = 'smem constant byte address 0x4 - core index']
  #allocation1 [shape = 'u32[72,128]{1,0:T(1,128)}', space=vmem, size = 0x9000, scoped, tag = 'internal scratch']
  #allocation2 [shape = 'bf16[18,32,128]{2,1,0:T(8,128)(2,1)}', space=vmem, size = 0x24000, scoped, tag = 'scratch operand']
  %s0 = inlined_call_operand.vmem [shape: bf16[2,18,24,128], index: 0, kind: input, shape index: {}]
  %s1 = inlined_call_operand.vmem [shape: bf16[9,128,128], index: 1, kind: input, shape index: {}]
  %s2 = inlined_call_operand.vmem [shape: f32[1,128], index: 2, kind: input, shape index: {}]
  %s3 = inlined_call_operand.vmem [shape: f32[1,128], index: 3, kind: input, shape index: {}]
  %s4 = inlined_call_operand.vmem [shape: bf16[9,128,128], index: 4, kind: input, shape index: {}]
  %s5 = inlined_call_operand.vmem [shape: f32[1,128], index: 5, kind: input, shape index: {}]
  %s6 = inlined_call_operand.vmem [shape: f32[1,128], index: 6, kind: input, shape index: {}]
  %s7 = inlined_call_operand.vmem [shape: bf16[2,256,128], index: 7, kind: output, shape index: {}]
  %s8 = sld [smem:[#allocation0]]
  $region61: #{double_conv.1} parent=0
    _
  %s10 = ssub.s32 1, %s8
  %s11 = scalar_select 0, %s10, %s8
  loop: start=0, step=1, limit=4
  $region2: #{double_conv.1} parent=0 // loop_pre_header
    _
  $region3: #{double_conv.1} parent=0 // loop_header
    %s13 = sphi 0, %s17
    %p14 = scmp.ge.s32.totalorder %s13, 4
    %s23 = sphi 0, %s25
    %s26 = sphi 0, %s23
    %s27 = sphi 0, %s26
    %s43 = sphi 0, %s27
    %s47 = sphi 0, %s47
    %s49 = sphi 0, %s47
    %s50 = sphi 0, %s49
    %s64 = sphi 0, %s50
    %s68 = sphi 0, %s68
    %s70 = sphi 0, %s68
    %s71 = sphi 0, %s70
    %s85 = sphi 0, %s71
    %s89 = sphi 0, %s89
    %s91 = sphi 0, %s89
    %s92 = sphi 0, %s91
    %s106 = sphi 0, %s92
    %s110 = sphi 0, %s110
    %s112 = sphi 0, %s110
    %s113 = sphi 0, %s112
    %s127 = sphi 0, %s113
    %s131 = sphi 0, %s131
    %s133 = sphi 0, %s131
    %s134 = sphi 0, %s133
    %s148 = sphi 0, %s134
    %s152 = sphi 0, %s152
    %s154 = sphi 0, %s152
    %s155 = sphi 0, %s154
    %s169 = sphi 0, %s155
    %s175 = sphi 0, %s177
    %s178 = sphi 0, %s175
    %s179 = sphi 0, %s178
    %s195 = sphi 0, %s179
  $region4: #{double_conv.1} parent=0 // loop_header_branch
    %16 = sbr.rel (%p14) target = $region8
  $region5: #{double_conv.1} parent=0 // loop_body
    %s18 = ssub.s32 %s13, 1
    %s19 = ssub.s32 %s13, 2
    %s20 = sadd.s32 %s13, 1
    %s21 = ssub.s32 %s13, %s20
    %p22 = scmp.eq.s32.totalorder %s21, 0
    %s24 = sadd.s32 %s23, 1
    %s25 = scalar_select %p22, %s23, %s24
    %p28 = pneg %p22
    %p29 = scmp.eq.s32.totalorder %s13, 1
    %p30 = por %p28, %p29
    %p31 = scmp.ne.s32.totalorder %s23, %s26
    %p32 = scmp.eq.s32.totalorder %s13, 0
    %p33 = por %p31, %p32
    %p34 = scmp.ne.s32.totalorder %s23, %s26
    %p35 = scmp.eq.s32.totalorder %s18, 1
    %p36 = por %p34, %p35
    %p37 = scmp.ne.s32.totalorder %s26, %s27
    %p38 = scmp.eq.s32.totalorder %s18, 0
    %p39 = por %p37, %p38
    %p40 = scmp.ne.s32.totalorder %s26, %s27
    %p41 = scmp.eq.s32.totalorder %s19, 1
    %p42 = por %p40, %p41
    %p44 = scmp.ne.s32.totalorder %s27, %s43
    %p45 = scmp.eq.s32.totalorder %s19, 0
    %p46 = por %p44, %p45
    %s48 = sadd.s32 %s47, 1
    %p51 = scmp.eq.s32.totalorder %s13, 1
    %p52 = scmp.ne.s32.totalorder %s47, %s49
    %p53 = scmp.eq.s32.totalorder %s13, 0
    %p54 = por %p52, %p53
    %p55 = scmp.ne.s32.totalorder %s47, %s49
    %p56 = scmp.eq.s32.totalorder %s18, 1
    %p57 = por %p55, %p56
    %p58 = scmp.ne.s32.totalorder %s49, %s50
    %p59 = scmp.eq.s32.totalorder %s18, 0
    %p60 = por %p58, %p59
    %p61 = scmp.ne.s32.totalorder %s49, %s50
    %p62 = scmp.eq.s32.totalorder %s19, 1
    %p63 = por %p61, %p62
    %p65 = scmp.ne.s32.totalorder %s50, %s64
    %p66 = scmp.eq.s32.totalorder %s19, 0
    %p67 = por %p65, %p66
    %s69 = sadd.s32 %s68, 1
    %p72 = scmp.eq.s32.totalorder %s13, 1
    %p73 = scmp.ne.s32.totalorder %s68, %s70
    %p74 = scmp.eq.s32.totalorder %s13, 0
    %p75 = por %p73, %p74
    %p76 = scmp.ne.s32.totalorder %s68, %s70
    %p77 = scmp.eq.s32.totalorder %s18, 1
    %p78 = por %p76, %p77
    %p79 = scmp.ne.s32.totalorder %s70, %s71
    %p80 = scmp.eq.s32.totalorder %s18, 0
    %p81 = por %p79, %p80
    %p82 = scmp.ne.s32.totalorder %s70, %s71
    %p83 = scmp.eq.s32.totalorder %s19, 1
    %p84 = por %p82, %p83
    %p86 = scmp.ne.s32.totalorder %s71, %s85
    %p87 = scmp.eq.s32.totalorder %s19, 0
    %p88 = por %p86, %p87
    %s90 = sadd.s32 %s89, 1
    %p93 = scmp.eq.s32.totalorder %s13, 1
    %p94 = scmp.ne.s32.totalorder %s89, %s91
    %p95 = scmp.eq.s32.totalorder %s13, 0
    %p96 = por %p94, %p95
    %p97 = scmp.ne.s32.totalorder %s89, %s91
    %p98 = scmp.eq.s32.totalorder %s18, 1
    %p99 = por %p97, %p98
    %p100 = scmp.ne.s32.totalorder %s91, %s92
    %p101 = scmp.eq.s32.totalorder %s18, 0
    %p102 = por %p100, %p101
    %p103 = scmp.ne.s32.totalorder %s91, %s92
    %p104 = scmp.eq.s32.totalorder %s19, 1
    %p105 = por %p103, %p104
    %p107 = scmp.ne.s32.totalorder %s92, %s106
    %p108 = scmp.eq.s32.totalorder %s19, 0
    %p109 = por %p107, %p108
    %s111 = sadd.s32 %s110, 1
    %p114 = scmp.eq.s32.totalorder %s13, 1
    %p115 = scmp.ne.s32.totalorder %s110, %s112
    %p116 = scmp.eq.s32.totalorder %s13, 0
    %p117 = por %p115, %p116
    %p118 = scmp.ne.s32.totalorder %s110, %s112
    %p119 = scmp.eq.s32.totalorder %s18, 1
    %p120 = por %p118, %p119
    %p121 = scmp.ne.s32.totalorder %s112, %s113
    %p122 = scmp.eq.s32.totalorder %s18, 0
    %p123 = por %p121, %p122
    %p124 = scmp.ne.s32.totalorder %s112, %s113
    %p125 = scmp.eq.s32.totalorder %s19, 1
    %p126 = por %p124, %p125
    %p128 = scmp.ne.s32.totalorder %s113, %s127
    %p129 = scmp.eq.s32.totalorder %s19, 0
    %p130 = por %p128, %p129
    %s132 = sadd.s32 %s131, 1
    %p135 = scmp.eq.s32.totalorder %s13, 1
    %p136 = scmp.ne.s32.totalorder %s131, %s133
    %p137 = scmp.eq.s32.totalorder %s13, 0
    %p138 = por %p136, %p137
    %p139 = scmp.ne.s32.totalorder %s131, %s133
    %p140 = scmp.eq.s32.totalorder %s18, 1
    %p141 = por %p139, %p140
    %p142 = scmp.ne.s32.totalorder %s133, %s134
    %p143 = scmp.eq.s32.totalorder %s18, 0
    %p144 = por %p142, %p143
    %p145 = scmp.ne.s32.totalorder %s133, %s134
    %p146 = scmp.eq.s32.totalorder %s19, 1
    %p147 = por %p145, %p146
    %p149 = scmp.ne.s32.totalorder %s134, %s148
    %p150 = scmp.eq.s32.totalorder %s19, 0
    %p151 = por %p149, %p150
    %s153 = sadd.s32 %s152, 1
    %p156 = scmp.eq.s32.totalorder %s13, 1
    %p157 = scmp.ne.s32.totalorder %s152, %s154
    %p158 = scmp.eq.s32.totalorder %s13, 0
    %p159 = por %p157, %p158
    %p160 = scmp.ne.s32.totalorder %s152, %s154
    %p161 = scmp.eq.s32.totalorder %s18, 1
    %p162 = por %p160, %p161
    %p163 = scmp.ne.s32.totalorder %s154, %s155
    %p164 = scmp.eq.s32.totalorder %s18, 0
    %p165 = por %p163, %p164
    %p166 = scmp.ne.s32.totalorder %s154, %s155
    %p167 = scmp.eq.s32.totalorder %s19, 1
    %p168 = por %p166, %p167
    %p170 = scmp.ne.s32.totalorder %s155, %s169
    %p171 = scmp.eq.s32.totalorder %s19, 0
    %p172 = por %p170, %p171
    %s173 = ssub.s32 %s13, %s20
    %p174 = scmp.eq.s32.totalorder %s173, 0
    %s176 = sadd.s32 %s175, 1
    %s177 = scalar_select %p174, %s175, %s176
    %p180 = pneg %p174
    %p181 = scmp.eq.s32.totalorder %s13, 1
    %p182 = por %p180, %p181
    %p183 = scmp.ne.s32.totalorder %s175, %s178
    %p184 = scmp.eq.s32.totalorder %s13, 0
    %p185 = por %p183, %p184
    %p186 = scmp.ne.s32.totalorder %s175, %s178
    %p187 = scmp.eq.s32.totalorder %s18, 1
    %p188 = por %p186, %p187
    %p189 = scmp.ne.s32.totalorder %s178, %s179
    %p190 = scmp.eq.s32.totalorder %s18, 0
    %p191 = por %p189, %p190
    %p192 = scmp.ne.s32.totalorder %s178, %s179
    %p193 = scmp.eq.s32.totalorder %s19, 1
    %p194 = por %p192, %p193
    %p196 = scmp.ne.s32.totalorder %s179, %s195
    %p197 = scmp.eq.s32.totalorder %s19, 0
    %p198 = por %p196, %p197
    %p199 = scmp.le.s32.totalorder 1, %s13
    %p200 = scmp.lt.s32.totalorder %s13, 3
    %p201 = pnand %p199, %p200
    %p202 = pneg %p201
    // Predicated region
    $region9: #{double_conv.1} parent=5 // pred_check
      _
    $region10: #{double_conv.1} parent=5 // pred_check_branch
      %204 = sbr.rel (%p201) target = $region12
    $region11: #{double_conv.1} parent=5 // pred_region
      %s205 = ssub.s32 %s13, 1
      // Predicated region
      $region13: #{double_conv.1} parent=11 // pred_check
        %p206 = pneg %p60
      $region14: #{double_conv.1} parent=11 // pred_check_branch
        %208 = sbr.rel (%p206) target = $region16
      $region15: #{double_conv.1} parent=11 // pred_region
        _
      $region16: #{double_conv.1} parent=11 // pred_fallthru
        _
      // Predicated region
      $region17: #{double_conv.1} parent=11 // pred_check
        %p209 = pneg %p81
      $region18: #{double_conv.1} parent=11 // pred_check_branch
        %211 = sbr.rel (%p209) target = $region20
      $region19: #{double_conv.1} parent=11 // pred_region
        _
      $region20: #{double_conv.1} parent=11 // pred_fallthru
        _
      // Predicated region
      $region21: #{double_conv.1} parent=11 // pred_check
        %p212 = pneg %p102
      $region22: #{double_conv.1} parent=11 // pred_check_branch
        %214 = sbr.rel (%p212) target = $region24
      $region23: #{double_conv.1} parent=11 // pred_region
        _
      $region24: #{double_conv.1} parent=11 // pred_fallthru
        _
      // Predicated region
      $region25: #{double_conv.1} parent=11 // pred_check
        %p215 = pneg %p123
      $region26: #{double_conv.1} parent=11 // pred_check_branch
        %217 = sbr.rel (%p215) target = $region28
      $region27: #{double_conv.1} parent=11 // pred_region
        _
      $region28: #{double_conv.1} parent=11 // pred_fallthru
        _
      // Predicated region
      $region29: #{double_conv.1} parent=11 // pred_check
        %p218 = pneg %p144
      $region30: #{double_conv.1} parent=11 // pred_check_branch
        %220 = sbr.rel (%p218) target = $region32
      $region31: #{double_conv.1} parent=11 // pred_region
        _
      $region32: #{double_conv.1} parent=11 // pred_fallthru
        _
      // Predicated region
      $region33: #{double_conv.1} parent=11 // pred_check
        %p221 = pneg %p165
      $region34: #{double_conv.1} parent=11 // pred_check_branch
        %223 = sbr.rel (%p221) target = $region36
      $region35: #{double_conv.1} parent=11 // pred_region
        _
      $region36: #{double_conv.1} parent=11 // pred_fallthru
        _
    $region12: #{double_conv.1} parent=5 // pred_fallthru
      _
    %p224 = scmp.lt.s32.totalorder %s13, 2
    // Predicated region
    $region37: #{double_conv.1} parent=5 // pred_check
      %p225 = pneg %p224
    $region38: #{double_conv.1} parent=5 // pred_check_branch
      %227 = sbr.rel (%p225) target = $region40
    $region39: #{double_conv.1} parent=5 // pred_region
      // Predicated region
      $region41: #{double_conv.1} parent=39 // pred_check
        %p228 = pneg %p33
      $region42: #{double_conv.1} parent=39 // pred_check_branch
        %230 = sbr.rel (%p228) target = $region44
      $region43: #{double_conv.1} parent=39 // pred_region
        %p231 = scmp.lt.s32.totalorder %s13, 1
        %s232 = scalar_select %p231, %s13, 1
        %s233 = smul.addr %s232, 54
        %s234 = smul.addr %s233, 4
        %s235 = scalar_lea.vmem %s0, %s234
      $region44: #{double_conv.1} parent=39 // pred_fallthru
        _
    $region40: #{double_conv.1} parent=5 // pred_fallthru
      _
    %p236 = scmp.le.s32.totalorder 1, %s13
    %p237 = scmp.lt.s32.totalorder %s13, 3
    %p238 = pnand %p236, %p237
    %p239 = pneg %p238
    // Predicated region
    $region45: #{double_conv.1} parent=5 // pred_check
      _
    $region46: #{double_conv.1} parent=5 // pred_check_branch
      %241 = sbr.rel (%p238) target = $region48
    $region47: #{double_conv.1} parent=5 // pred_region
      %s242 = ssub.s32 %s13, 1
      %p243 = scmp.lt.s32.totalorder %s18, 1
      %s244 = scalar_select %p243, %s18, 1
      %s245 = smul.addr %s244, 54
      %s246 = smul.addr %s245, 4
      %s247 = scalar_lea.vmem %s0, %s246
      %p248 = pneg %p39
      %p249 = pneg %p36
      %p250 = pneg %p60
      %p251 = pneg %p57
      %p252 = pneg %p81
      %p253 = pneg %p78
      %p254 = pneg %p102
      %p255 = pneg %p99
      %p256 = pneg %p123
      %p257 = pneg %p120
      %p258 = pneg %p144
      %p259 = pneg %p141
      %p260 = pneg %p165
      %p261 = pneg %p162
      %p262 = pneg %p191
      %p263 = pneg %p188
      %p264 = scmp.lt.s32.totalorder %s18, 1
      %s265 = scalar_select %p264, %s18, 1
      %s266 = smul.addr %s265, 32
      %s267 = smul.addr %s266, 4
      %s268 = scalar_lea.vmem %s7, %s267
      %p269 = scmp.lt.s32.totalorder %s18, 1
      %s270 = scalar_select %p269, %s18, 1
      %s271 = smul.addr %s270, 54
      %s272 = smul.addr %s271, 4
      %s273 = scalar_lea.vmem %s0, %s272
      %p274 = scmp.lt.s32.totalorder %s18, 1
      %s275 = scalar_select %p274, %s18, 1
      %s276 = smul.addr %s275, 32
      %s277 = smul.addr %s276, 4
      %s278 = scalar_lea.vmem %s7, %s277
      %v280 = vld [vmem:[%s273] sm:$0xf]
      %v281 = vld [vmem:[%s273 + $0x4] sm:$0xf]
      %v282 = vld [vmem:[%s273 + $0x8] sm:$0xf]
      %v283 = vld [vmem:[%s273 + $0xc] sm:$0xf]
      %v284 = vld [vmem:[%s273 + $0x10] sm:$0xf]
      %v285 = vld [vmem:[%s273 + $0x14] sm:$0xf]
      %v286 = vld [vmem:[%s273 + $0x18] sm:$0xf]
      %v287 = vld [vmem:[%s273 + $0x1c] sm:$0xf]
      %v288 = vld [vmem:[%s273 + $0x20] sm:$0xf]
      %v289 = vld [vmem:[%s273 + $0x24] sm:$0xf]
      %v290 = vld [vmem:[%s273 + $0x28] sm:$0xf]
      %v291 = vld [vmem:[%s273 + $0x2c] sm:$0xf]
      %v292 = vld [vmem:[%s273 + $0x30] sm:$0xf]
      %v293 = vld [vmem:[%s273 + $0x34] sm:$0xf]
      %v294 = vld [vmem:[%s273 + $0x38] sm:$0xf]
      %v295 = vld [vmem:[%s273 + $0x3c] sm:$0xf]
      %v296 = vld [vmem:[%s273 + $0x40] sm:$0xf]
      %v297 = vld [vmem:[%s273 + $0x44] sm:$0xf]
      %v298 = vld [vmem:[%s273 + $0x48] sm:$0xf]
      %v299 = vld [vmem:[%s273 + $0x4c] sm:$0xf]
      %v300 = vld [vmem:[%s273 + $0x50] sm:$0xf]
      %v301 = vld [vmem:[%s273 + $0x54] sm:$0xf]
      %v302 = vld [vmem:[%s273 + $0x58] sm:$0xf]
      %v303 = vld [vmem:[%s273 + $0x5c] sm:$0xf]
      %v304 = vld [vmem:[%s273 + $0x60] sm:$0xf]
      %v305 = vld [vmem:[%s273 + $0x64] sm:$0xf]
      %v306 = vld [vmem:[%s273 + $0x68] sm:$0xf]
      %v307 = vld [vmem:[%s273 + $0x6c] sm:$0xf]
      %v308 = vld [vmem:[%s273 + $0x70] sm:$0xf]
      %v309 = vld [vmem:[%s273 + $0x74] sm:$0xf]
      %v310 = vld [vmem:[%s273 + $0x78] sm:$0xf]
      %v311 = vld [vmem:[%s273 + $0x7c] sm:$0xf]
      %v312 = vld [vmem:[%s273 + $0x80] sm:$0xf]
      %v313 = vld [vmem:[%s273 + $0x84] sm:$0xf]
      %v314 = vld [vmem:[%s273 + $0x88] sm:$0xf]
      %v315 = vld [vmem:[%s273 + $0x8c] sm:$0xf]
      %v316 = vld [vmem:[%s273 + $0x90] sm:$0xf]
      %v317 = vld [vmem:[%s273 + $0x94] sm:$0xf]
      %v318 = vld [vmem:[%s273 + $0x98] sm:$0xf]
      %v319 = vld [vmem:[%s273 + $0x9c] sm:$0xf]
      %v320 = vld [vmem:[%s273 + $0xa0] sm:$0xf]
      %v321 = vld [vmem:[%s273 + $0xa4] sm:$0xf]
      %v322 = vld [vmem:[%s273 + $0xa8] sm:$0xf]
      %v323 = vld [vmem:[%s273 + $0xac] sm:$0xf]
      %v324 = vld [vmem:[%s273 + $0xb0] sm:$0xf]
      %v325 = vld [vmem:[%s273 + $0xb4] sm:$0xf]
      %v326 = vld [vmem:[%s273 + $0xb8] sm:$0xf]
      %v327 = vld [vmem:[%s273 + $0xbc] sm:$0xf]
      %v328 = vld [vmem:[%s273 + $0xc0] sm:$0xf]
      %v329 = vld [vmem:[%s273 + $0xc4] sm:$0xf]
      %v330 = vld [vmem:[%s273 + $0xc8] sm:$0xf]
      %v331 = vld [vmem:[%s273 + $0xcc] sm:$0xf]
      %v332 = vld [vmem:[%s273 + $0xd0] sm:$0xf]
      %v333 = vld [vmem:[%s273 + $0xd4] sm:$0xf]
      %v334 = vld [vmem:[%s1] sm:$0xf]
      %v335 = vld [vmem:[%s1 + $0x4] sm:$0xf]
      %v336 = vld [vmem:[%s1 + $0x8] sm:$0xf]
      %v337 = vld [vmem:[%s1 + $0xc] sm:$0xf]
      %v338 = vld [vmem:[%s1 + $0x10] sm:$0xf]
      %v339 = vld [vmem:[%s1 + $0x14] sm:$0xf]
      %v340 = vld [vmem:[%s1 + $0x18] sm:$0xf]
      %v341 = vld [vmem:[%s1 + $0x1c] sm:$0xf]
      %v342 = vld [vmem:[%s1 + $0x20] sm:$0xf]
      %v343 = vld [vmem:[%s1 + $0x24] sm:$0xf]
      %v344 = vld [vmem:[%s1 + $0x28] sm:$0xf]
      %v345 = vld [vmem:[%s1 + $0x2c] sm:$0xf]
      %v346 = vld [vmem:[%s1 + $0x30] sm:$0xf]
      %v347 = vld [vmem:[%s1 + $0x34] sm:$0xf]
      %v348 = vld [vmem:[%s1 + $0x38] sm:$0xf]
      %v349 = vld [vmem:[%s1 + $0x3c] sm:$0xf]
      %vm350 = vsmask.f32 3328
      %vm351 = vsmask.f32 7440
      %vm352 = vmor %vm350, %vm351
      %v354 = vshrl.u32 %v280, 16
      %v356 = vrot.slane %v354, 4
      %v357 = vshll.u32 %v280, 16
      %v359 = vrot.slane %v357, 5
      %v360 = vor.u32 %v356, %v359
      %v361 = vrot.slane %v360, 4
      %v363 = vshll.u32 %v281, 16
      %v365 = vrot.slane %v363, 5
      %v366 = vsel %vm352, %v361, %v365
      %v367 = vshrl.u32 %v281, 16
      %v369 = vrot.slane %v367, 4
      %v370 = vor.u32 %v369, %v365
      %v371 = vrot.slane %v370, 4
      %v373 = vshll.u32 %v282, 16
      %v375 = vrot.slane %v373, 5
      %v376 = vsel %vm352, %v371, %v375
      %v378 = vshrl.u32 %v283, 16
      %v380 = vrot.slane %v378, 4
      %v381 = vshll.u32 %v283, 16
      %v383 = vrot.slane %v381, 5
      %v384 = vor.u32 %v380, %v383
      %v385 = vrot.slane %v384, 4
      %v387 = vshll.u32 %v284, 16
      %v389 = vrot.slane %v387, 5
      %v390 = vsel %vm352, %v385, %v389
      %v391 = vshrl.u32 %v284, 16
      %v393 = vrot.slane %v391, 4
      %v394 = vor.u32 %v393, %v389
      %v395 = vrot.slane %v394, 4
      %v397 = vshll.u32 %v285, 16
      %v399 = vrot.slane %v397, 5
      %v400 = vsel %vm352, %v395, %v399
      %v402 = vshrl.u32 %v286, 16
      %v404 = vrot.slane %v402, 4
      %v405 = vshll.u32 %v286, 16
      %v407 = vrot.slane %v405, 5
      %v408 = vor.u32 %v404, %v407
      %v409 = vrot.slane %v408, 4
      %v411 = vshll.u32 %v287, 16
      %v413 = vrot.slane %v411, 5
      %v414 = vsel %vm352, %v409, %v413
      %v415 = vshrl.u32 %v287, 16
      %v417 = vrot.slane %v415, 4
      %v418 = vor.u32 %v417, %v413
      %v419 = vrot.slane %v418, 4
      %v421 = vshll.u32 %v288, 16
      %v423 = vrot.slane %v421, 5
      %v424 = vsel %vm352, %v419, %v423
      %v426 = vshrl.u32 %v289, 16
      %v428 = vrot.slane %v426, 4
      %v429 = vshll.u32 %v289, 16
      %v431 = vrot.slane %v429, 5
      %v432 = vor.u32 %v428, %v431
      %v433 = vrot.slane %v432, 4
      %v435 = vshll.u32 %v290, 16
      %v437 = vrot.slane %v435, 5
      %v438 = vsel %vm352, %v433, %v437
      %v439 = vshrl.u32 %v290, 16
      %v441 = vrot.slane %v439, 4
      %v442 = vor.u32 %v441, %v437
      %v443 = vrot.slane %v442, 4
      %v445 = vshll.u32 %v291, 16
      %v447 = vrot.slane %v445, 5
      %v448 = vsel %vm352, %v443, %v447
      %v450 = vshrl.u32 %v292, 16
      %v452 = vrot.slane %v450, 4
      %v453 = vshll.u32 %v292, 16
      %v455 = vrot.slane %v453, 5
      %v456 = vor.u32 %v452, %v455
      %v457 = vrot.slane %v456, 4
      %v459 = vshll.u32 %v293, 16
      %v461 = vrot.slane %v459, 5
      %v462 = vsel %vm352, %v457, %v461
      %v463 = vshrl.u32 %v293, 16
      %v465 = vrot.slane %v463, 4
      %v466 = vor.u32 %v465, %v461
      %v467 = vrot.slane %v466, 4
      %v469 = vshll.u32 %v294, 16
      %v471 = vrot.slane %v469, 5
      %v472 = vsel %vm352, %v467, %v471
      %v474 = vshrl.u32 %v295, 16
      %v476 = vrot.slane %v474, 4
      %v477 = vshll.u32 %v295, 16
      %v479 = vrot.slane %v477, 5
      %v480 = vor.u32 %v476, %v479
      %v481 = vrot.slane %v480, 4
      %v483 = vshll.u32 %v296, 16
      %v485 = vrot.slane %v483, 5
      %v486 = vsel %vm352, %v481, %v485
      %v487 = vshrl.u32 %v296, 16
      %v489 = vrot.slane %v487, 4
      %v490 = vor.u32 %v489, %v485
      %v491 = vrot.slane %v490, 4
      %v493 = vshll.u32 %v297, 16
      %v495 = vrot.slane %v493, 5
      %v496 = vsel %vm352, %v491, %v495
      %v498 = vshrl.u32 %v298, 16
      %v500 = vrot.slane %v498, 4
      %v501 = vshll.u32 %v298, 16
      %v503 = vrot.slane %v501, 5
      %v504 = vor.u32 %v500, %v503
      %v505 = vrot.slane %v504, 4
      %v507 = vshll.u32 %v299, 16
      %v509 = vrot.slane %v507, 5
      %v510 = vsel %vm352, %v505, %v509
      %v511 = vshrl.u32 %v299, 16
      %v513 = vrot.slane %v511, 4
      %v514 = vor.u32 %v513, %v509
      %v515 = vrot.slane %v514, 4
      %v517 = vshll.u32 %v300, 16
      %v519 = vrot.slane %v517, 5
      %v520 = vsel %vm352, %v515, %v519
      %v522 = vshrl.u32 %v301, 16
      %v524 = vrot.slane %v522, 4
      %v525 = vshll.u32 %v301, 16
      %v527 = vrot.slane %v525, 5
      %v528 = vor.u32 %v524, %v527
      %v529 = vrot.slane %v528, 4
      %v531 = vshll.u32 %v302, 16
      %v533 = vrot.slane %v531, 5
      %v534 = vsel %vm352, %v529, %v533
      %v535 = vshrl.u32 %v302, 16
      %v537 = vrot.slane %v535, 4
      %v538 = vor.u32 %v537, %v533
      %v539 = vrot.slane %v538, 4
      %v541 = vshll.u32 %v303, 16
      %v543 = vrot.slane %v541, 5
      %v544 = vsel %vm352, %v539, %v543
      %v546 = vshrl.u32 %v304, 16
      %v548 = vrot.slane %v546, 4
      %v549 = vshll.u32 %v304, 16
      %v551 = vrot.slane %v549, 5
      %v552 = vor.u32 %v548, %v551
      %v553 = vrot.slane %v552, 4
      %v555 = vshll.u32 %v305, 16
      %v557 = vrot.slane %v555, 5
      %v558 = vsel %vm352, %v553, %v557
      %v559 = vshrl.u32 %v305, 16
      %v561 = vrot.slane %v559, 4
      %v562 = vor.u32 %v561, %v557
      %v563 = vrot.slane %v562, 4
      %v565 = vshll.u32 %v306, 16
      %v567 = vrot.slane %v565, 5
      %v568 = vsel %vm352, %v563, %v567
      %v570 = vshrl.u32 %v307, 16
      %v572 = vrot.slane %v570, 4
      %v573 = vshll.u32 %v307, 16
      %v575 = vrot.slane %v573, 5
      %v576 = vor.u32 %v572, %v575
      %v577 = vrot.slane %v576, 4
      %v579 = vshll.u32 %v308, 16
      %v581 = vrot.slane %v579, 5
      %v582 = vsel %vm352, %v577, %v581
      %v583 = vshrl.u32 %v308, 16
      %v585 = vrot.slane %v583, 4
      %v586 = vor.u32 %v585, %v581
      %v587 = vrot.slane %v586, 4
      %v589 = vshll.u32 %v309, 16
      %v591 = vrot.slane %v589, 5
      %v592 = vsel %vm352, %v587, %v591
      %v594 = vshrl.u32 %v310, 16
      %v596 = vrot.slane %v594, 4
      %v597 = vshll.u32 %v310, 16
      %v599 = vrot.slane %v597, 5
      %v600 = vor.u32 %v596, %v599
      %v601 = vrot.slane %v600, 4
      %v603 = vshll.u32 %v311, 16
      %v605 = vrot.slane %v603, 5
      %v606 = vsel %vm352, %v601, %v605
      %v607 = vshrl.u32 %v311, 16
      %v609 = vrot.slane %v607, 4
      %v610 = vor.u32 %v609, %v605
      %v611 = vrot.slane %v610, 4
      %v613 = vshll.u32 %v312, 16
      %v615 = vrot.slane %v613, 5
      %v616 = vsel %vm352, %v611, %v615
      %v618 = vshrl.u32 %v313, 16
      %v620 = vrot.slane %v618, 4
      %v621 = vshll.u32 %v313, 16
      %v623 = vrot.slane %v621, 5
      %v624 = vor.u32 %v620, %v623
      %v625 = vrot.slane %v624, 4
      %v627 = vshll.u32 %v314, 16
      %v629 = vrot.slane %v627, 5
      %v630 = vsel %vm352, %v625, %v629
      %v631 = vshrl.u32 %v314, 16
      %v633 = vrot.slane %v631, 4
      %v634 = vor.u32 %v633, %v629
      %v635 = vrot.slane %v634, 4
      %v637 = vshll.u32 %v315, 16
      %v639 = vrot.slane %v637, 5
      %v640 = vsel %vm352, %v635, %v639
      %v642 = vshrl.u32 %v316, 16
      %v644 = vrot.slane %v642, 4
      %v645 = vshll.u32 %v316, 16
      %v647 = vrot.slane %v645, 5
      %v648 = vor.u32 %v644, %v647
      %v649 = vrot.slane %v648, 4
      %v651 = vshll.u32 %v317, 16
      %v653 = vrot.slane %v651, 5
      %v654 = vsel %vm352, %v649, %v653
      %v655 = vshrl.u32 %v317, 16
      %v657 = vrot.slane %v655, 4
      %v658 = vor.u32 %v657, %v653
      %v659 = vrot.slane %v658, 4
      %v661 = vshll.u32 %v318, 16
      %v663 = vrot.slane %v661, 5
      %v664 = vsel %vm352, %v659, %v663
      %v666 = vshrl.u32 %v319, 16
      %v668 = vrot.slane %v666, 4
      %v669 = vshll.u32 %v319, 16
      %v671 = vrot.slane %v669, 5
      %v672 = vor.u32 %v668, %v671
      %v673 = vrot.slane %v672, 4
      %v675 = vshll.u32 %v320, 16
      %v677 = vrot.slane %v675, 5
      %v678 = vsel %vm352, %v673, %v677
      %v679 = vshrl.u32 %v320, 16
      %v681 = vrot.slane %v679, 4
      %v682 = vor.u32 %v681, %v677
      %v683 = vrot.slane %v682, 4
      %v685 = vshll.u32 %v321, 16
      %v687 = vrot.slane %v685, 5
      %v688 = vsel %vm352, %v683, %v687
      %v690 = vshrl.u32 %v322, 16
      %v692 = vrot.slane %v690, 4
      %v693 = vshll.u32 %v322, 16
      %v695 = vrot.slane %v693, 5
      %v696 = vor.u32 %v692, %v695
      %v697 = vrot.slane %v696, 4
      %v699 = vshll.u32 %v323, 16
      %v701 = vrot.slane %v699, 5
      %v702 = vsel %vm352, %v697, %v701
      %v703 = vshrl.u32 %v323, 16
      %v705 = vrot.slane %v703, 4
      %v706 = vor.u32 %v705, %v701
      %v707 = vrot.slane %v706, 4
      %v709 = vshll.u32 %v324, 16
      %v711 = vrot.slane %v709, 5
      %v712 = vsel %vm352, %v707, %v711
      %v714 = vshrl.u32 %v325, 16
      %v716 = vrot.slane %v714, 4
      %v717 = vshll.u32 %v325, 16
      %v719 = vrot.slane %v717, 5
      %v720 = vor.u32 %v716, %v719
      %v721 = vrot.slane %v720, 4
      %v723 = vshll.u32 %v326, 16
      %v725 = vrot.slane %v723, 5
      %v726 = vsel %vm352, %v721, %v725
      %v727 = vshrl.u32 %v326, 16
      %v729 = vrot.slane %v727, 4
      %v730 = vor.u32 %v729, %v725
      %v731 = vrot.slane %v730, 4
      %v733 = vshll.u32 %v327, 16
      %v735 = vrot.slane %v733, 5
      %v736 = vsel %vm352, %v731, %v735
      %s737 = scalar_lea.vmem %s1, 64
      %v738 = vld [vmem:[%s737] sm:$0xf]
      %v739 = vld [vmem:[%s737 + $0x4] sm:$0xf]
      %v740 = vld [vmem:[%s737 + $0x8] sm:$0xf]
      %v741 = vld [vmem:[%s737 + $0xc] sm:$0xf]
      %v742 = vld [vmem:[%s737 + $0x10] sm:$0xf]
      %v743 = vld [vmem:[%s737 + $0x14] sm:$0xf]
      %v744 = vld [vmem:[%s737 + $0x18] sm:$0xf]
      %v745 = vld [vmem:[%s737 + $0x1c] sm:$0xf]
      %v746 = vld [vmem:[%s737 + $0x20] sm:$0xf]
      %v747 = vld [vmem:[%s737 + $0x24] sm:$0xf]
      %v748 = vld [vmem:[%s737 + $0x28] sm:$0xf]
      %v749 = vld [vmem:[%s737 + $0x2c] sm:$0xf]
      %v750 = vld [vmem:[%s737 + $0x30] sm:$0xf]
      %v751 = vld [vmem:[%s737 + $0x34] sm:$0xf]
      %v752 = vld [vmem:[%s737 + $0x38] sm:$0xf]
      %v753 = vld [vmem:[%s737 + $0x3c] sm:$0xf]
      %v754 = vunpack.c.l.b16 %v366
      %v755 = vunpack.c.l.b16 %v376
      %v756 = vunpack.c.l.b16 %v390
      %v757 = vunpack.c.l.b16 %v400
      %v758 = vunpack.c.l.b16 %v414
      %v759 = vunpack.c.l.b16 %v424
      %v760 = vunpack.c.l.b16 %v438
      %v761 = vunpack.c.l.b16 %v448
      %v762 = vunpack.c.l.b16 %v462
      %v763 = vunpack.c.l.b16 %v472
      %v764 = vunpack.c.l.b16 %v486
      %v765 = vunpack.c.l.b16 %v496
      %v766 = vunpack.c.l.b16 %v510
      %v767 = vunpack.c.l.b16 %v520
      %v768 = vunpack.c.l.b16 %v534
      %v769 = vunpack.c.l.b16 %v544
      %v770 = vunpack.c.l.b16 %v558
      %v771 = vunpack.c.l.b16 %v568
      %v772 = vunpack.c.l.b16 %v582
      %v773 = vunpack.c.l.b16 %v592
      %v774 = vunpack.c.l.b16 %v606
      %v775 = vunpack.c.l.b16 %v616
      %v776 = vunpack.c.l.b16 %v630
      %v777 = vunpack.c.l.b16 %v640
      %v778 = vunpack.c.l.b16 %v654
      %v779 = vunpack.c.l.b16 %v664
      %v780 = vunpack.c.l.b16 %v678
      %v781 = vunpack.c.l.b16 %v688
      %v782 = vunpack.c.l.b16 %v702
      %v783 = vunpack.c.l.b16 %v712
      %v784 = vunpack.c.l.b16 %v726
      %v785 = vunpack.c.l.b16 %v736
      %v786 = vpack.c.b16 %v755, %v754
      %v787 = vpack.c.b16 %v757, %v756
      %v788 = vpack.c.b16 %v759, %v758
      %v789 = vpack.c.b16 %v761, %v760
      %v790 = vpack.c.b16 %v763, %v762
      %v791 = vpack.c.b16 %v765, %v764
      %v792 = vpack.c.b16 %v767, %v766
      %v793 = vpack.c.b16 %v769, %v768
      %v794 = vpack.c.b16 %v771, %v770
      %v795 = vpack.c.b16 %v773, %v772
      %v796 = vpack.c.b16 %v775, %v774
      %v797 = vpack.c.b16 %v777, %v776
      %v798 = vpack.c.b16 %v779, %v778
      %v799 = vpack.c.b16 %v781, %v780
      %v800 = vpack.c.b16 %v783, %v782
      %v801 = vpack.c.b16 %v785, %v784
      %v834 = vunpack.c.l.b16 %v738
      %v835 = vunpack.c.l.b16 %v739
      %v836 = vunpack.c.l.b16 %v740
      %v837 = vunpack.c.l.b16 %v741
      %v838 = vunpack.c.l.b16 %v742
      %v839 = vunpack.c.l.b16 %v743
      %v840 = vunpack.c.l.b16 %v744
      %v841 = vunpack.c.l.b16 %v745
      %v842 = vunpack.c.l.b16 %v746
      %v843 = vunpack.c.l.b16 %v747
      %v844 = vunpack.c.l.b16 %v748
      %v845 = vunpack.c.l.b16 %v749
      %v846 = vunpack.c.l.b16 %v750
      %v847 = vunpack.c.l.b16 %v751
      %v848 = vunpack.c.l.b16 %v752
      %v849 = vunpack.c.l.b16 %v753
      %v850 = vpack.c.b16 %v835, %v834
      %v851 = vpack.c.b16 %v837, %v836
      %v852 = vpack.c.b16 %v839, %v838
      %v853 = vpack.c.b16 %v841, %v840
      %v854 = vpack.c.b16 %v843, %v842
      %v855 = vpack.c.b16 %v845, %v844
      %v856 = vpack.c.b16 %v847, %v846
      %v857 = vpack.c.b16 %v849, %v848
      %866 = vmatpush.bf16.msra.mxu0 %v857
      %867 = vmatpush.bf16.msra.mxu0 %v856
      %868 = vmatpush.bf16.msra.mxu0 %v855
      %869 = vmatpush.bf16.msra.mxu0 %v854
      %870 = vmatpush.bf16.msra.mxu0 %v853
      %871 = vmatpush.bf16.msra.mxu0 %v852
      %872 = vmatpush.bf16.msra.mxu0 %v851
      %873 = vmatpush.bf16.msra.mxu0 %v850
      %874 = vmatmul.bf16.gmra.mxu0 %v786
      %v875 = vpop.f32.mrf.mxu0
      %v876 = vadd.f32 0.0, %v875
      %v877 = vpop.f32.mrf.mxu0
      %v878 = vadd.f32 0.0, %v877
      %879 = vmatmul.bf16.gmra.mxu0 %v787
      %v880 = vpop.f32.mrf.mxu0
      %v881 = vadd.f32 0.0, %v880
      %v882 = vpop.f32.mrf.mxu0
      %v883 = vadd.f32 0.0, %v882
      %884 = vmatmul.bf16.gmra.mxu0 %v788
      %v885 = vpop.f32.mrf.mxu0
      %v886 = vadd.f32 0.0, %v885
      %v887 = vpop.f32.mrf.mxu0
      %v888 = vadd.f32 0.0, %v887
      %889 = vmatmul.bf16.gmra.mxu0 %v789
      %v890 = vpop.f32.mrf.mxu0
      %v891 = vadd.f32 0.0, %v890
      %v892 = vpop.f32.mrf.mxu0
      %v893 = vadd.f32 0.0, %v892
      %894 = vmatmul.bf16.gmra.mxu0 %v790
      %v895 = vpop.f32.mrf.mxu0
      %v896 = vadd.f32 0.0, %v895
      %v897 = vpop.f32.mrf.mxu0
      %v898 = vadd.f32 0.0, %v897
      %899 = vmatmul.bf16.gmra.mxu0 %v791
      %v900 = vpop.f32.mrf.mxu0
      %v901 = vadd.f32 0.0, %v900
      %v902 = vpop.f32.mrf.mxu0
      %v903 = vadd.f32 0.0, %v902
      %904 = vmatmul.bf16.gmra.mxu0 %v792
      %v905 = vpop.f32.mrf.mxu0
      %v906 = vadd.f32 0.0, %v905
      %v907 = vpop.f32.mrf.mxu0
      %v908 = vadd.f32 0.0, %v907
      %909 = vmatmul.bf16.gmra.mxu0 %v793
      %v910 = vpop.f32.mrf.mxu0
      %v911 = vadd.f32 0.0, %v910
      %v912 = vpop.f32.mrf.mxu0
      %v913 = vadd.f32 0.0, %v912
      %914 = vmatmul.bf16.gmra.mxu0 %v794
      %v915 = vpop.f32.mrf.mxu0
      %v916 = vadd.f32 0.0, %v915
      %v917 = vpop.f32.mrf.mxu0
      %v918 = vadd.f32 0.0, %v917
      %919 = vmatmul.bf16.gmra.mxu0 %v795
      %v920 = vpop.f32.mrf.mxu0
      %v921 = vadd.f32 0.0, %v920
      %v922 = vpop.f32.mrf.mxu0
      %v923 = vadd.f32 0.0, %v922
      %924 = vmatmul.bf16.gmra.mxu0 %v796
      %v925 = vpop.f32.mrf.mxu0
      %v926 = vadd.f32 0.0, %v925
      %v927 = vpop.f32.mrf.mxu0
      %v928 = vadd.f32 0.0, %v927
      %929 = vmatmul.bf16.gmra.mxu0 %v797
      %v930 = vpop.f32.mrf.mxu0
      %v931 = vadd.f32 0.0, %v930
      %v932 = vpop.f32.mrf.mxu0
      %v933 = vadd.f32 0.0, %v932
      %934 = vmatmul.bf16.gmra.mxu0 %v798
      %v935 = vpop.f32.mrf.mxu0
      %v936 = vadd.f32 0.0, %v935
      %v937 = vpop.f32.mrf.mxu0
      %v938 = vadd.f32 0.0, %v937
      %939 = vmatmul.bf16.gmra.mxu0 %v799
      %v940 = vpop.f32.mrf.mxu0
      %v941 = vadd.f32 0.0, %v940
      %v942 = vpop.f32.mrf.mxu0
      %v943 = vadd.f32 0.0, %v942
      %944 = vmatmul.bf16.gmra.mxu0 %v800
      %v945 = vpop.f32.mrf.mxu0
      %v946 = vadd.f32 0.0, %v945
      %v947 = vpop.f32.mrf.mxu0
      %v948 = vadd.f32 0.0, %v947
      %949 = vmatmul.bf16.gmra.mxu0 %v801
      %v950 = vpop.f32.mrf.mxu0
      %v951 = vadd.f32 0.0, %v950
      %v952 = vpop.f32.mrf.mxu0
      %v953 = vadd.f32 0.0, %v952
      %954 = vdwg.mxu0
      %v987 = vunpack.c.l.b16 %v280
      %v988 = vunpack.c.l.b16 %v281
      %v989 = vunpack.c.l.b16 %v283
      %v990 = vunpack.c.l.b16 %v284
      %v991 = vunpack.c.l.b16 %v286
      %v992 = vunpack.c.l.b16 %v287
      %v993 = vunpack.c.l.b16 %v289
      %v994 = vunpack.c.l.b16 %v290
      %v995 = vunpack.c.l.b16 %v292
      %v996 = vunpack.c.l.b16 %v293
      %v997 = vunpack.c.l.b16 %v295
      %v998 = vunpack.c.l.b16 %v296
      %v999 = vunpack.c.l.b16 %v298
      %v1000 = vunpack.c.l.b16 %v299
      %v1001 = vunpack.c.l.b16 %v301
      %v1002 = vunpack.c.l.b16 %v302
      %v1003 = vunpack.c.l.b16 %v304
      %v1004 = vunpack.c.l.b16 %v305
      %v1005 = vunpack.c.l.b16 %v307
      %v1006 = vunpack.c.l.b16 %v308
      %v1007 = vunpack.c.l.b16 %v310
      %v1008 = vunpack.c.l.b16 %v311
      %v1009 = vunpack.c.l.b16 %v313
      %v1010 = vunpack.c.l.b16 %v314
      %v1011 = vunpack.c.l.b16 %v316
      %v1012 = vunpack.c.l.b16 %v317
      %v1013 = vunpack.c.l.b16 %v319
      %v1014 = vunpack.c.l.b16 %v320
      %v1015 = vunpack.c.l.b16 %v322
      %v1016 = vunpack.c.l.b16 %v323
      %v1017 = vunpack.c.l.b16 %v325
      %v1018 = vunpack.c.l.b16 %v326
      %v1019 = vpack.c.b16 %v988, %v987
      %v1020 = vpack.c.b16 %v990, %v989
      %v1021 = vpack.c.b16 %v992, %v991
      %v1022 = vpack.c.b16 %v994, %v993
      %v1023 = vpack.c.b16 %v996, %v995
      %v1024 = vpack.c.b16 %v998, %v997
      %v1025 = vpack.c.b16 %v1000, %v999
      %v1026 = vpack.c.b16 %v1002, %v1001
      %v1027 = vpack.c.b16 %v1004, %v1003
      %v1028 = vpack.c.b16 %v1006, %v1005
      %v1029 = vpack.c.b16 %v1008, %v1007
      %v1030 = vpack.c.b16 %v1010, %v1009
      %v1031 = vpack.c.b16 %v1012, %v1011
      %v1032 = vpack.c.b16 %v1014, %v1013
      %v1033 = vpack.c.b16 %v1016, %v1015
      %v1034 = vpack.c.b16 %v1018, %v1017
      %v1067 = vunpack.c.l.b16 %v334
      %v1068 = vunpack.c.l.b16 %v335
      %v1069 = vunpack.c.l.b16 %v336
      %v1070 = vunpack.c.l.b16 %v337
      %v1071 = vunpack.c.l.b16 %v338
      %v1072 = vunpack.c.l.b16 %v339
      %v1073 = vunpack.c.l.b16 %v340
      %v1074 = vunpack.c.l.b16 %v341
      %v1075 = vunpack.c.l.b16 %v342
      %v1076 = vunpack.c.l.b16 %v343
      %v1077 = vunpack.c.l.b16 %v344
      %v1078 = vunpack.c.l.b16 %v345
      %v1079 = vunpack.c.l.b16 %v346
      %v1080 = vunpack.c.l.b16 %v347
      %v1081 = vunpack.c.l.b16 %v348
      %v1082 = vunpack.c.l.b16 %v349
      %v1083 = vpack.c.b16 %v1068, %v1067
      %v1084 = vpack.c.b16 %v1070, %v1069
      %v1085 = vpack.c.b16 %v1072, %v1071
      %v1086 = vpack.c.b16 %v1074, %v1073
      %v1087 = vpack.c.b16 %v1076, %v1075
      %v1088 = vpack.c.b16 %v1078, %v1077
      %v1089 = vpack.c.b16 %v1080, %v1079
      %v1090 = vpack.c.b16 %v1082, %v1081
      %1099 = vmatpush.bf16.msra.mxu0 %v1090
      %1100 = vmatpush.bf16.msra.mxu0 %v1089
      %1101 = vmatpush.bf16.msra.mxu0 %v1088
      %1102 = vmatpush.bf16.msra.mxu0 %v1087
      %1103 = vmatpush.bf16.msra.mxu0 %v1086
      %1104 = vmatpush.bf16.msra.mxu0 %v1085
      %1105 = vmatpush.bf16.msra.mxu0 %v1084
      %1106 = vmatpush.bf16.msra.mxu0 %v1083
      %1107 = vmatmul.bf16.gmra.mxu0 %v1019
      %v1108 = vpop.f32.mrf.mxu0
      %v1109 = vadd.f32 %v876, %v1108
      %v1110 = vpop.f32.mrf.mxu0
      %v1111 = vadd.f32 %v878, %v1110
      %1112 = vmatmul.bf16.gmra.mxu0 %v1020
      %v1113 = vpop.f32.mrf.mxu0
      %v1114 = vadd.f32 %v881, %v1113
      %v1115 = vpop.f32.mrf.mxu0
      %v1116 = vadd.f32 %v883, %v1115
      %1117 = vmatmul.bf16.gmra.mxu0 %v1021
      %v1118 = vpop.f32.mrf.mxu0
      %v1119 = vadd.f32 %v886, %v1118
      %v1120 = vpop.f32.mrf.mxu0
      %v1121 = vadd.f32 %v888, %v1120
      %1122 = vmatmul.bf16.gmra.mxu0 %v1022
      %v1123 = vpop.f32.mrf.mxu0
      %v1124 = vadd.f32 %v891, %v1123
      %v1125 = vpop.f32.mrf.mxu0
      %v1126 = vadd.f32 %v893, %v1125
      %1127 = vmatmul.bf16.gmra.mxu0 %v1023
      %v1128 = vpop.f32.mrf.mxu0
      %v1129 = vadd.f32 %v896, %v1128
      %v1130 = vpop.f32.mrf.mxu0
      %v1131 = vadd.f32 %v898, %v1130
      %1132 = vmatmul.bf16.gmra.mxu0 %v1024
      %v1133 = vpop.f32.mrf.mxu0
      %v1134 = vadd.f32 %v901, %v1133
      %v1135 = vpop.f32.mrf.mxu0
      %v1136 = vadd.f32 %v903, %v1135
      %1137 = vmatmul.bf16.gmra.mxu0 %v1025
      %v1138 = vpop.f32.mrf.mxu0
      %v1139 = vadd.f32 %v906, %v1138
      %v1140 = vpop.f32.mrf.mxu0
      %v1141 = vadd.f32 %v908, %v1140
      %1142 = vmatmul.bf16.gmra.mxu0 %v1026
      %v1143 = vpop.f32.mrf.mxu0
      %v1144 = vadd.f32 %v911, %v1143
      %v1145 = vpop.f32.mrf.mxu0
      %v1146 = vadd.f32 %v913, %v1145
      %1147 = vmatmul.bf16.gmra.mxu0 %v1027
      %v1148 = vpop.f32.mrf.mxu0
      %v1149 = vadd.f32 %v916, %v1148
      %v1150 = vpop.f32.mrf.mxu0
      %v1151 = vadd.f32 %v918, %v1150
      %1152 = vmatmul.bf16.gmra.mxu0 %v1028
      %v1153 = vpop.f32.mrf.mxu0
      %v1154 = vadd.f32 %v921, %v1153
      %v1155 = vpop.f32.mrf.mxu0
      %v1156 = vadd.f32 %v923, %v1155
      %1157 = vmatmul.bf16.gmra.mxu0 %v1029
      %v1158 = vpop.f32.mrf.mxu0
      %v1159 = vadd.f32 %v926, %v1158
      %v1160 = vpop.f32.mrf.mxu0
      %v1161 = vadd.f32 %v928, %v1160
      %1162 = vmatmul.bf16.gmra.mxu0 %v1030
      %v1163 = vpop.f32.mrf.mxu0
      %v1164 = vadd.f32 %v931, %v1163
      %v1165 = vpop.f32.mrf.mxu0
      %v1166 = vadd.f32 %v933, %v1165
      %1167 = vmatmul.bf16.gmra.mxu0 %v1031
      %v1168 = vpop.f32.mrf.mxu0
      %v1169 = vadd.f32 %v936, %v1168
      %v1170 = vpop.f32.mrf.mxu0
      %v1171 = vadd.f32 %v938, %v1170
      %1172 = vmatmul.bf16.gmra.mxu0 %v1032
      %v1173 = vpop.f32.mrf.mxu0
      %v1174 = vadd.f32 %v941, %v1173
      %v1175 = vpop.f32.mrf.mxu0
      %v1176 = vadd.f32 %v943, %v1175
      %1177 = vmatmul.bf16.gmra.mxu0 %v1033
      %v1178 = vpop.f32.mrf.mxu0
      %v1179 = vadd.f32 %v946, %v1178
      %v1180 = vpop.f32.mrf.mxu0
      %v1181 = vadd.f32 %v948, %v1180
      %1182 = vmatmul.bf16.gmra.mxu0 %v1034
      %v1183 = vpop.f32.mrf.mxu0
      %v1184 = vadd.f32 %v951, %v1183
      %v1185 = vpop.f32.mrf.mxu0
      %v1186 = vadd.f32 %v953, %v1185
      %1187 = vdwg.mxu0
      %vm1204 = vcmask 1042432
      %vm1205 = vcmask 1046532
      %vm1206 = vmor %vm1204, %vm1205
      %v1207 = vrot.slane %v280, 5
      %v1208 = vrot.slane %v1207, 4
      %v1209 = vrot.slane %v281, 5
      %v1210 = vsel %vm1206, %v1208, %v1209
      %v1211 = vrot.slane %v1209, 4
      %v1212 = vrot.slane %v282, 5
      %v1213 = vsel %vm1206, %v1211, %v1212
      %v1214 = vrot.slane %v283, 5
      %v1215 = vrot.slane %v1214, 4
      %v1216 = vrot.slane %v284, 5
      %v1217 = vsel %vm1206, %v1215, %v1216
      %v1218 = vrot.slane %v1216, 4
      %v1219 = vrot.slane %v285, 5
      %v1220 = vsel %vm1206, %v1218, %v1219
      %v1221 = vrot.slane %v286, 5
      %v1222 = vrot.slane %v1221, 4
      %v1223 = vrot.slane %v287, 5
      %v1224 = vsel %vm1206, %v1222, %v1223
      %v1225 = vrot.slane %v1223, 4
      %v1226 = vrot.slane %v288, 5
      %v1227 = vsel %vm1206, %v1225, %v1226
      %v1228 = vrot.slane %v289, 5
      %v1229 = vrot.slane %v1228, 4
      %v1230 = vrot.slane %v290, 5
      %v1231 = vsel %vm1206, %v1229, %v1230
      %v1232 = vrot.slane %v1230, 4
      %v1233 = vrot.slane %v291, 5
      %v1234 = vsel %vm1206, %v1232, %v1233
      %v1235 = vrot.slane %v292, 5
      %v1236 = vrot.slane %v1235, 4
      %v1237 = vrot.slane %v293, 5
      %v1238 = vsel %vm1206, %v1236, %v1237
      %v1239 = vrot.slane %v1237, 4
      %v1240 = vrot.slane %v294, 5
      %v1241 = vsel %vm1206, %v1239, %v1240
      %v1242 = vrot.slane %v295, 5
      %v1243 = vrot.slane %v1242, 4
      %v1244 = vrot.slane %v296, 5
      %v1245 = vsel %vm1206, %v1243, %v1244
      %v1246 = vrot.slane %v1244, 4
      %v1247 = vrot.slane %v297, 5
      %v1248 = vsel %vm1206, %v1246, %v1247
      %v1249 = vrot.slane %v298, 5
      %v1250 = vrot.slane %v1249, 4
      %v1251 = vrot.slane %v299, 5
      %v1252 = vsel %vm1206, %v1250, %v1251
      %v1253 = vrot.slane %v1251, 4
      %v1254 = vrot.slane %v300, 5
      %v1255 = vsel %vm1206, %v1253, %v1254
      %v1256 = vrot.slane %v301, 5
      %v1257 = vrot.slane %v1256, 4
      %v1258 = vrot.slane %v302, 5
      %v1259 = vsel %vm1206, %v1257, %v1258
      %v1260 = vrot.slane %v1258, 4
      %v1261 = vrot.slane %v303, 5
      %v1262 = vsel %vm1206, %v1260, %v1261
      %v1263 = vrot.slane %v304, 5
      %v1264 = vrot.slane %v1263, 4
      %v1265 = vrot.slane %v305, 5
      %v1266 = vsel %vm1206, %v1264, %v1265
      %v1267 = vrot.slane %v1265, 4
      %v1268 = vrot.slane %v306, 5
      %v1269 = vsel %vm1206, %v1267, %v1268
      %v1270 = vrot.slane %v307, 5
      %v1271 = vrot.slane %v1270, 4
      %v1272 = vrot.slane %v308, 5
      %v1273 = vsel %vm1206, %v1271, %v1272
      %v1274 = vrot.slane %v1272, 4
      %v1275 = vrot.slane %v309, 5
      %v1276 = vsel %vm1206, %v1274, %v1275
      %v1277 = vrot.slane %v310, 5
      %v1278 = vrot.slane %v1277, 4
      %v1279 = vrot.slane %v311, 5
      %v1280 = vsel %vm1206, %v1278, %v1279
      %v1281 = vrot.slane %v1279, 4
      %v1282 = vrot.slane %v312, 5
      %v1283 = vsel %vm1206, %v1281, %v1282
      %v1284 = vrot.slane %v313, 5
      %v1285 = vrot.slane %v1284, 4
      %v1286 = vrot.slane %v314, 5
      %v1287 = vsel %vm1206, %v1285, %v1286
      %v1288 = vrot.slane %v1286, 4
      %v1289 = vrot.slane %v315, 5
      %v1290 = vsel %vm1206, %v1288, %v1289
      %v1291 = vrot.slane %v316, 5
      %v1292 = vrot.slane %v1291, 4
      %v1293 = vrot.slane %v317, 5
      %v1294 = vsel %vm1206, %v1292, %v1293
      %v1295 = vrot.slane %v1293, 4
      %v1296 = vrot.slane %v318, 5
      %v1297 = vsel %vm1206, %v1295, %v1296
      %v1298 = vrot.slane %v319, 5
      %v1299 = vrot.slane %v1298, 4
      %v1300 = vrot.slane %v320, 5
      %v1301 = vsel %vm1206, %v1299, %v1300
      %v1302 = vrot.slane %v1300, 4
      %v1303 = vrot.slane %v321, 5
      %v1304 = vsel %vm1206, %v1302, %v1303
      %v1305 = vrot.slane %v322, 5
      %v1306 = vrot.slane %v1305, 4
      %v1307 = vrot.slane %v323, 5
      %v1308 = vsel %vm1206, %v1306, %v1307
      %v1309 = vrot.slane %v1307, 4
      %v1310 = vrot.slane %v324, 5
      %v1311 = vsel %vm1206, %v1309, %v1310
      %v1312 = vrot.slane %v325, 5
      %v1313 = vrot.slane %v1312, 4
      %v1314 = vrot.slane %v326, 5
      %v1315 = vsel %vm1206, %v1313, %v1314
      %v1316 = vrot.slane %v1314, 4
      %v1317 = vrot.slane %v327, 5
      %v1318 = vsel %vm1206, %v1316, %v1317
      %s1319 = scalar_lea.vmem %s1, 128
      %v1320 = vld [vmem:[%s1319] sm:$0xf]
      %v1321 = vld [vmem:[%s1319 + $0x4] sm:$0xf]
      %v1322 = vld [vmem:[%s1319 + $0x8] sm:$0xf]
      %v1323 = vld [vmem:[%s1319 + $0xc] sm:$0xf]
      %v1324 = vld [vmem:[%s1319 + $0x10] sm:$0xf]
      %v1325 = vld [vmem:[%s1319 + $0x14] sm:$0xf]
      %v1326 = vld [vmem:[%s1319 + $0x18] sm:$0xf]
      %v1327 = vld [vmem:[%s1319 + $0x1c] sm:$0xf]
      %v1328 = vld [vmem:[%s1319 + $0x20] sm:$0xf]
      %v1329 = vld [vmem:[%s1319 + $0x24] sm:$0xf]
      %v1330 = vld [vmem:[%s1319 + $0x28] sm:$0xf]
      %v1331 = vld [vmem:[%s1319 + $0x2c] sm:$0xf]
      %v1332 = vld [vmem:[%s1319 + $0x30] sm:$0xf]
      %v1333 = vld [vmem:[%s1319 + $0x34] sm:$0xf]
      %v1334 = vld [vmem:[%s1319 + $0x38] sm:$0xf]
      %v1335 = vld [vmem:[%s1319 + $0x3c] sm:$0xf]
      %v1336 = vunpack.c.l.b16 %v1210
      %v1337 = vunpack.c.l.b16 %v1213
      %v1338 = vunpack.c.l.b16 %v1217
      %v1339 = vunpack.c.l.b16 %v1220
      %v1340 = vunpack.c.l.b16 %v1224
      %v1341 = vunpack.c.l.b16 %v1227
      %v1342 = vunpack.c.l.b16 %v1231
      %v1343 = vunpack.c.l.b16 %v1234
      %v1344 = vunpack.c.l.b16 %v1238
      %v1345 = vunpack.c.l.b16 %v1241
      %v1346 = vunpack.c.l.b16 %v1245
      %v1347 = vunpack.c.l.b16 %v1248
      %v1348 = vunpack.c.l.b16 %v1252
      %v1349 = vunpack.c.l.b16 %v1255
      %v1350 = vunpack.c.l.b16 %v1259
      %v1351 = vunpack.c.l.b16 %v1262
      %v1352 = vunpack.c.l.b16 %v1266
      %v1353 = vunpack.c.l.b16 %v1269
      %v1354 = vunpack.c.l.b16 %v1273
      %v1355 = vunpack.c.l.b16 %v1276
      %v1356 = vunpack.c.l.b16 %v1280
      %v1357 = vunpack.c.l.b16 %v1283
      %v1358 = vunpack.c.l.b16 %v1287
      %v1359 = vunpack.c.l.b16 %v1290
      %v1360 = vunpack.c.l.b16 %v1294
      %v1361 = vunpack.c.l.b16 %v1297
      %v1362 = vunpack.c.l.b16 %v1301
      %v1363 = vunpack.c.l.b16 %v1304
      %v1364 = vunpack.c.l.b16 %v1308
      %v1365 = vunpack.c.l.b16 %v1311
      %v1366 = vunpack.c.l.b16 %v1315
      %v1367 = vunpack.c.l.b16 %v1318
      %v1368 = vpack.c.b16 %v1337, %v1336
      %v1369 = vpack.c.b16 %v1339, %v1338
      %v1370 = vpack.c.b16 %v1341, %v1340
      %v1371 = vpack.c.b16 %v1343, %v1342
      %v1372 = vpack.c.b16 %v1345, %v1344
      %v1373 = vpack.c.b16 %v1347, %v1346
      %v1374 = vpack.c.b16 %v1349, %v1348
      %v1375 = vpack.c.b16 %v1351, %v1350
      %v1376 = vpack.c.b16 %v1353, %v1352
      %v1377 = vpack.c.b16 %v1355, %v1354
      %v1378 = vpack.c.b16 %v1357, %v1356
      %v1379 = vpack.c.b16 %v1359, %v1358
      %v1380 = vpack.c.b16 %v1361, %v1360
      %v1381 = vpack.c.b16 %v1363, %v1362
      %v1382 = vpack.c.b16 %v1365, %v1364
      %v1383 = vpack.c.b16 %v1367, %v1366
      %v1416 = vunpack.c.l.b16 %v1320
      %v1417 = vunpack.c.l.b16 %v1321
      %v1418 = vunpack.c.l.b16 %v1322
      %v1419 = vunpack.c.l.b16 %v1323
      %v1420 = vunpack.c.l.b16 %v1324
      %v1421 = vunpack.c.l.b16 %v1325
      %v1422 = vunpack.c.l.b16 %v1326
      %v1423 = vunpack.c.l.b16 %v1327
      %v1424 = vunpack.c.l.b16 %v1328
      %v1425 = vunpack.c.l.b16 %v1329
      %v1426 = vunpack.c.l.b16 %v1330
      %v1427 = vunpack.c.l.b16 %v1331
      %v1428 = vunpack.c.l.b16 %v1332
      %v1429 = vunpack.c.l.b16 %v1333
      %v1430 = vunpack.c.l.b16 %v1334
      %v1431 = vunpack.c.l.b16 %v1335
      %v1432 = vpack.c.b16 %v1417, %v1416
      %v1433 = vpack.c.b16 %v1419, %v1418
      %v1434 = vpack.c.b16 %v1421, %v1420
      %v1435 = vpack.c.b16 %v1423, %v1422
      %v1436 = vpack.c.b16 %v1425, %v1424
      %v1437 = vpack.c.b16 %v1427, %v1426
      %v1438 = vpack.c.b16 %v1429, %v1428
      %v1439 = vpack.c.b16 %v1431, %v1430
      %1448 = vmatpush.bf16.msra.mxu0 %v1439
      %1449 = vmatpush.bf16.msra.mxu0 %v1438
      %1450 = vmatpush.bf16.msra.mxu0 %v1437
      %1451 = vmatpush.bf16.msra.mxu0 %v1436
      %1452 = vmatpush.bf16.msra.mxu0 %v1435
      %1453 = vmatpush.bf16.msra.mxu0 %v1434
      %1454 = vmatpush.bf16.msra.mxu0 %v1433
      %1455 = vmatpush.bf16.msra.mxu0 %v1432
      %1456 = vmatmul.bf16.gmra.mxu0 %v1368
      %v1457 = vpop.f32.mrf.mxu0
      %v1458 = vadd.f32 0.0, %v1457
      %v1459 = vpop.f32.mrf.mxu0
      %v1460 = vadd.f32 0.0, %v1459
      %1461 = vmatmul.bf16.gmra.mxu0 %v1369
      %v1462 = vpop.f32.mrf.mxu0
      %v1463 = vadd.f32 0.0, %v1462
      %v1464 = vpop.f32.mrf.mxu0
      %v1465 = vadd.f32 0.0, %v1464
      %1466 = vmatmul.bf16.gmra.mxu0 %v1370
      %v1467 = vpop.f32.mrf.mxu0
      %v1468 = vadd.f32 0.0, %v1467
      %v1469 = vpop.f32.mrf.mxu0
      %v1470 = vadd.f32 0.0, %v1469
      %1471 = vmatmul.bf16.gmra.mxu0 %v1371
      %v1472 = vpop.f32.mrf.mxu0
      %v1473 = vadd.f32 0.0, %v1472
      %v1474 = vpop.f32.mrf.mxu0
      %v1475 = vadd.f32 0.0, %v1474
      %1476 = vmatmul.bf16.gmra.mxu0 %v1372
      %v1477 = vpop.f32.mrf.mxu0
      %v1478 = vadd.f32 0.0, %v1477
      %v1479 = vpop.f32.mrf.mxu0
      %v1480 = vadd.f32 0.0, %v1479
      %1481 = vmatmul.bf16.gmra.mxu0 %v1373
      %v1482 = vpop.f32.mrf.mxu0
      %v1483 = vadd.f32 0.0, %v1482
      %v1484 = vpop.f32.mrf.mxu0
      %v1485 = vadd.f32 0.0, %v1484
      %1486 = vmatmul.bf16.gmra.mxu0 %v1374
      %v1487 = vpop.f32.mrf.mxu0
      %v1488 = vadd.f32 0.0, %v1487
      %v1489 = vpop.f32.mrf.mxu0
      %v1490 = vadd.f32 0.0, %v1489
      %1491 = vmatmul.bf16.gmra.mxu0 %v1375
      %v1492 = vpop.f32.mrf.mxu0
      %v1493 = vadd.f32 0.0, %v1492
      %v1494 = vpop.f32.mrf.mxu0
      %v1495 = vadd.f32 0.0, %v1494
      %1496 = vmatmul.bf16.gmra.mxu0 %v1376
      %v1497 = vpop.f32.mrf.mxu0
      %v1498 = vadd.f32 0.0, %v1497
      %v1499 = vpop.f32.mrf.mxu0
      %v1500 = vadd.f32 0.0, %v1499
      %1501 = vmatmul.bf16.gmra.mxu0 %v1377
      %v1502 = vpop.f32.mrf.mxu0
      %v1503 = vadd.f32 0.0, %v1502
      %v1504 = vpop.f32.mrf.mxu0
      %v1505 = vadd.f32 0.0, %v1504
      %1506 = vmatmul.bf16.gmra.mxu0 %v1378
      %v1507 = vpop.f32.mrf.mxu0
      %v1508 = vadd.f32 0.0, %v1507
      %v1509 = vpop.f32.mrf.mxu0
      %v1510 = vadd.f32 0.0, %v1509
      %1511 = vmatmul.bf16.gmra.mxu0 %v1379
      %v1512 = vpop.f32.mrf.mxu0
      %v1513 = vadd.f32 0.0, %v1512
      %v1514 = vpop.f32.mrf.mxu0
      %v1515 = vadd.f32 0.0, %v1514
      %1516 = vmatmul.bf16.gmra.mxu0 %v1380
      %v1517 = vpop.f32.mrf.mxu0
      %v1518 = vadd.f32 0.0, %v1517
      %v1519 = vpop.f32.mrf.mxu0
      %v1520 = vadd.f32 0.0, %v1519
      %1521 = vmatmul.bf16.gmra.mxu0 %v1381
      %v1522 = vpop.f32.mrf.mxu0
      %v1523 = vadd.f32 0.0, %v1522
      %v1524 = vpop.f32.mrf.mxu0
      %v1525 = vadd.f32 0.0, %v1524
      %1526 = vmatmul.bf16.gmra.mxu0 %v1382
      %v1527 = vpop.f32.mrf.mxu0
      %v1528 = vadd.f32 0.0, %v1527
      %v1529 = vpop.f32.mrf.mxu0
      %v1530 = vadd.f32 0.0, %v1529
      %1531 = vmatmul.bf16.gmra.mxu0 %v1383
      %v1532 = vpop.f32.mrf.mxu0
      %v1533 = vadd.f32 0.0, %v1532
      %v1534 = vpop.f32.mrf.mxu0
      %v1535 = vadd.f32 0.0, %v1534
      %1536 = vdwg.mxu0
      %v1537 = vadd.f32 %v1109, %v1458
      %v1538 = vadd.f32 %v1111, %v1460
      %v1539 = vadd.f32 %v1114, %v1463
      %v1540 = vadd.f32 %v1116, %v1465
      %v1541 = vadd.f32 %v1119, %v1468
      %v1542 = vadd.f32 %v1121, %v1470
      %v1543 = vadd.f32 %v1124, %v1473
      %v1544 = vadd.f32 %v1126, %v1475
      %v1545 = vadd.f32 %v1129, %v1478
      %v1546 = vadd.f32 %v1131, %v1480
      %v1547 = vadd.f32 %v1134, %v1483
      %v1548 = vadd.f32 %v1136, %v1485
      %v1549 = vadd.f32 %v1139, %v1488
      %v1550 = vadd.f32 %v1141, %v1490
      %v1551 = vadd.f32 %v1144, %v1493
      %v1552 = vadd.f32 %v1146, %v1495
      %v1553 = vadd.f32 %v1149, %v1498
      %v1554 = vadd.f32 %v1151, %v1500
      %v1555 = vadd.f32 %v1154, %v1503
      %v1556 = vadd.f32 %v1156, %v1505
      %v1557 = vadd.f32 %v1159, %v1508
      %v1558 = vadd.f32 %v1161, %v1510
      %v1559 = vadd.f32 %v1164, %v1513
      %v1560 = vadd.f32 %v1166, %v1515
      %v1561 = vadd.f32 %v1169, %v1518
      %v1562 = vadd.f32 %v1171, %v1520
      %v1563 = vadd.f32 %v1174, %v1523
      %v1564 = vadd.f32 %v1176, %v1525
      %v1565 = vadd.f32 %v1179, %v1528
      %v1566 = vadd.f32 %v1181, %v1530
      %v1567 = vadd.f32 %v1184, %v1533
      %v1568 = vadd.f32 %v1186, %v1535
      %s1569 = scalar_lea.vmem %s1, 192
      %v1570 = vld [vmem:[%s1569] sm:$0xf]
      %v1571 = vld [vmem:[%s1569 + $0x4] sm:$0xf]
      %v1572 = vld [vmem:[%s1569 + $0x8] sm:$0xf]
      %v1573 = vld [vmem:[%s1569 + $0xc] sm:$0xf]
      %v1574 = vld [vmem:[%s1569 + $0x10] sm:$0xf]
      %v1575 = vld [vmem:[%s1569 + $0x14] sm:$0xf]
      %v1576 = vld [vmem:[%s1569 + $0x18] sm:$0xf]
      %v1577 = vld [vmem:[%s1569 + $0x1c] sm:$0xf]
      %v1578 = vld [vmem:[%s1569 + $0x20] sm:$0xf]
      %v1579 = vld [vmem:[%s1569 + $0x24] sm:$0xf]
      %v1580 = vld [vmem:[%s1569 + $0x28] sm:$0xf]
      %v1581 = vld [vmem:[%s1569 + $0x2c] sm:$0xf]
      %v1582 = vld [vmem:[%s1569 + $0x30] sm:$0xf]
      %v1583 = vld [vmem:[%s1569 + $0x34] sm:$0xf]
      %v1584 = vld [vmem:[%s1569 + $0x38] sm:$0xf]
      %v1585 = vld [vmem:[%s1569 + $0x3c] sm:$0xf]
      %v1588 = vunpack.c.l.b16 %v328
      %v1589 = vunpack.c.l.b16 %v329
      %v1590 = vpack.c.b16 %v1589, %v1588
      %v1608 = vunpack.c.l.b16 %v1570
      %v1609 = vunpack.c.l.b16 %v1571
      %v1610 = vunpack.c.l.b16 %v1572
      %v1611 = vunpack.c.l.b16 %v1573
      %v1612 = vunpack.c.l.b16 %v1574
      %v1613 = vunpack.c.l.b16 %v1575
      %v1614 = vunpack.c.l.b16 %v1576
      %v1615 = vunpack.c.l.b16 %v1577
      %v1616 = vunpack.c.l.b16 %v1578
      %v1617 = vunpack.c.l.b16 %v1579
      %v1618 = vunpack.c.l.b16 %v1580
      %v1619 = vunpack.c.l.b16 %v1581
      %v1620 = vunpack.c.l.b16 %v1582
      %v1621 = vunpack.c.l.b16 %v1583
      %v1622 = vunpack.c.l.b16 %v1584
      %v1623 = vunpack.c.l.b16 %v1585
      %v1624 = vpack.c.b16 %v1609, %v1608
      %v1625 = vpack.c.b16 %v1611, %v1610
      %v1626 = vpack.c.b16 %v1613, %v1612
      %v1627 = vpack.c.b16 %v1615, %v1614
      %v1628 = vpack.c.b16 %v1617, %v1616
      %v1629 = vpack.c.b16 %v1619, %v1618
      %v1630 = vpack.c.b16 %v1621, %v1620
      %v1631 = vpack.c.b16 %v1623, %v1622
      %1640 = vmatpush.bf16.msra.mxu0 %v1631
      %1641 = vmatpush.bf16.msra.mxu0 %v1630
      %1642 = vmatpush.bf16.msra.mxu0 %v1629
      %1643 = vmatpush.bf16.msra.mxu0 %v1628
      %1644 = vmatpush.bf16.msra.mxu0 %v1627
      %1645 = vmatpush.bf16.msra.mxu0 %v1626
      %1646 = vmatpush.bf16.msra.mxu0 %v1625
      %1647 = vmatpush.bf16.msra.mxu0 %v1624
      %1648 = vmatmul.bf16.gmra.mxu0 %v1020
      %v1649 = vpop.f32.mrf.mxu0
      %v1650 = vadd.f32 0.0, %v1649
      %v1651 = vpop.f32.mrf.mxu0
      %v1652 = vadd.f32 0.0, %v1651
      %1653 = vmatmul.bf16.gmra.mxu0 %v1021
      %v1654 = vpop.f32.mrf.mxu0
      %v1655 = vadd.f32 0.0, %v1654
      %v1656 = vpop.f32.mrf.mxu0
      %v1657 = vadd.f32 0.0, %v1656
      %1658 = vmatmul.bf16.gmra.mxu0 %v1022
      %v1659 = vpop.f32.mrf.mxu0
      %v1660 = vadd.f32 0.0, %v1659
      %v1661 = vpop.f32.mrf.mxu0
      %v1662 = vadd.f32 0.0, %v1661
      %1663 = vmatmul.bf16.gmra.mxu0 %v1023
      %v1664 = vpop.f32.mrf.mxu0
      %v1665 = vadd.f32 0.0, %v1664
      %v1666 = vpop.f32.mrf.mxu0
      %v1667 = vadd.f32 0.0, %v1666
      %1668 = vmatmul.bf16.gmra.mxu0 %v1024
      %v1669 = vpop.f32.mrf.mxu0
      %v1670 = vadd.f32 0.0, %v1669
      %v1671 = vpop.f32.mrf.mxu0
      %v1672 = vadd.f32 0.0, %v1671
      %1673 = vmatmul.bf16.gmra.mxu0 %v1025
      %v1674 = vpop.f32.mrf.mxu0
      %v1675 = vadd.f32 0.0, %v1674
      %v1676 = vpop.f32.mrf.mxu0
      %v1677 = vadd.f32 0.0, %v1676
      %1678 = vmatmul.bf16.gmra.mxu0 %v1026
      %v1679 = vpop.f32.mrf.mxu0
      %v1680 = vadd.f32 0.0, %v1679
      %v1681 = vpop.f32.mrf.mxu0
      %v1682 = vadd.f32 0.0, %v1681
      %1683 = vmatmul.bf16.gmra.mxu0 %v1027
      %v1684 = vpop.f32.mrf.mxu0
      %v1685 = vadd.f32 0.0, %v1684
      %v1686 = vpop.f32.mrf.mxu0
      %v1687 = vadd.f32 0.0, %v1686
      %1688 = vmatmul.bf16.gmra.mxu0 %v1028
      %v1689 = vpop.f32.mrf.mxu0
      %v1690 = vadd.f32 0.0, %v1689
      %v1691 = vpop.f32.mrf.mxu0
      %v1692 = vadd.f32 0.0, %v1691
      %1693 = vmatmul.bf16.gmra.mxu0 %v1029
      %v1694 = vpop.f32.mrf.mxu0
      %v1695 = vadd.f32 0.0, %v1694
      %v1696 = vpop.f32.mrf.mxu0
      %v1697 = vadd.f32 0.0, %v1696
      %1698 = vmatmul.bf16.gmra.mxu0 %v1030
      %v1699 = vpop.f32.mrf.mxu0
      %v1700 = vadd.f32 0.0, %v1699
      %v1701 = vpop.f32.mrf.mxu0
      %v1702 = vadd.f32 0.0, %v1701
      %1703 = vmatmul.bf16.gmra.mxu0 %v1031
      %v1704 = vpop.f32.mrf.mxu0
      %v1705 = vadd.f32 0.0, %v1704
      %v1706 = vpop.f32.mrf.mxu0
      %v1707 = vadd.f32 0.0, %v1706
      %1708 = vmatmul.bf16.gmra.mxu0 %v1032
      %v1709 = vpop.f32.mrf.mxu0
      %v1710 = vadd.f32 0.0, %v1709
      %v1711 = vpop.f32.mrf.mxu0
      %v1712 = vadd.f32 0.0, %v1711
      %1713 = vmatmul.bf16.gmra.mxu0 %v1033
      %v1714 = vpop.f32.mrf.mxu0
      %v1715 = vadd.f32 0.0, %v1714
      %v1716 = vpop.f32.mrf.mxu0
      %v1717 = vadd.f32 0.0, %v1716
      %1718 = vmatmul.bf16.gmra.mxu0 %v1034
      %v1719 = vpop.f32.mrf.mxu0
      %v1720 = vadd.f32 0.0, %v1719
      %v1721 = vpop.f32.mrf.mxu0
      %v1722 = vadd.f32 0.0, %v1721
      %1723 = vmatmul.bf16.gmra.mxu0 %v1590
      %v1724 = vpop.f32.mrf.mxu0
      %v1725 = vadd.f32 0.0, %v1724
      %v1726 = vpop.f32.mrf.mxu0
      %v1727 = vadd.f32 0.0, %v1726
      %1728 = vdwg.mxu0
      %v1729 = vadd.f32 %v1537, %v1650
      %v1730 = vadd.f32 %v1538, %v1652
      %v1731 = vadd.f32 %v1539, %v1655
      %v1732 = vadd.f32 %v1540, %v1657
      %v1733 = vadd.f32 %v1541, %v1660
      %v1734 = vadd.f32 %v1542, %v1662
      %v1735 = vadd.f32 %v1543, %v1665
      %v1736 = vadd.f32 %v1544, %v1667
      %v1737 = vadd.f32 %v1545, %v1670
      %v1738 = vadd.f32 %v1546, %v1672
      %v1739 = vadd.f32 %v1547, %v1675
      %v1740 = vadd.f32 %v1548, %v1677
      %v1741 = vadd.f32 %v1549, %v1680
      %v1742 = vadd.f32 %v1550, %v1682
      %v1743 = vadd.f32 %v1551, %v1685
      %v1744 = vadd.f32 %v1552, %v1687
      %v1745 = vadd.f32 %v1553, %v1690
      %v1746 = vadd.f32 %v1554, %v1692
      %v1747 = vadd.f32 %v1555, %v1695
      %v1748 = vadd.f32 %v1556, %v1697
      %v1749 = vadd.f32 %v1557, %v1700
      %v1750 = vadd.f32 %v1558, %v1702
      %v1751 = vadd.f32 %v1559, %v1705
      %v1752 = vadd.f32 %v1560, %v1707
      %v1753 = vadd.f32 %v1561, %v1710
      %v1754 = vadd.f32 %v1562, %v1712
      %v1755 = vadd.f32 %v1563, %v1715
      %v1756 = vadd.f32 %v1564, %v1717
      %v1757 = vadd.f32 %v1565, %v1720
      %v1758 = vadd.f32 %v1566, %v1722
      %v1759 = vadd.f32 %v1567, %v1725
      %v1760 = vadd.f32 %v1568, %v1727
      %v1762 = vshrl.u32 %v328, 16
      %v1764 = vrot.slane %v1762, 4
      %v1765 = vshll.u32 %v328, 16
      %v1767 = vrot.slane %v1765, 5
      %v1768 = vor.u32 %v1764, %v1767
      %v1769 = vrot.slane %v1768, 4
      %v1771 = vshll.u32 %v329, 16
      %v1773 = vrot.slane %v1771, 5
      %v1774 = vsel %vm352, %v1769, %v1773
      %v1775 = vshrl.u32 %v329, 16
      %v1777 = vrot.slane %v1775, 4
      %v1778 = vor.u32 %v1777, %v1773
      %v1779 = vrot.slane %v1778, 4
      %v1781 = vshll.u32 %v330, 16
      %v1783 = vrot.slane %v1781, 5
      %v1784 = vsel %vm352, %v1779, %v1783
      %s1817 = scalar_lea.vmem %s1, 256
      %v1818 = vld [vmem:[%s1817] sm:$0xf]
      %v1819 = vld [vmem:[%s1817 + $0x4] sm:$0xf]
      %v1820 = vld [vmem:[%s1817 + $0x8] sm:$0xf]
      %v1821 = vld [vmem:[%s1817 + $0xc] sm:$0xf]
      %v1822 = vld [vmem:[%s1817 + $0x10] sm:$0xf]
      %v1823 = vld [vmem:[%s1817 + $0x14] sm:$0xf]
      %v1824 = vld [vmem:[%s1817 + $0x18] sm:$0xf]
      %v1825 = vld [vmem:[%s1817 + $0x1c] sm:$0xf]
      %v1826 = vld [vmem:[%s1817 + $0x20] sm:$0xf]
      %v1827 = vld [vmem:[%s1817 + $0x24] sm:$0xf]
      %v1828 = vld [vmem:[%s1817 + $0x28] sm:$0xf]
      %v1829 = vld [vmem:[%s1817 + $0x2c] sm:$0xf]
      %v1830 = vld [vmem:[%s1817 + $0x30] sm:$0xf]
      %v1831 = vld [vmem:[%s1817 + $0x34] sm:$0xf]
      %v1832 = vld [vmem:[%s1817 + $0x38] sm:$0xf]
      %v1833 = vld [vmem:[%s1817 + $0x3c] sm:$0xf]
      %v1834 = vunpack.c.l.b16 %v1774
      %v1835 = vunpack.c.l.b16 %v1784
      %v1836 = vpack.c.b16 %v1835, %v1834
      %v1854 = vunpack.c.l.b16 %v1818
      %v1855 = vunpack.c.l.b16 %v1819
      %v1856 = vunpack.c.l.b16 %v1820
      %v1857 = vunpack.c.l.b16 %v1821
      %v1858 = vunpack.c.l.b16 %v1822
      %v1859 = vunpack.c.l.b16 %v1823
      %v1860 = vunpack.c.l.b16 %v1824
      %v1861 = vunpack.c.l.b16 %v1825
      %v1862 = vunpack.c.l.b16 %v1826
      %v1863 = vunpack.c.l.b16 %v1827
      %v1864 = vunpack.c.l.b16 %v1828
      %v1865 = vunpack.c.l.b16 %v1829
      %v1866 = vunpack.c.l.b16 %v1830
      %v1867 = vunpack.c.l.b16 %v1831
      %v1868 = vunpack.c.l.b16 %v1832
      %v1869 = vunpack.c.l.b16 %v1833
      %v1870 = vpack.c.b16 %v1855, %v1854
      %v1871 = vpack.c.b16 %v1857, %v1856
      %v1872 = vpack.c.b16 %v1859, %v1858
      %v1873 = vpack.c.b16 %v1861, %v1860
      %v1874 = vpack.c.b16 %v1863, %v1862
      %v1875 = vpack.c.b16 %v1865, %v1864
      %v1876 = vpack.c.b16 %v1867, %v1866
      %v1877 = vpack.c.b16 %v1869, %v1868
      %1886 = vmatpush.bf16.msra.mxu0 %v1877
      %1887 = vmatpush.bf16.msra.mxu0 %v1876
      %1888 = vmatpush.bf16.msra.mxu0 %v1875
      %1889 = vmatpush.bf16.msra.mxu0 %v1874
      %1890 = vmatpush.bf16.msra.mxu0 %v1873
      %1891 = vmatpush.bf16.msra.mxu0 %v1872
      %1892 = vmatpush.bf16.msra.mxu0 %v1871
      %1893 = vmatpush.bf16.msra.mxu0 %v1870
      %1894 = vmatmul.bf16.gmra.mxu0 %v787
      %v1895 = vpop.f32.mrf.mxu0
      %v1896 = vadd.f32 0.0, %v1895
      %v1897 = vpop.f32.mrf.mxu0
      %v1898 = vadd.f32 0.0, %v1897
      %1899 = vmatmul.bf16.gmra.mxu0 %v788
      %v1900 = vpop.f32.mrf.mxu0
      %v1901 = vadd.f32 0.0, %v1900
      %v1902 = vpop.f32.mrf.mxu0
      %v1903 = vadd.f32 0.0, %v1902
      %1904 = vmatmul.bf16.gmra.mxu0 %v789
      %v1905 = vpop.f32.mrf.mxu0
      %v1906 = vadd.f32 0.0, %v1905
      %v1907 = vpop.f32.mrf.mxu0
      %v1908 = vadd.f32 0.0, %v1907
      %1909 = vmatmul.bf16.gmra.mxu0 %v790
      %v1910 = vpop.f32.mrf.mxu0
      %v1911 = vadd.f32 0.0, %v1910
      %v1912 = vpop.f32.mrf.mxu0
      %v1913 = vadd.f32 0.0, %v1912
      %1914 = vmatmul.bf16.gmra.mxu0 %v791
      %v1915 = vpop.f32.mrf.mxu0
      %v1916 = vadd.f32 0.0, %v1915
      %v1917 = vpop.f32.mrf.mxu0
      %v1918 = vadd.f32 0.0, %v1917
      %1919 = vmatmul.bf16.gmra.mxu0 %v792
      %v1920 = vpop.f32.mrf.mxu0
      %v1921 = vadd.f32 0.0, %v1920
      %v1922 = vpop.f32.mrf.mxu0
      %v1923 = vadd.f32 0.0, %v1922
      %1924 = vmatmul.bf16.gmra.mxu0 %v793
      %v1925 = vpop.f32.mrf.mxu0
      %v1926 = vadd.f32 0.0, %v1925
      %v1927 = vpop.f32.mrf.mxu0
      %v1928 = vadd.f32 0.0, %v1927
      %1929 = vmatmul.bf16.gmra.mxu0 %v794
      %v1930 = vpop.f32.mrf.mxu0
      %v1931 = vadd.f32 0.0, %v1930
      %v1932 = vpop.f32.mrf.mxu0
      %v1933 = vadd.f32 0.0, %v1932
      %1934 = vmatmul.bf16.gmra.mxu0 %v795
      %v1935 = vpop.f32.mrf.mxu0
      %v1936 = vadd.f32 0.0, %v1935
      %v1937 = vpop.f32.mrf.mxu0
      %v1938 = vadd.f32 0.0, %v1937
      %1939 = vmatmul.bf16.gmra.mxu0 %v796
      %v1940 = vpop.f32.mrf.mxu0
      %v1941 = vadd.f32 0.0, %v1940
      %v1942 = vpop.f32.mrf.mxu0
      %v1943 = vadd.f32 0.0, %v1942
      %1944 = vmatmul.bf16.gmra.mxu0 %v797
      %v1945 = vpop.f32.mrf.mxu0
      %v1946 = vadd.f32 0.0, %v1945
      %v1947 = vpop.f32.mrf.mxu0
      %v1948 = vadd.f32 0.0, %v1947
      %1949 = vmatmul.bf16.gmra.mxu0 %v798
      %v1950 = vpop.f32.mrf.mxu0
      %v1951 = vadd.f32 0.0, %v1950
      %v1952 = vpop.f32.mrf.mxu0
      %v1953 = vadd.f32 0.0, %v1952
      %1954 = vmatmul.bf16.gmra.mxu0 %v799
      %v1955 = vpop.f32.mrf.mxu0
      %v1956 = vadd.f32 0.0, %v1955
      %v1957 = vpop.f32.mrf.mxu0
      %v1958 = vadd.f32 0.0, %v1957
      %1959 = vmatmul.bf16.gmra.mxu0 %v800
      %v1960 = vpop.f32.mrf.mxu0
      %v1961 = vadd.f32 0.0, %v1960
      %v1962 = vpop.f32.mrf.mxu0
      %v1963 = vadd.f32 0.0, %v1962
      %1964 = vmatmul.bf16.gmra.mxu0 %v801
      %v1965 = vpop.f32.mrf.mxu0
      %v1966 = vadd.f32 0.0, %v1965
      %v1967 = vpop.f32.mrf.mxu0
      %v1968 = vadd.f32 0.0, %v1967
      %1969 = vmatmul.bf16.gmra.mxu0 %v1836
      %v1970 = vpop.f32.mrf.mxu0
      %v1971 = vadd.f32 0.0, %v1970
      %v1972 = vpop.f32.mrf.mxu0
      %v1973 = vadd.f32 0.0, %v1972
      %1974 = vdwg.mxu0
      %v1975 = vadd.f32 %v1729, %v1896
      %v1976 = vadd.f32 %v1730, %v1898
      %v1977 = vadd.f32 %v1731, %v1901
      %v1978 = vadd.f32 %v1732, %v1903
      %v1979 = vadd.f32 %v1733, %v1906
      %v1980 = vadd.f32 %v1734, %v1908
      %v1981 = vadd.f32 %v1735, %v1911
      %v1982 = vadd.f32 %v1736, %v1913
      %v1983 = vadd.f32 %v1737, %v1916
      %v1984 = vadd.f32 %v1738, %v1918
      %v1985 = vadd.f32 %v1739, %v1921
      %v1986 = vadd.f32 %v1740, %v1923
      %v1987 = vadd.f32 %v1741, %v1926
      %v1988 = vadd.f32 %v1742, %v1928
      %v1989 = vadd.f32 %v1743, %v1931
      %v1990 = vadd.f32 %v1744, %v1933
      %v1991 = vadd.f32 %v1745, %v1936
      %v1992 = vadd.f32 %v1746, %v1938
      %v1993 = vadd.f32 %v1747, %v1941
      %v1994 = vadd.f32 %v1748, %v1943
      %v1995 = vadd.f32 %v1749, %v1946
      %v1996 = vadd.f32 %v1750, %v1948
      %v1997 = vadd.f32 %v1751, %v1951
      %v1998 = vadd.f32 %v1752, %v1953
      %v1999 = vadd.f32 %v1753, %v1956
      %v2000 = vadd.f32 %v1754, %v1958
      %v2001 = vadd.f32 %v1755, %v1961
      %v2002 = vadd.f32 %v1756, %v1963
      %v2003 = vadd.f32 %v1757, %v1966
      %v2004 = vadd.f32 %v1758, %v1968
      %v2005 = vadd.f32 %v1759, %v1971
      %v2006 = vadd.f32 %v1760, %v1973
      %v2008 = vrot.slane %v328, 5
      %v2009 = vrot.slane %v2008, 4
      %v2010 = vrot.slane %v329, 5
      %v2011 = vsel %vm1206, %v2009, %v2010
      %v2012 = vrot.slane %v2010, 4
      %v2013 = vrot.slane %v330, 5
      %v2014 = vsel %vm1206, %v2012, %v2013
      %s2015 = scalar_lea.vmem %s1, 320
      %v2016 = vld [vmem:[%s2015] sm:$0xf]
      %v2017 = vld [vmem:[%s2015 + $0x4] sm:$0xf]
      %v2018 = vld [vmem:[%s2015 + $0x8] sm:$0xf]
      %v2019 = vld [vmem:[%s2015 + $0xc] sm:$0xf]
      %v2020 = vld [vmem:[%s2015 + $0x10] sm:$0xf]
      %v2021 = vld [vmem:[%s2015 + $0x14] sm:$0xf]
      %v2022 = vld [vmem:[%s2015 + $0x18] sm:$0xf]
      %v2023 = vld [vmem:[%s2015 + $0x1c] sm:$0xf]
      %v2024 = vld [vmem:[%s2015 + $0x20] sm:$0xf]
      %v2025 = vld [vmem:[%s2015 + $0x24] sm:$0xf]
      %v2026 = vld [vmem:[%s2015 + $0x28] sm:$0xf]
      %v2027 = vld [vmem:[%s2015 + $0x2c] sm:$0xf]
      %v2028 = vld [vmem:[%s2015 + $0x30] sm:$0xf]
      %v2029 = vld [vmem:[%s2015 + $0x34] sm:$0xf]
      %v2030 = vld [vmem:[%s2015 + $0x38] sm:$0xf]
      %v2031 = vld [vmem:[%s2015 + $0x3c] sm:$0xf]
      %v2032 = vunpack.c.l.b16 %v2011
      %v2033 = vunpack.c.l.b16 %v2014
      %v2034 = vpack.c.b16 %v2033, %v2032
      %v2052 = vunpack.c.l.b16 %v2016
      %v2053 = vunpack.c.l.b16 %v2017
      %v2054 = vunpack.c.l.b16 %v2018
      %v2055 = vunpack.c.l.b16 %v2019
      %v2056 = vunpack.c.l.b16 %v2020
      %v2057 = vunpack.c.l.b16 %v2021
      %v2058 = vunpack.c.l.b16 %v2022
      %v2059 = vunpack.c.l.b16 %v2023
      %v2060 = vunpack.c.l.b16 %v2024
      %v2061 = vunpack.c.l.b16 %v2025
      %v2062 = vunpack.c.l.b16 %v2026
      %v2063 = vunpack.c.l.b16 %v2027
      %v2064 = vunpack.c.l.b16 %v2028
      %v2065 = vunpack.c.l.b16 %v2029
      %v2066 = vunpack.c.l.b16 %v2030
      %v2067 = vunpack.c.l.b16 %v2031
      %v2068 = vpack.c.b16 %v2053, %v2052
      %v2069 = vpack.c.b16 %v2055, %v2054
      %v2070 = vpack.c.b16 %v2057, %v2056
      %v2071 = vpack.c.b16 %v2059, %v2058
      %v2072 = vpack.c.b16 %v2061, %v2060
      %v2073 = vpack.c.b16 %v2063, %v2062
      %v2074 = vpack.c.b16 %v2065, %v2064
      %v2075 = vpack.c.b16 %v2067, %v2066
      %2084 = vmatpush.bf16.msra.mxu0 %v2075
      %2085 = vmatpush.bf16.msra.mxu0 %v2074
      %2086 = vmatpush.bf16.msra.mxu0 %v2073
      %2087 = vmatpush.bf16.msra.mxu0 %v2072
      %2088 = vmatpush.bf16.msra.mxu0 %v2071
      %2089 = vmatpush.bf16.msra.mxu0 %v2070
      %2090 = vmatpush.bf16.msra.mxu0 %v2069
      %2091 = vmatpush.bf16.msra.mxu0 %v2068
      %2092 = vmatmul.bf16.gmra.mxu0 %v1369
      %v2093 = vpop.f32.mrf.mxu0
      %v2094 = vadd.f32 0.0, %v2093
      %v2095 = vpop.f32.mrf.mxu0
      %v2096 = vadd.f32 0.0, %v2095
      %2097 = vmatmul.bf16.gmra.mxu0 %v1370
      %v2098 = vpop.f32.mrf.mxu0
      %v2099 = vadd.f32 0.0, %v2098
      %v2100 = vpop.f32.mrf.mxu0
      %v2101 = vadd.f32 0.0, %v2100
      %2102 = vmatmul.bf16.gmra.mxu0 %v1371
      %v2103 = vpop.f32.mrf.mxu0
      %v2104 = vadd.f32 0.0, %v2103
      %v2105 = vpop.f32.mrf.mxu0
      %v2106 = vadd.f32 0.0, %v2105
      %2107 = vmatmul.bf16.gmra.mxu0 %v1372
      %v2108 = vpop.f32.mrf.mxu0
      %v2109 = vadd.f32 0.0, %v2108
      %v2110 = vpop.f32.mrf.mxu0
      %v2111 = vadd.f32 0.0, %v2110
      %2112 = vmatmul.bf16.gmra.mxu0 %v1373
      %v2113 = vpop.f32.mrf.mxu0
      %v2114 = vadd.f32 0.0, %v2113
      %v2115 = vpop.f32.mrf.mxu0
      %v2116 = vadd.f32 0.0, %v2115
      %2117 = vmatmul.bf16.gmra.mxu0 %v1374
      %v2118 = vpop.f32.mrf.mxu0
      %v2119 = vadd.f32 0.0, %v2118
      %v2120 = vpop.f32.mrf.mxu0
      %v2121 = vadd.f32 0.0, %v2120
      %2122 = vmatmul.bf16.gmra.mxu0 %v1375
      %v2123 = vpop.f32.mrf.mxu0
      %v2124 = vadd.f32 0.0, %v2123
      %v2125 = vpop.f32.mrf.mxu0
      %v2126 = vadd.f32 0.0, %v2125
      %2127 = vmatmul.bf16.gmra.mxu0 %v1376
      %v2128 = vpop.f32.mrf.mxu0
      %v2129 = vadd.f32 0.0, %v2128
      %v2130 = vpop.f32.mrf.mxu0
      %v2131 = vadd.f32 0.0, %v2130
      %2132 = vmatmul.bf16.gmra.mxu0 %v1377
      %v2133 = vpop.f32.mrf.mxu0
      %v2134 = vadd.f32 0.0, %v2133
      %v2135 = vpop.f32.mrf.mxu0
      %v2136 = vadd.f32 0.0, %v2135
      %2137 = vmatmul.bf16.gmra.mxu0 %v1378
      %v2138 = vpop.f32.mrf.mxu0
      %v2139 = vadd.f32 0.0, %v2138
      %v2140 = vpop.f32.mrf.mxu0
      %v2141 = vadd.f32 0.0, %v2140
      %2142 = vmatmul.bf16.gmra.mxu0 %v1379
      %v2143 = vpop.f32.mrf.mxu0
      %v2144 = vadd.f32 0.0, %v2143
      %v2145 = vpop.f32.mrf.mxu0
      %v2146 = vadd.f32 0.0, %v2145
      %2147 = vmatmul.bf16.gmra.mxu0 %v1380
      %v2148 = vpop.f32.mrf.mxu0
      %v2149 = vadd.f32 0.0, %v2148
      %v2150 = vpop.f32.mrf.mxu0
      %v2151 = vadd.f32 0.0, %v2150
      %2152 = vmatmul.bf16.gmra.mxu0 %v1381
      %v2153 = vpop.f32.mrf.mxu0
      %v2154 = vadd.f32 0.0, %v2153
      %v2155 = vpop.f32.mrf.mxu0
      %v2156 = vadd.f32 0.0, %v2155
      %2157 = vmatmul.bf16.gmra.mxu0 %v1382
      %v2158 = vpop.f32.mrf.mxu0
      %v2159 = vadd.f32 0.0, %v2158
      %v2160 = vpop.f32.mrf.mxu0
      %v2161 = vadd.f32 0.0, %v2160
      %2162 = vmatmul.bf16.gmra.mxu0 %v1383
      %v2163 = vpop.f32.mrf.mxu0
      %v2164 = vadd.f32 0.0, %v2163
      %v2165 = vpop.f32.mrf.mxu0
      %v2166 = vadd.f32 0.0, %v2165
      %2167 = vmatmul.bf16.gmra.mxu0 %v2034
      %v2168 = vpop.f32.mrf.mxu0
      %v2169 = vadd.f32 0.0, %v2168
      %v2170 = vpop.f32.mrf.mxu0
      %v2171 = vadd.f32 0.0, %v2170
      %2172 = vdwg.mxu0
      %v2173 = vadd.f32 %v1975, %v2094
      %v2174 = vadd.f32 %v1976, %v2096
      %v2175 = vadd.f32 %v1977, %v2099
      %v2176 = vadd.f32 %v1978, %v2101
      %v2177 = vadd.f32 %v1979, %v2104
      %v2178 = vadd.f32 %v1980, %v2106
      %v2179 = vadd.f32 %v1981, %v2109
      %v2180 = vadd.f32 %v1982, %v2111
      %v2181 = vadd.f32 %v1983, %v2114
      %v2182 = vadd.f32 %v1984, %v2116
      %v2183 = vadd.f32 %v1985, %v2119
      %v2184 = vadd.f32 %v1986, %v2121
      %v2185 = vadd.f32 %v1987, %v2124
      %v2186 = vadd.f32 %v1988, %v2126
      %v2187 = vadd.f32 %v1989, %v2129
      %v2188 = vadd.f32 %v1990, %v2131
      %v2189 = vadd.f32 %v1991, %v2134
      %v2190 = vadd.f32 %v1992, %v2136
      %v2191 = vadd.f32 %v1993, %v2139
      %v2192 = vadd.f32 %v1994, %v2141
      %v2193 = vadd.f32 %v1995, %v2144
      %v2194 = vadd.f32 %v1996, %v2146
      %v2195 = vadd.f32 %v1997, %v2149
      %v2196 = vadd.f32 %v1998, %v2151
      %v2197 = vadd.f32 %v1999, %v2154
      %v2198 = vadd.f32 %v2000, %v2156
      %v2199 = vadd.f32 %v2001, %v2159
      %v2200 = vadd.f32 %v2002, %v2161
      %v2201 = vadd.f32 %v2003, %v2164
      %v2202 = vadd.f32 %v2004, %v2166
      %v2203 = vadd.f32 %v2005, %v2169
      %v2204 = vadd.f32 %v2006, %v2171
      %s2205 = scalar_lea.vmem %s1, 384
      %v2206 = vld [vmem:[%s2205] sm:$0xf]
      %v2207 = vld [vmem:[%s2205 + $0x4] sm:$0xf]
      %v2208 = vld [vmem:[%s2205 + $0x8] sm:$0xf]
      %v2209 = vld [vmem:[%s2205 + $0xc] sm:$0xf]
      %v2210 = vld [vmem:[%s2205 + $0x10] sm:$0xf]
      %v2211 = vld [vmem:[%s2205 + $0x14] sm:$0xf]
      %v2212 = vld [vmem:[%s2205 + $0x18] sm:$0xf]
      %v2213 = vld [vmem:[%s2205 + $0x1c] sm:$0xf]
      %v2214 = vld [vmem:[%s2205 + $0x20] sm:$0xf]
      %v2215 = vld [vmem:[%s2205 + $0x24] sm:$0xf]
      %v2216 = vld [vmem:[%s2205 + $0x28] sm:$0xf]
      %v2217 = vld [vmem:[%s2205 + $0x2c] sm:$0xf]
      %v2218 = vld [vmem:[%s2205 + $0x30] sm:$0xf]
      %v2219 = vld [vmem:[%s2205 + $0x34] sm:$0xf]
      %v2220 = vld [vmem:[%s2205 + $0x38] sm:$0xf]
      %v2221 = vld [vmem:[%s2205 + $0x3c] sm:$0xf]
      %v2224 = vunpack.c.l.b16 %v331
      %v2225 = vunpack.c.l.b16 %v332
      %v2226 = vpack.c.b16 %v2225, %v2224
      %v2244 = vunpack.c.l.b16 %v2206
      %v2245 = vunpack.c.l.b16 %v2207
      %v2246 = vunpack.c.l.b16 %v2208
      %v2247 = vunpack.c.l.b16 %v2209
      %v2248 = vunpack.c.l.b16 %v2210
      %v2249 = vunpack.c.l.b16 %v2211
      %v2250 = vunpack.c.l.b16 %v2212
      %v2251 = vunpack.c.l.b16 %v2213
      %v2252 = vunpack.c.l.b16 %v2214
      %v2253 = vunpack.c.l.b16 %v2215
      %v2254 = vunpack.c.l.b16 %v2216
      %v2255 = vunpack.c.l.b16 %v2217
      %v2256 = vunpack.c.l.b16 %v2218
      %v2257 = vunpack.c.l.b16 %v2219
      %v2258 = vunpack.c.l.b16 %v2220
      %v2259 = vunpack.c.l.b16 %v2221
      %v2260 = vpack.c.b16 %v2245, %v2244
      %v2261 = vpack.c.b16 %v2247, %v2246
      %v2262 = vpack.c.b16 %v2249, %v2248
      %v2263 = vpack.c.b16 %v2251, %v2250
      %v2264 = vpack.c.b16 %v2253, %v2252
      %v2265 = vpack.c.b16 %v2255, %v2254
      %v2266 = vpack.c.b16 %v2257, %v2256
      %v2267 = vpack.c.b16 %v2259, %v2258
      %2276 = vmatpush.bf16.msra.mxu0 %v2267
      %2277 = vmatpush.bf16.msra.mxu0 %v2266
      %2278 = vmatpush.bf16.msra.mxu0 %v2265
      %2279 = vmatpush.bf16.msra.mxu0 %v2264
      %2280 = vmatpush.bf16.msra.mxu0 %v2263
      %2281 = vmatpush.bf16.msra.mxu0 %v2262
      %2282 = vmatpush.bf16.msra.mxu0 %v2261
      %2283 = vmatpush.bf16.msra.mxu0 %v2260
      %2284 = vmatmul.bf16.gmra.mxu0 %v1021
      %v2285 = vpop.f32.mrf.mxu0
      %v2286 = vadd.f32 0.0, %v2285
      %v2287 = vpop.f32.mrf.mxu0
      %v2288 = vadd.f32 0.0, %v2287
      %2289 = vmatmul.bf16.gmra.mxu0 %v1022
      %v2290 = vpop.f32.mrf.mxu0
      %v2291 = vadd.f32 0.0, %v2290
      %v2292 = vpop.f32.mrf.mxu0
      %v2293 = vadd.f32 0.0, %v2292
      %2294 = vmatmul.bf16.gmra.mxu0 %v1023
      %v2295 = vpop.f32.mrf.mxu0
      %v2296 = vadd.f32 0.0, %v2295
      %v2297 = vpop.f32.mrf.mxu0
      %v2298 = vadd.f32 0.0, %v2297
      %2299 = vmatmul.bf16.gmra.mxu0 %v1024
      %v2300 = vpop.f32.mrf.mxu0
      %v2301 = vadd.f32 0.0, %v2300
      %v2302 = vpop.f32.mrf.mxu0
      %v2303 = vadd.f32 0.0, %v2302
      %2304 = vmatmul.bf16.gmra.mxu0 %v1025
      %v2305 = vpop.f32.mrf.mxu0
      %v2306 = vadd.f32 0.0, %v2305
      %v2307 = vpop.f32.mrf.mxu0
      %v2308 = vadd.f32 0.0, %v2307
      %2309 = vmatmul.bf16.gmra.mxu0 %v1026
      %v2310 = vpop.f32.mrf.mxu0
      %v2311 = vadd.f32 0.0, %v2310
      %v2312 = vpop.f32.mrf.mxu0
      %v2313 = vadd.f32 0.0, %v2312
      %2314 = vmatmul.bf16.gmra.mxu0 %v1027
      %v2315 = vpop.f32.mrf.mxu0
      %v2316 = vadd.f32 0.0, %v2315
      %v2317 = vpop.f32.mrf.mxu0
      %v2318 = vadd.f32 0.0, %v2317
      %2319 = vmatmul.bf16.gmra.mxu0 %v1028
      %v2320 = vpop.f32.mrf.mxu0
      %v2321 = vadd.f32 0.0, %v2320
      %v2322 = vpop.f32.mrf.mxu0
      %v2323 = vadd.f32 0.0, %v2322
      %2324 = vmatmul.bf16.gmra.mxu0 %v1029
      %v2325 = vpop.f32.mrf.mxu0
      %v2326 = vadd.f32 0.0, %v2325
      %v2327 = vpop.f32.mrf.mxu0
      %v2328 = vadd.f32 0.0, %v2327
      %2329 = vmatmul.bf16.gmra.mxu0 %v1030
      %v2330 = vpop.f32.mrf.mxu0
      %v2331 = vadd.f32 0.0, %v2330
      %v2332 = vpop.f32.mrf.mxu0
      %v2333 = vadd.f32 0.0, %v2332
      %2334 = vmatmul.bf16.gmra.mxu0 %v1031
      %v2335 = vpop.f32.mrf.mxu0
      %v2336 = vadd.f32 0.0, %v2335
      %v2337 = vpop.f32.mrf.mxu0
      %v2338 = vadd.f32 0.0, %v2337
      %2339 = vmatmul.bf16.gmra.mxu0 %v1032
      %v2340 = vpop.f32.mrf.mxu0
      %v2341 = vadd.f32 0.0, %v2340
      %v2342 = vpop.f32.mrf.mxu0
      %v2343 = vadd.f32 0.0, %v2342
      %2344 = vmatmul.bf16.gmra.mxu0 %v1033
      %v2345 = vpop.f32.mrf.mxu0
      %v2346 = vadd.f32 0.0, %v2345
      %v2347 = vpop.f32.mrf.mxu0
      %v2348 = vadd.f32 0.0, %v2347
      %2349 = vmatmul.bf16.gmra.mxu0 %v1034
      %v2350 = vpop.f32.mrf.mxu0
      %v2351 = vadd.f32 0.0, %v2350
      %v2352 = vpop.f32.mrf.mxu0
      %v2353 = vadd.f32 0.0, %v2352
      %2354 = vmatmul.bf16.gmra.mxu0 %v1590
      %v2355 = vpop.f32.mrf.mxu0
      %v2356 = vadd.f32 0.0, %v2355
      %v2357 = vpop.f32.mrf.mxu0
      %v2358 = vadd.f32 0.0, %v2357
      %2359 = vmatmul.bf16.gmra.mxu0 %v2226
      %v2360 = vpop.f32.mrf.mxu0
      %v2361 = vadd.f32 0.0, %v2360
      %v2362 = vpop.f32.mrf.mxu0
      %v2363 = vadd.f32 0.0, %v2362
      %2364 = vdwg.mxu0
      %v2365 = vadd.f32 %v2173, %v2286
      %v2366 = vadd.f32 %v2174, %v2288
      %v2367 = vadd.f32 %v2175, %v2291
      %v2368 = vadd.f32 %v2176, %v2293
      %v2369 = vadd.f32 %v2177, %v2296
      %v2370 = vadd.f32 %v2178, %v2298
      %v2371 = vadd.f32 %v2179, %v2301
      %v2372 = vadd.f32 %v2180, %v2303
      %v2373 = vadd.f32 %v2181, %v2306
      %v2374 = vadd.f32 %v2182, %v2308
      %v2375 = vadd.f32 %v2183, %v2311
      %v2376 = vadd.f32 %v2184, %v2313
      %v2377 = vadd.f32 %v2185, %v2316
      %v2378 = vadd.f32 %v2186, %v2318
      %v2379 = vadd.f32 %v2187, %v2321
      %v2380 = vadd.f32 %v2188, %v2323
      %v2381 = vadd.f32 %v2189, %v2326
      %v2382 = vadd.f32 %v2190, %v2328
      %v2383 = vadd.f32 %v2191, %v2331
      %v2384 = vadd.f32 %v2192, %v2333
      %v2385 = vadd.f32 %v2193, %v2336
      %v2386 = vadd.f32 %v2194, %v2338
      %v2387 = vadd.f32 %v2195, %v2341
      %v2388 = vadd.f32 %v2196, %v2343
      %v2389 = vadd.f32 %v2197, %v2346
      %v2390 = vadd.f32 %v2198, %v2348
      %v2391 = vadd.f32 %v2199, %v2351
      %v2392 = vadd.f32 %v2200, %v2353
      %v2393 = vadd.f32 %v2201, %v2356
      %v2394 = vadd.f32 %v2202, %v2358
      %v2395 = vadd.f32 %v2203, %v2361
      %v2396 = vadd.f32 %v2204, %v2363
      %v2398 = vshrl.u32 %v331, 16
      %v2400 = vrot.slane %v2398, 4
      %v2401 = vshll.u32 %v331, 16
      %v2403 = vrot.slane %v2401, 5
      %v2404 = vor.u32 %v2400, %v2403
      %v2405 = vrot.slane %v2404, 4
      %v2407 = vshll.u32 %v332, 16
      %v2409 = vrot.slane %v2407, 5
      %v2410 = vsel %vm352, %v2405, %v2409
      %v2411 = vshrl.u32 %v332, 16
      %v2413 = vrot.slane %v2411, 4
      %v2414 = vor.u32 %v2413, %v2409
      %v2415 = vrot.slane %v2414, 4
      %v2417 = vshll.u32 %v333, 16
      %v2419 = vrot.slane %v2417, 5
      %v2420 = vsel %vm352, %v2415, %v2419
      %s2421 = scalar_lea.vmem %s1, 448
      %v2422 = vld [vmem:[%s2421] sm:$0xf]
      %v2423 = vld [vmem:[%s2421 + $0x4] sm:$0xf]
      %v2424 = vld [vmem:[%s2421 + $0x8] sm:$0xf]
      %v2425 = vld [vmem:[%s2421 + $0xc] sm:$0xf]
      %v2426 = vld [vmem:[%s2421 + $0x10] sm:$0xf]
      %v2427 = vld [vmem:[%s2421 + $0x14] sm:$0xf]
      %v2428 = vld [vmem:[%s2421 + $0x18] sm:$0xf]
      %v2429 = vld [vmem:[%s2421 + $0x1c] sm:$0xf]
      %v2430 = vld [vmem:[%s2421 + $0x20] sm:$0xf]
      %v2431 = vld [vmem:[%s2421 + $0x24] sm:$0xf]
      %v2432 = vld [vmem:[%s2421 + $0x28] sm:$0xf]
      %v2433 = vld [vmem:[%s2421 + $0x2c] sm:$0xf]
      %v2434 = vld [vmem:[%s2421 + $0x30] sm:$0xf]
      %v2435 = vld [vmem:[%s2421 + $0x34] sm:$0xf]
      %v2436 = vld [vmem:[%s2421 + $0x38] sm:$0xf]
      %v2437 = vld [vmem:[%s2421 + $0x3c] sm:$0xf]
      %v2438 = vunpack.c.l.b16 %v2410
      %v2439 = vunpack.c.l.b16 %v2420
      %v2440 = vpack.c.b16 %v2439, %v2438
      %v2458 = vunpack.c.l.b16 %v2422
      %v2459 = vunpack.c.l.b16 %v2423
      %v2460 = vunpack.c.l.b16 %v2424
      %v2461 = vunpack.c.l.b16 %v2425
      %v2462 = vunpack.c.l.b16 %v2426
      %v2463 = vunpack.c.l.b16 %v2427
      %v2464 = vunpack.c.l.b16 %v2428
      %v2465 = vunpack.c.l.b16 %v2429
      %v2466 = vunpack.c.l.b16 %v2430
      %v2467 = vunpack.c.l.b16 %v2431
      %v2468 = vunpack.c.l.b16 %v2432
      %v2469 = vunpack.c.l.b16 %v2433
      %v2470 = vunpack.c.l.b16 %v2434
      %v2471 = vunpack.c.l.b16 %v2435
      %v2472 = vunpack.c.l.b16 %v2436
      %v2473 = vunpack.c.l.b16 %v2437
      %v2474 = vpack.c.b16 %v2459, %v2458
      %v2475 = vpack.c.b16 %v2461, %v2460
      %v2476 = vpack.c.b16 %v2463, %v2462
      %v2477 = vpack.c.b16 %v2465, %v2464
      %v2478 = vpack.c.b16 %v2467, %v2466
      %v2479 = vpack.c.b16 %v2469, %v2468
      %v2480 = vpack.c.b16 %v2471, %v2470
      %v2481 = vpack.c.b16 %v2473, %v2472
      %2490 = vmatpush.bf16.msra.mxu0 %v2481
      %2491 = vmatpush.bf16.msra.mxu0 %v2480
      %2492 = vmatpush.bf16.msra.mxu0 %v2479
      %2493 = vmatpush.bf16.msra.mxu0 %v2478
      %2494 = vmatpush.bf16.msra.mxu0 %v2477
      %2495 = vmatpush.bf16.msra.mxu0 %v2476
      %2496 = vmatpush.bf16.msra.mxu0 %v2475
      %2497 = vmatpush.bf16.msra.mxu0 %v2474
      %2498 = vmatmul.bf16.gmra.mxu0 %v788
      %v2499 = vpop.f32.mrf.mxu0
      %v2500 = vadd.f32 0.0, %v2499
      %v2501 = vpop.f32.mrf.mxu0
      %v2502 = vadd.f32 0.0, %v2501
      %2503 = vmatmul.bf16.gmra.mxu0 %v789
      %v2504 = vpop.f32.mrf.mxu0
      %v2505 = vadd.f32 0.0, %v2504
      %v2506 = vpop.f32.mrf.mxu0
      %v2507 = vadd.f32 0.0, %v2506
      %2508 = vmatmul.bf16.gmra.mxu0 %v790
      %v2509 = vpop.f32.mrf.mxu0
      %v2510 = vadd.f32 0.0, %v2509
      %v2511 = vpop.f32.mrf.mxu0
      %v2512 = vadd.f32 0.0, %v2511
      %2513 = vmatmul.bf16.gmra.mxu0 %v791
      %v2514 = vpop.f32.mrf.mxu0
      %v2515 = vadd.f32 0.0, %v2514
      %v2516 = vpop.f32.mrf.mxu0
      %v2517 = vadd.f32 0.0, %v2516
      %2518 = vmatmul.bf16.gmra.mxu0 %v792
      %v2519 = vpop.f32.mrf.mxu0
      %v2520 = vadd.f32 0.0, %v2519
      %v2521 = vpop.f32.mrf.mxu0
      %v2522 = vadd.f32 0.0, %v2521
      %2523 = vmatmul.bf16.gmra.mxu0 %v793
      %v2524 = vpop.f32.mrf.mxu0
      %v2525 = vadd.f32 0.0, %v2524
      %v2526 = vpop.f32.mrf.mxu0
      %v2527 = vadd.f32 0.0, %v2526
      %2528 = vmatmul.bf16.gmra.mxu0 %v794
      %v2529 = vpop.f32.mrf.mxu0
      %v2530 = vadd.f32 0.0, %v2529
      %v2531 = vpop.f32.mrf.mxu0
      %v2532 = vadd.f32 0.0, %v2531
      %2533 = vmatmul.bf16.gmra.mxu0 %v795
      %v2534 = vpop.f32.mrf.mxu0
      %v2535 = vadd.f32 0.0, %v2534
      %v2536 = vpop.f32.mrf.mxu0
      %v2537 = vadd.f32 0.0, %v2536
      %2538 = vmatmul.bf16.gmra.mxu0 %v796
      %v2539 = vpop.f32.mrf.mxu0
      %v2540 = vadd.f32 0.0, %v2539
      %v2541 = vpop.f32.mrf.mxu0
      %v2542 = vadd.f32 0.0, %v2541
      %2543 = vmatmul.bf16.gmra.mxu0 %v797
      %v2544 = vpop.f32.mrf.mxu0
      %v2545 = vadd.f32 0.0, %v2544
      %v2546 = vpop.f32.mrf.mxu0
      %v2547 = vadd.f32 0.0, %v2546
      %2548 = vmatmul.bf16.gmra.mxu0 %v798
      %v2549 = vpop.f32.mrf.mxu0
      %v2550 = vadd.f32 0.0, %v2549
      %v2551 = vpop.f32.mrf.mxu0
      %v2552 = vadd.f32 0.0, %v2551
      %2553 = vmatmul.bf16.gmra.mxu0 %v799
      %v2554 = vpop.f32.mrf.mxu0
      %v2555 = vadd.f32 0.0, %v2554
      %v2556 = vpop.f32.mrf.mxu0
      %v2557 = vadd.f32 0.0, %v2556
      %2558 = vmatmul.bf16.gmra.mxu0 %v800
      %v2559 = vpop.f32.mrf.mxu0
      %v2560 = vadd.f32 0.0, %v2559
      %v2561 = vpop.f32.mrf.mxu0
      %v2562 = vadd.f32 0.0, %v2561
      %2563 = vmatmul.bf16.gmra.mxu0 %v801
      %v2564 = vpop.f32.mrf.mxu0
      %v2565 = vadd.f32 0.0, %v2564
      %v2566 = vpop.f32.mrf.mxu0
      %v2567 = vadd.f32 0.0, %v2566
      %2568 = vmatmul.bf16.gmra.mxu0 %v1836
      %v2569 = vpop.f32.mrf.mxu0
      %v2570 = vadd.f32 0.0, %v2569
      %v2571 = vpop.f32.mrf.mxu0
      %v2572 = vadd.f32 0.0, %v2571
      %2573 = vmatmul.bf16.gmra.mxu0 %v2440
      %v2574 = vpop.f32.mrf.mxu0
      %v2575 = vadd.f32 0.0, %v2574
      %v2576 = vpop.f32.mrf.mxu0
      %v2577 = vadd.f32 0.0, %v2576
      %2578 = vdwg.mxu0
      %v2579 = vadd.f32 %v2365, %v2500
      %v2580 = vadd.f32 %v2366, %v2502
      %v2581 = vadd.f32 %v2367, %v2505
      %v2582 = vadd.f32 %v2368, %v2507
      %v2583 = vadd.f32 %v2369, %v2510
      %v2584 = vadd.f32 %v2370, %v2512
      %v2585 = vadd.f32 %v2371, %v2515
      %v2586 = vadd.f32 %v2372, %v2517
      %v2587 = vadd.f32 %v2373, %v2520
      %v2588 = vadd.f32 %v2374, %v2522
      %v2589 = vadd.f32 %v2375, %v2525
      %v2590 = vadd.f32 %v2376, %v2527
      %v2591 = vadd.f32 %v2377, %v2530
      %v2592 = vadd.f32 %v2378, %v2532
      %v2593 = vadd.f32 %v2379, %v2535
      %v2594 = vadd.f32 %v2380, %v2537
      %v2595 = vadd.f32 %v2381, %v2540
      %v2596 = vadd.f32 %v2382, %v2542
      %v2597 = vadd.f32 %v2383, %v2545
      %v2598 = vadd.f32 %v2384, %v2547
      %v2599 = vadd.f32 %v2385, %v2550
      %v2600 = vadd.f32 %v2386, %v2552
      %v2601 = vadd.f32 %v2387, %v2555
      %v2602 = vadd.f32 %v2388, %v2557
      %v2603 = vadd.f32 %v2389, %v2560
      %v2604 = vadd.f32 %v2390, %v2562
      %v2605 = vadd.f32 %v2391, %v2565
      %v2606 = vadd.f32 %v2392, %v2567
      %v2607 = vadd.f32 %v2393, %v2570
      %v2608 = vadd.f32 %v2394, %v2572
      %v2609 = vadd.f32 %v2395, %v2575
      %v2610 = vadd.f32 %v2396, %v2577
      %v2612 = vrot.slane %v331, 5
      %v2613 = vrot.slane %v2612, 4
      %v2614 = vrot.slane %v332, 5
      %v2615 = vsel %vm1206, %v2613, %v2614
      %v2616 = vrot.slane %v2614, 4
      %v2617 = vrot.slane %v333, 5
      %v2618 = vsel %vm1206, %v2616, %v2617
      %s2619 = scalar_lea.vmem %s1, 512
      %v2620 = vld [vmem:[%s2619] sm:$0xf]
      %v2621 = vld [vmem:[%s2619 + $0x4] sm:$0xf]
      %v2622 = vld [vmem:[%s2619 + $0x8] sm:$0xf]
      %v2623 = vld [vmem:[%s2619 + $0xc] sm:$0xf]
      %v2624 = vld [vmem:[%s2619 + $0x10] sm:$0xf]
      %v2625 = vld [vmem:[%s2619 + $0x14] sm:$0xf]
      %v2626 = vld [vmem:[%s2619 + $0x18] sm:$0xf]
      %v2627 = vld [vmem:[%s2619 + $0x1c] sm:$0xf]
      %v2628 = vld [vmem:[%s2619 + $0x20] sm:$0xf]
      %v2629 = vld [vmem:[%s2619 + $0x24] sm:$0xf]
      %v2630 = vld [vmem:[%s2619 + $0x28] sm:$0xf]
      %v2631 = vld [vmem:[%s2619 + $0x2c] sm:$0xf]
      %v2632 = vld [vmem:[%s2619 + $0x30] sm:$0xf]
      %v2633 = vld [vmem:[%s2619 + $0x34] sm:$0xf]
      %v2634 = vld [vmem:[%s2619 + $0x38] sm:$0xf]
      %v2635 = vld [vmem:[%s2619 + $0x3c] sm:$0xf]
      %v2636 = vunpack.c.l.b16 %v2615
      %v2637 = vunpack.c.l.b16 %v2618
      %v2638 = vpack.c.b16 %v2637, %v2636
      %v2656 = vunpack.c.l.b16 %v2620
      %v2657 = vunpack.c.l.b16 %v2621
      %v2658 = vunpack.c.l.b16 %v2622
      %v2659 = vunpack.c.l.b16 %v2623
      %v2660 = vunpack.c.l.b16 %v2624
      %v2661 = vunpack.c.l.b16 %v2625
      %v2662 = vunpack.c.l.b16 %v2626
      %v2663 = vunpack.c.l.b16 %v2627
      %v2664 = vunpack.c.l.b16 %v2628
      %v2665 = vunpack.c.l.b16 %v2629
      %v2666 = vunpack.c.l.b16 %v2630
      %v2667 = vunpack.c.l.b16 %v2631
      %v2668 = vunpack.c.l.b16 %v2632
      %v2669 = vunpack.c.l.b16 %v2633
      %v2670 = vunpack.c.l.b16 %v2634
      %v2671 = vunpack.c.l.b16 %v2635
      %v2672 = vpack.c.b16 %v2657, %v2656
      %v2673 = vpack.c.b16 %v2659, %v2658
      %v2674 = vpack.c.b16 %v2661, %v2660
      %v2675 = vpack.c.b16 %v2663, %v2662
      %v2676 = vpack.c.b16 %v2665, %v2664
      %v2677 = vpack.c.b16 %v2667, %v2666
      %v2678 = vpack.c.b16 %v2669, %v2668
      %v2679 = vpack.c.b16 %v2671, %v2670
      %2688 = vmatpush.bf16.msra.mxu0 %v2679
      %2689 = vmatpush.bf16.msra.mxu0 %v2678
      %2690 = vmatpush.bf16.msra.mxu0 %v2677
      %2691 = vmatpush.bf16.msra.mxu0 %v2676
      %2692 = vmatpush.bf16.msra.mxu0 %v2675
      %2693 = vmatpush.bf16.msra.mxu0 %v2674
      %2694 = vmatpush.bf16.msra.mxu0 %v2673
      %2695 = vmatpush.bf16.msra.mxu0 %v2672
      %2696 = vmatmul.bf16.gmra.mxu0 %v1370
      %v2697 = vpop.f32.mrf.mxu0
      %v2698 = vadd.f32 0.0, %v2697
      %v2699 = vpop.f32.mrf.mxu0
      %v2700 = vadd.f32 0.0, %v2699
      %2701 = vmatmul.bf16.gmra.mxu0 %v1371
      %v2702 = vpop.f32.mrf.mxu0
      %v2703 = vadd.f32 0.0, %v2702
      %v2704 = vpop.f32.mrf.mxu0
      %v2705 = vadd.f32 0.0, %v2704
      %2706 = vmatmul.bf16.gmra.mxu0 %v1372
      %v2707 = vpop.f32.mrf.mxu0
      %v2708 = vadd.f32 0.0, %v2707
      %v2709 = vpop.f32.mrf.mxu0
      %v2710 = vadd.f32 0.0, %v2709
      %2711 = vmatmul.bf16.gmra.mxu0 %v1373
      %v2712 = vpop.f32.mrf.mxu0
      %v2713 = vadd.f32 0.0, %v2712
      %v2714 = vpop.f32.mrf.mxu0
      %v2715 = vadd.f32 0.0, %v2714
      %2716 = vmatmul.bf16.gmra.mxu0 %v1374
      %v2717 = vpop.f32.mrf.mxu0
      %v2718 = vadd.f32 0.0, %v2717
      %v2719 = vpop.f32.mrf.mxu0
      %v2720 = vadd.f32 0.0, %v2719
      %2721 = vmatmul.bf16.gmra.mxu0 %v1375
      %v2722 = vpop.f32.mrf.mxu0
      %v2723 = vadd.f32 0.0, %v2722
      %v2724 = vpop.f32.mrf.mxu0
      %v2725 = vadd.f32 0.0, %v2724
      %2726 = vmatmul.bf16.gmra.mxu0 %v1376
      %v2727 = vpop.f32.mrf.mxu0
      %v2728 = vadd.f32 0.0, %v2727
      %v2729 = vpop.f32.mrf.mxu0
      %v2730 = vadd.f32 0.0, %v2729
      %2731 = vmatmul.bf16.gmra.mxu0 %v1377
      %v2732 = vpop.f32.mrf.mxu0
      %v2733 = vadd.f32 0.0, %v2732
      %v2734 = vpop.f32.mrf.mxu0
      %v2735 = vadd.f32 0.0, %v2734
      %2736 = vmatmul.bf16.gmra.mxu0 %v1378
      %v2737 = vpop.f32.mrf.mxu0
      %v2738 = vadd.f32 0.0, %v2737
      %v2739 = vpop.f32.mrf.mxu0
      %v2740 = vadd.f32 0.0, %v2739
      %2741 = vmatmul.bf16.gmra.mxu0 %v1379
      %v2742 = vpop.f32.mrf.mxu0
      %v2743 = vadd.f32 0.0, %v2742
      %v2744 = vpop.f32.mrf.mxu0
      %v2745 = vadd.f32 0.0, %v2744
      %2746 = vmatmul.bf16.gmra.mxu0 %v1380
      %v2747 = vpop.f32.mrf.mxu0
      %v2748 = vadd.f32 0.0, %v2747
      %v2749 = vpop.f32.mrf.mxu0
      %v2750 = vadd.f32 0.0, %v2749
      %2751 = vmatmul.bf16.gmra.mxu0 %v1381
      %v2752 = vpop.f32.mrf.mxu0
      %v2753 = vadd.f32 0.0, %v2752
      %v2754 = vpop.f32.mrf.mxu0
      %v2755 = vadd.f32 0.0, %v2754
      %2756 = vmatmul.bf16.gmra.mxu0 %v1382
      %v2757 = vpop.f32.mrf.mxu0
      %v2758 = vadd.f32 0.0, %v2757
      %v2759 = vpop.f32.mrf.mxu0
      %v2760 = vadd.f32 0.0, %v2759
      %2761 = vmatmul.bf16.gmra.mxu0 %v1383
      %v2762 = vpop.f32.mrf.mxu0
      %v2763 = vadd.f32 0.0, %v2762
      %v2764 = vpop.f32.mrf.mxu0
      %v2765 = vadd.f32 0.0, %v2764
      %2766 = vmatmul.bf16.gmra.mxu0 %v2034
      %v2767 = vpop.f32.mrf.mxu0
      %v2768 = vadd.f32 0.0, %v2767
      %v2769 = vpop.f32.mrf.mxu0
      %v2770 = vadd.f32 0.0, %v2769
      %2771 = vmatmul.bf16.gmra.mxu0 %v2638
      %v2772 = vpop.f32.mrf.mxu0
      %v2773 = vadd.f32 0.0, %v2772
      %v2774 = vpop.f32.mrf.mxu0
      %v2775 = vadd.f32 0.0, %v2774
      %2776 = vdwg.mxu0
      %v2777 = vadd.f32 %v2579, %v2698
      %v2778 = vadd.f32 %v2580, %v2700
      %v2779 = vadd.f32 %v2581, %v2703
      %v2780 = vadd.f32 %v2582, %v2705
      %v2781 = vadd.f32 %v2583, %v2708
      %v2782 = vadd.f32 %v2584, %v2710
      %v2783 = vadd.f32 %v2585, %v2713
      %v2784 = vadd.f32 %v2586, %v2715
      %v2785 = vadd.f32 %v2587, %v2718
      %v2786 = vadd.f32 %v2588, %v2720
      %v2787 = vadd.f32 %v2589, %v2723
      %v2788 = vadd.f32 %v2590, %v2725
      %v2789 = vadd.f32 %v2591, %v2728
      %v2790 = vadd.f32 %v2592, %v2730
      %v2791 = vadd.f32 %v2593, %v2733
      %v2792 = vadd.f32 %v2594, %v2735
      %v2793 = vadd.f32 %v2595, %v2738
      %v2794 = vadd.f32 %v2596, %v2740
      %v2795 = vadd.f32 %v2597, %v2743
      %v2796 = vadd.f32 %v2598, %v2745
      %v2797 = vadd.f32 %v2599, %v2748
      %v2798 = vadd.f32 %v2600, %v2750
      %v2799 = vadd.f32 %v2601, %v2753
      %v2800 = vadd.f32 %v2602, %v2755
      %v2801 = vadd.f32 %v2603, %v2758
      %v2802 = vadd.f32 %v2604, %v2760
      %v2803 = vadd.f32 %v2605, %v2763
      %v2804 = vadd.f32 %v2606, %v2765
      %v2805 = vadd.f32 %v2607, %v2768
      %v2806 = vadd.f32 %v2608, %v2770
      %v2807 = vadd.f32 %v2609, %v2773
      %v2808 = vadd.f32 %v2610, %v2775
      %v2809 = vld [vmem:[%s2] sm:$0x1]
      %v2810 = vld [vmem:[%s3] sm:$0x1]
      %v2811 = vlaneseq
      %v2812 = vand.u32 %v2811, 127
      %vm2813 = vcmp.lt.s32.totalorder %v2812, 8
      %v2814 = vsel %vm2813, 1, 0
      %v2815 = vcvt.s32.f32 %v2814
      %v2816 = vadd.f32 %v2777, %v2778
      %v2817 = vadd.f32 %v2816, %v2779
      %v2818 = vadd.f32 %v2817, %v2780
      %v2819 = vadd.f32 %v2818, %v2781
      %v2820 = vadd.f32 %v2819, %v2782
      %v2821 = vadd.f32 %v2820, %v2783
      %v2822 = vadd.f32 %v2821, %v2784
      %v2823 = vadd.f32 %v2822, %v2785
      %v2824 = vadd.f32 %v2823, %v2786
      %v2825 = vadd.f32 %v2824, %v2787
      %v2826 = vadd.f32 %v2825, %v2788
      %v2827 = vadd.f32 %v2826, %v2789
      %v2828 = vadd.f32 %v2827, %v2790
      %v2829 = vadd.f32 %v2828, %v2791
      %v2830 = vadd.f32 %v2829, %v2792
      %v2831 = vadd.f32 %v2830, %v2793
      %v2832 = vadd.f32 %v2831, %v2794
      %v2833 = vadd.f32 %v2832, %v2795
      %v2834 = vadd.f32 %v2833, %v2796
      %v2835 = vadd.f32 %v2834, %v2797
      %v2836 = vadd.f32 %v2835, %v2798
      %v2837 = vadd.f32 %v2836, %v2799
      %v2838 = vadd.f32 %v2837, %v2800
      %v2839 = vadd.f32 %v2838, %v2801
      %v2840 = vadd.f32 %v2839, %v2802
      %v2841 = vadd.f32 %v2840, %v2803
      %v2842 = vadd.f32 %v2841, %v2804
      %v2843 = vadd.f32 %v2842, %v2805
      %v2844 = vadd.f32 %v2843, %v2806
      %v2845 = vadd.f32 %v2844, %v2807
      %v2846 = vadd.f32 %v2845, %v2808
      %2847 = vadd.xlane.f32.xlu0 %v2846
      %v2848 = vpop.xlane.xlu0 %2847
      %v2849 = vrot.slane %v2848, 4
      %v2850 = vadd.f32 %v2848, %v2849
      %v2851 = vrot.slane %v2850, 2
      %v2852 = vadd.f32 %v2850, %v2851
      %v2853 = vrot.slane %v2852, 1
      %v2854 = vadd.f32 %v2852, %v2853
      %s2855 = vtos %v2854
      %s2856 = smul.f32 %s2855, 0.00048828125
      %v2857 = vstv %s2856
      %v2858 = vmul.f32 %v2857, %v2815
      %v2859 = vsub.f32 %v2777, %v2858
      %v2860 = vsub.f32 %v2778, %v2858
      %v2861 = vsub.f32 %v2779, %v2858
      %v2862 = vsub.f32 %v2780, %v2858
      %v2863 = vsub.f32 %v2781, %v2858
      %v2864 = vsub.f32 %v2782, %v2858
      %v2865 = vsub.f32 %v2783, %v2858
      %v2866 = vsub.f32 %v2784, %v2858
      %v2867 = vsub.f32 %v2785, %v2858
      %v2868 = vsub.f32 %v2786, %v2858
      %v2869 = vsub.f32 %v2787, %v2858
      %v2870 = vsub.f32 %v2788, %v2858
      %v2871 = vsub.f32 %v2789, %v2858
      %v2872 = vsub.f32 %v2790, %v2858
      %v2873 = vsub.f32 %v2791, %v2858
      %v2874 = vsub.f32 %v2792, %v2858
      %v2875 = vsub.f32 %v2793, %v2858
      %v2876 = vsub.f32 %v2794, %v2858
      %v2877 = vsub.f32 %v2795, %v2858
      %v2878 = vsub.f32 %v2796, %v2858
      %v2879 = vsub.f32 %v2797, %v2858
      %v2880 = vsub.f32 %v2798, %v2858
      %v2881 = vsub.f32 %v2799, %v2858
      %v2882 = vsub.f32 %v2800, %v2858
      %v2883 = vsub.f32 %v2801, %v2858
      %v2884 = vsub.f32 %v2802, %v2858
      %v2885 = vsub.f32 %v2803, %v2858
      %v2886 = vsub.f32 %v2804, %v2858
      %v2887 = vsub.f32 %v2805, %v2858
      %v2888 = vsub.f32 %v2806, %v2858
      %v2889 = vsub.f32 %v2807, %v2858
      %v2890 = vsub.f32 %v2808, %v2858
      %v2891 = vmul.f32 %v2859, %v2859
      %v2892 = vmul.f32 %v2860, %v2860
      %v2893 = vmul.f32 %v2861, %v2861
      %v2894 = vmul.f32 %v2862, %v2862
      %v2895 = vmul.f32 %v2863, %v2863
      %v2896 = vmul.f32 %v2864, %v2864
      %v2897 = vmul.f32 %v2865, %v2865
      %v2898 = vmul.f32 %v2866, %v2866
      %v2899 = vmul.f32 %v2867, %v2867
      %v2900 = vmul.f32 %v2868, %v2868
      %v2901 = vmul.f32 %v2869, %v2869
      %v2902 = vmul.f32 %v2870, %v2870
      %v2903 = vmul.f32 %v2871, %v2871
      %v2904 = vmul.f32 %v2872, %v2872
      %v2905 = vmul.f32 %v2873, %v2873
      %v2906 = vmul.f32 %v2874, %v2874
      %v2907 = vmul.f32 %v2875, %v2875
      %v2908 = vmul.f32 %v2876, %v2876
      %v2909 = vmul.f32 %v2877, %v2877
      %v2910 = vmul.f32 %v2878, %v2878
      %v2911 = vmul.f32 %v2879, %v2879
      %v2912 = vmul.f32 %v2880, %v2880
      %v2913 = vmul.f32 %v2881, %v2881
      %v2914 = vmul.f32 %v2882, %v2882
      %v2915 = vmul.f32 %v2883, %v2883
      %v2916 = vmul.f32 %v2884, %v2884
      %v2917 = vmul.f32 %v2885, %v2885
      %v2918 = vmul.f32 %v2886, %v2886
      %v2919 = vmul.f32 %v2887, %v2887
      %v2920 = vmul.f32 %v2888, %v2888
      %v2921 = vmul.f32 %v2889, %v2889
      %v2922 = vmul.f32 %v2890, %v2890
      %v2923 = vadd.f32 %v2891, %v2892
      %v2924 = vadd.f32 %v2923, %v2893
      %v2925 = vadd.f32 %v2924, %v2894
      %v2926 = vadd.f32 %v2925, %v2895
      %v2927 = vadd.f32 %v2926, %v2896
      %v2928 = vadd.f32 %v2927, %v2897
      %v2929 = vadd.f32 %v2928, %v2898
      %v2930 = vadd.f32 %v2929, %v2899
      %v2931 = vadd.f32 %v2930, %v2900
      %v2932 = vadd.f32 %v2931, %v2901
      %v2933 = vadd.f32 %v2932, %v2902
      %v2934 = vadd.f32 %v2933, %v2903
      %v2935 = vadd.f32 %v2934, %v2904
      %v2936 = vadd.f32 %v2935, %v2905
      %v2937 = vadd.f32 %v2936, %v2906
      %v2938 = vadd.f32 %v2937, %v2907
      %v2939 = vadd.f32 %v2938, %v2908
      %v2940 = vadd.f32 %v2939, %v2909
      %v2941 = vadd.f32 %v2940, %v2910
      %v2942 = vadd.f32 %v2941, %v2911
      %v2943 = vadd.f32 %v2942, %v2912
      %v2944 = vadd.f32 %v2943, %v2913
      %v2945 = vadd.f32 %v2944, %v2914
      %v2946 = vadd.f32 %v2945, %v2915
      %v2947 = vadd.f32 %v2946, %v2916
      %v2948 = vadd.f32 %v2947, %v2917
      %v2949 = vadd.f32 %v2948, %v2918
      %v2950 = vadd.f32 %v2949, %v2919
      %v2951 = vadd.f32 %v2950, %v2920
      %v2952 = vadd.f32 %v2951, %v2921
      %v2953 = vadd.f32 %v2952, %v2922
      %2954 = vadd.xlane.f32.xlu0 %v2953
      %v2955 = vpop.xlane.xlu0 %2954
      %v2956 = vrot.slane %v2955, 4
      %v2957 = vadd.f32 %v2955, %v2956
      %v2958 = vrot.slane %v2957, 2
      %v2959 = vadd.f32 %v2957, %v2958
      %v2960 = vrot.slane %v2959, 1
      %v2961 = vadd.f32 %v2959, %v2960
      %s2962 = vtos %v2961
      %s2963 = smul.f32 %s2962, 0.00048828125
      %s2964 = sadd.f32 %s2963, 1e-05
      %v2965 = vstv %s2964
      %v2966 = vrsqrt.pop %v2965
      %v2967 = vmul.f32 %v2966, %v2965
      %v2968 = vmul.f32 %v2967, %v2966
      %v2969 = vmul.f32 0.5, %v2968
      %v2970 = vsub.f32 1.5, %v2969
      %v2971 = vmul.f32 %v2966, %v2970
      %vm2972 = vweird.f32 %v2965
      %vm2973 = vweird.f32 %v2966
      %vm2974 = vmor %vm2972, %vm2973
      %v2975 = vsel %vm2974, %v2966, %v2971
      %s2976 = vtos %v2975
      %v2977 = vstv %s2976
      %v2978 = vmul.f32 %v2809, %v2977
      %v2980 = vperm.slane %v2978, 0
      %v2982 = vmul.f32 %v2859, %v2980
      %v2983 = vmul.f32 %v2860, %v2980
      %v2984 = vmul.f32 %v2861, %v2980
      %v2985 = vmul.f32 %v2862, %v2980
      %v2986 = vmul.f32 %v2863, %v2980
      %v2987 = vmul.f32 %v2864, %v2980
      %v2988 = vmul.f32 %v2865, %v2980
      %v2989 = vmul.f32 %v2866, %v2980
      %v2990 = vmul.f32 %v2867, %v2980
      %v2991 = vmul.f32 %v2868, %v2980
      %v2992 = vmul.f32 %v2869, %v2980
      %v2993 = vmul.f32 %v2870, %v2980
      %v2994 = vmul.f32 %v2871, %v2980
      %v2995 = vmul.f32 %v2872, %v2980
      %v2996 = vmul.f32 %v2873, %v2980
      %v2997 = vmul.f32 %v2874, %v2980
      %v2998 = vmul.f32 %v2875, %v2980
      %v2999 = vmul.f32 %v2876, %v2980
      %v3000 = vmul.f32 %v2877, %v2980
      %v3001 = vmul.f32 %v2878, %v2980
      %v3002 = vmul.f32 %v2879, %v2980
      %v3003 = vmul.f32 %v2880, %v2980
      %v3004 = vmul.f32 %v2881, %v2980
      %v3005 = vmul.f32 %v2882, %v2980
      %v3006 = vmul.f32 %v2883, %v2980
      %v3007 = vmul.f32 %v2884, %v2980
      %v3008 = vmul.f32 %v2885, %v2980
      %v3009 = vmul.f32 %v2886, %v2980
      %v3010 = vmul.f32 %v2887, %v2980
      %v3011 = vmul.f32 %v2888, %v2980
      %v3012 = vmul.f32 %v2889, %v2980
      %v3013 = vmul.f32 %v2890, %v2980
      %v3015 = vperm.slane %v2810, 0
      %v3017 = vadd.f32 %v2982, %v3015
      %v3018 = vadd.f32 %v2983, %v3015
      %v3019 = vadd.f32 %v2984, %v3015
      %v3020 = vadd.f32 %v2985, %v3015
      %v3021 = vadd.f32 %v2986, %v3015
      %v3022 = vadd.f32 %v2987, %v3015
      %v3023 = vadd.f32 %v2988, %v3015
      %v3024 = vadd.f32 %v2989, %v3015
      %v3025 = vadd.f32 %v2990, %v3015
      %v3026 = vadd.f32 %v2991, %v3015
      %v3027 = vadd.f32 %v2992, %v3015
      %v3028 = vadd.f32 %v2993, %v3015
      %v3029 = vadd.f32 %v2994, %v3015
      %v3030 = vadd.f32 %v2995, %v3015
      %v3031 = vadd.f32 %v2996, %v3015
      %v3032 = vadd.f32 %v2997, %v3015
      %v3033 = vadd.f32 %v2998, %v3015
      %v3034 = vadd.f32 %v2999, %v3015
      %v3035 = vadd.f32 %v3000, %v3015
      %v3036 = vadd.f32 %v3001, %v3015
      %v3037 = vadd.f32 %v3002, %v3015
      %v3038 = vadd.f32 %v3003, %v3015
      %v3039 = vadd.f32 %v3004, %v3015
      %v3040 = vadd.f32 %v3005, %v3015
      %v3041 = vadd.f32 %v3006, %v3015
      %v3042 = vadd.f32 %v3007, %v3015
      %v3043 = vadd.f32 %v3008, %v3015
      %v3044 = vadd.f32 %v3009, %v3015
      %v3045 = vadd.f32 %v3010, %v3015
      %v3046 = vadd.f32 %v3011, %v3015
      %v3047 = vadd.f32 %v3012, %v3015
      %v3048 = vadd.f32 %v3013, %v3015
      %v3049 = vmul.f32 %v3017, 0.5
      %v3050 = vmul.f32 %v3018, 0.5
      %v3051 = vmul.f32 %v3019, 0.5
      %v3052 = vmul.f32 %v3020, 0.5
      %v3053 = vmul.f32 %v3021, 0.5
      %v3054 = vmul.f32 %v3022, 0.5
      %v3055 = vmul.f32 %v3023, 0.5
      %v3056 = vmul.f32 %v3024, 0.5
      %v3057 = vmul.f32 %v3025, 0.5
      %v3058 = vmul.f32 %v3026, 0.5
      %v3059 = vmul.f32 %v3027, 0.5
      %v3060 = vmul.f32 %v3028, 0.5
      %v3061 = vmul.f32 %v3029, 0.5
      %v3062 = vmul.f32 %v3030, 0.5
      %v3063 = vmul.f32 %v3031, 0.5
      %v3064 = vmul.f32 %v3032, 0.5
      %v3065 = vmul.f32 %v3033, 0.5
      %v3066 = vmul.f32 %v3034, 0.5
      %v3067 = vmul.f32 %v3035, 0.5
      %v3068 = vmul.f32 %v3036, 0.5
      %v3069 = vmul.f32 %v3037, 0.5
      %v3070 = vmul.f32 %v3038, 0.5
      %v3071 = vmul.f32 %v3039, 0.5
      %v3072 = vmul.f32 %v3040, 0.5
      %v3073 = vmul.f32 %v3041, 0.5
      %v3074 = vmul.f32 %v3042, 0.5
      %v3075 = vmul.f32 %v3043, 0.5
      %v3076 = vmul.f32 %v3044, 0.5
      %v3077 = vmul.f32 %v3045, 0.5
      %v3078 = vmul.f32 %v3046, 0.5
      %v3079 = vmul.f32 %v3047, 0.5
      %v3080 = vmul.f32 %v3048, 0.5
      %v3081 = vmul.f32 %v3017, 0.044715
      %v3082 = vmul.f32 %v3018, 0.044715
      %v3083 = vmul.f32 %v3019, 0.044715
      %v3084 = vmul.f32 %v3020, 0.044715
      %v3085 = vmul.f32 %v3021, 0.044715
      %v3086 = vmul.f32 %v3022, 0.044715
      %v3087 = vmul.f32 %v3023, 0.044715
      %v3088 = vmul.f32 %v3024, 0.044715
      %v3089 = vmul.f32 %v3025, 0.044715
      %v3090 = vmul.f32 %v3026, 0.044715
      %v3091 = vmul.f32 %v3027, 0.044715
      %v3092 = vmul.f32 %v3028, 0.044715
      %v3093 = vmul.f32 %v3029, 0.044715
      %v3094 = vmul.f32 %v3030, 0.044715
      %v3095 = vmul.f32 %v3031, 0.044715
      %v3096 = vmul.f32 %v3032, 0.044715
      %v3097 = vmul.f32 %v3033, 0.044715
      %v3098 = vmul.f32 %v3034, 0.044715
      %v3099 = vmul.f32 %v3035, 0.044715
      %v3100 = vmul.f32 %v3036, 0.044715
      %v3101 = vmul.f32 %v3037, 0.044715
      %v3102 = vmul.f32 %v3038, 0.044715
      %v3103 = vmul.f32 %v3039, 0.044715
      %v3104 = vmul.f32 %v3040, 0.044715
      %v3105 = vmul.f32 %v3041, 0.044715
      %v3106 = vmul.f32 %v3042, 0.044715
      %v3107 = vmul.f32 %v3043, 0.044715
      %v3108 = vmul.f32 %v3044, 0.044715
      %v3109 = vmul.f32 %v3045, 0.044715
      %v3110 = vmul.f32 %v3046, 0.044715
      %v3111 = vmul.f32 %v3047, 0.044715
      %v3112 = vmul.f32 %v3048, 0.044715
      %v3113 = vmul.f32 %v3081, %v3017
      %v3114 = vmul.f32 %v3082, %v3018
      %v3115 = vmul.f32 %v3083, %v3019
      %v3116 = vmul.f32 %v3084, %v3020
      %v3117 = vmul.f32 %v3085, %v3021
      %v3118 = vmul.f32 %v3086, %v3022
      %v3119 = vmul.f32 %v3087, %v3023
      %v3120 = vmul.f32 %v3088, %v3024
      %v3121 = vmul.f32 %v3089, %v3025
      %v3122 = vmul.f32 %v3090, %v3026
      %v3123 = vmul.f32 %v3091, %v3027
      %v3124 = vmul.f32 %v3092, %v3028
      %v3125 = vmul.f32 %v3093, %v3029
      %v3126 = vmul.f32 %v3094, %v3030
      %v3127 = vmul.f32 %v3095, %v3031
      %v3128 = vmul.f32 %v3096, %v3032
      %v3129 = vmul.f32 %v3097, %v3033
      %v3130 = vmul.f32 %v3098, %v3034
      %v3131 = vmul.f32 %v3099, %v3035
      %v3132 = vmul.f32 %v3100, %v3036
      %v3133 = vmul.f32 %v3101, %v3037
      %v3134 = vmul.f32 %v3102, %v3038
      %v3135 = vmul.f32 %v3103, %v3039
      %v3136 = vmul.f32 %v3104, %v3040
      %v3137 = vmul.f32 %v3105, %v3041
      %v3138 = vmul.f32 %v3106, %v3042
      %v3139 = vmul.f32 %v3107, %v3043
      %v3140 = vmul.f32 %v3108, %v3044
      %v3141 = vmul.f32 %v3109, %v3045
      %v3142 = vmul.f32 %v3110, %v3046
      %v3143 = vmul.f32 %v3111, %v3047
      %v3144 = vmul.f32 %v3112, %v3048
      %v3145 = vmul.f32 %v3113, %v3017
      %v3146 = vmul.f32 %v3114, %v3018
      %v3147 = vmul.f32 %v3115, %v3019
      %v3148 = vmul.f32 %v3116, %v3020
      %v3149 = vmul.f32 %v3117, %v3021
      %v3150 = vmul.f32 %v3118, %v3022
      %v3151 = vmul.f32 %v3119, %v3023
      %v3152 = vmul.f32 %v3120, %v3024
      %v3153 = vmul.f32 %v3121, %v3025
      %v3154 = vmul.f32 %v3122, %v3026
      %v3155 = vmul.f32 %v3123, %v3027
      %v3156 = vmul.f32 %v3124, %v3028
      %v3157 = vmul.f32 %v3125, %v3029
      %v3158 = vmul.f32 %v3126, %v3030
      %v3159 = vmul.f32 %v3127, %v3031
      %v3160 = vmul.f32 %v3128, %v3032
      %v3161 = vmul.f32 %v3129, %v3033
      %v3162 = vmul.f32 %v3130, %v3034
      %v3163 = vmul.f32 %v3131, %v3035
      %v3164 = vmul.f32 %v3132, %v3036
      %v3165 = vmul.f32 %v3133, %v3037
      %v3166 = vmul.f32 %v3134, %v3038
      %v3167 = vmul.f32 %v3135, %v3039
      %v3168 = vmul.f32 %v3136, %v3040
      %v3169 = vmul.f32 %v3137, %v3041
      %v3170 = vmul.f32 %v3138, %v3042
      %v3171 = vmul.f32 %v3139, %v3043
      %v3172 = vmul.f32 %v3140, %v3044
      %v3173 = vmul.f32 %v3141, %v3045
      %v3174 = vmul.f32 %v3142, %v3046
      %v3175 = vmul.f32 %v3143, %v3047
      %v3176 = vmul.f32 %v3144, %v3048
      %v3177 = vadd.f32 %v3017, %v3145
      %v3178 = vadd.f32 %v3018, %v3146
      %v3179 = vadd.f32 %v3019, %v3147
      %v3180 = vadd.f32 %v3020, %v3148
      %v3181 = vadd.f32 %v3021, %v3149
      %v3182 = vadd.f32 %v3022, %v3150
      %v3183 = vadd.f32 %v3023, %v3151
      %v3184 = vadd.f32 %v3024, %v3152
      %v3185 = vadd.f32 %v3025, %v3153
      %v3186 = vadd.f32 %v3026, %v3154
      %v3187 = vadd.f32 %v3027, %v3155
      %v3188 = vadd.f32 %v3028, %v3156
      %v3189 = vadd.f32 %v3029, %v3157
      %v3190 = vadd.f32 %v3030, %v3158
      %v3191 = vadd.f32 %v3031, %v3159
      %v3192 = vadd.f32 %v3032, %v3160
      %v3193 = vadd.f32 %v3033, %v3161
      %v3194 = vadd.f32 %v3034, %v3162
      %v3195 = vadd.f32 %v3035, %v3163
      %v3196 = vadd.f32 %v3036, %v3164
      %v3197 = vadd.f32 %v3037, %v3165
      %v3198 = vadd.f32 %v3038, %v3166
      %v3199 = vadd.f32 %v3039, %v3167
      %v3200 = vadd.f32 %v3040, %v3168
      %v3201 = vadd.f32 %v3041, %v3169
      %v3202 = vadd.f32 %v3042, %v3170
      %v3203 = vadd.f32 %v3043, %v3171
      %v3204 = vadd.f32 %v3044, %v3172
      %v3205 = vadd.f32 %v3045, %v3173
      %v3206 = vadd.f32 %v3046, %v3174
      %v3207 = vadd.f32 %v3047, %v3175
      %v3208 = vadd.f32 %v3048, %v3176
      %v3209 = vmul.f32 %v3177, 0.7978846
      %v3210 = vmul.f32 %v3178, 0.7978846
      %v3211 = vmul.f32 %v3179, 0.7978846
      %v3212 = vmul.f32 %v3180, 0.7978846
      %v3213 = vmul.f32 %v3181, 0.7978846
      %v3214 = vmul.f32 %v3182, 0.7978846
      %v3215 = vmul.f32 %v3183, 0.7978846
      %v3216 = vmul.f32 %v3184, 0.7978846
      %v3217 = vmul.f32 %v3185, 0.7978846
      %v3218 = vmul.f32 %v3186, 0.7978846
      %v3219 = vmul.f32 %v3187, 0.7978846
      %v3220 = vmul.f32 %v3188, 0.7978846
      %v3221 = vmul.f32 %v3189, 0.7978846
      %v3222 = vmul.f32 %v3190, 0.7978846
      %v3223 = vmul.f32 %v3191, 0.7978846
      %v3224 = vmul.f32 %v3192, 0.7978846
      %v3225 = vmul.f32 %v3193, 0.7978846
      %v3226 = vmul.f32 %v3194, 0.7978846
      %v3227 = vmul.f32 %v3195, 0.7978846
      %v3228 = vmul.f32 %v3196, 0.7978846
      %v3229 = vmul.f32 %v3197, 0.7978846
      %v3230 = vmul.f32 %v3198, 0.7978846
      %v3231 = vmul.f32 %v3199, 0.7978846
      %v3232 = vmul.f32 %v3200, 0.7978846
      %v3233 = vmul.f32 %v3201, 0.7978846
      %v3234 = vmul.f32 %v3202, 0.7978846
      %v3235 = vmul.f32 %v3203, 0.7978846
      %v3236 = vmul.f32 %v3204, 0.7978846
      %v3237 = vmul.f32 %v3205, 0.7978846
      %v3238 = vmul.f32 %v3206, 0.7978846
      %v3239 = vmul.f32 %v3207, 0.7978846
      %v3240 = vmul.f32 %v3208, 0.7978846
      %v3241 = vtanh.pop %v3209
      %v3242 = vtanh.pop %v3210
      %v3243 = vtanh.pop %v3211
      %v3244 = vtanh.pop %v3212
      %v3245 = vtanh.pop %v3213
      %v3246 = vtanh.pop %v3214
      %v3247 = vtanh.pop %v3215
      %v3248 = vtanh.pop %v3216
      %v3249 = vtanh.pop %v3217
      %v3250 = vtanh.pop %v3218
      %v3251 = vtanh.pop %v3219
      %v3252 = vtanh.pop %v3220
      %v3253 = vtanh.pop %v3221
      %v3254 = vtanh.pop %v3222
      %v3255 = vtanh.pop %v3223
      %v3256 = vtanh.pop %v3224
      %v3257 = vtanh.pop %v3225
      %v3258 = vtanh.pop %v3226
      %v3259 = vtanh.pop %v3227
      %v3260 = vtanh.pop %v3228
      %v3261 = vtanh.pop %v3229
      %v3262 = vtanh.pop %v3230
      %v3263 = vtanh.pop %v3231
      %v3264 = vtanh.pop %v3232
      %v3265 = vtanh.pop %v3233
      %v3266 = vtanh.pop %v3234
      %v3267 = vtanh.pop %v3235
      %v3268 = vtanh.pop %v3236
      %v3269 = vtanh.pop %v3237
      %v3270 = vtanh.pop %v3238
      %v3271 = vtanh.pop %v3239
      %v3272 = vtanh.pop %v3240
      %v3273 = vadd.f32 %v3241, 1.0
      %v3274 = vadd.f32 %v3242, 1.0
      %v3275 = vadd.f32 %v3243, 1.0
      %v3276 = vadd.f32 %v3244, 1.0
      %v3277 = vadd.f32 %v3245, 1.0
      %v3278 = vadd.f32 %v3246, 1.0
      %v3279 = vadd.f32 %v3247, 1.0
      %v3280 = vadd.f32 %v3248, 1.0
      %v3281 = vadd.f32 %v3249, 1.0
      %v3282 = vadd.f32 %v3250, 1.0
      %v3283 = vadd.f32 %v3251, 1.0
      %v3284 = vadd.f32 %v3252, 1.0
      %v3285 = vadd.f32 %v3253, 1.0
      %v3286 = vadd.f32 %v3254, 1.0
      %v3287 = vadd.f32 %v3255, 1.0
      %v3288 = vadd.f32 %v3256, 1.0
      %v3289 = vadd.f32 %v3257, 1.0
      %v3290 = vadd.f32 %v3258, 1.0
      %v3291 = vadd.f32 %v3259, 1.0
      %v3292 = vadd.f32 %v3260, 1.0
      %v3293 = vadd.f32 %v3261, 1.0
      %v3294 = vadd.f32 %v3262, 1.0
      %v3295 = vadd.f32 %v3263, 1.0
      %v3296 = vadd.f32 %v3264, 1.0
      %v3297 = vadd.f32 %v3265, 1.0
      %v3298 = vadd.f32 %v3266, 1.0
      %v3299 = vadd.f32 %v3267, 1.0
      %v3300 = vadd.f32 %v3268, 1.0
      %v3301 = vadd.f32 %v3269, 1.0
      %v3302 = vadd.f32 %v3270, 1.0
      %v3303 = vadd.f32 %v3271, 1.0
      %v3304 = vadd.f32 %v3272, 1.0
      %v3305 = vmul.f32 %v3049, %v3273
      %v3306 = vmul.f32 %v3050, %v3274
      %v3307 = vmul.f32 %v3051, %v3275
      %v3308 = vmul.f32 %v3052, %v3276
      %v3309 = vmul.f32 %v3053, %v3277
      %v3310 = vmul.f32 %v3054, %v3278
      %v3311 = vmul.f32 %v3055, %v3279
      %v3312 = vmul.f32 %v3056, %v3280
      %v3313 = vmul.f32 %v3057, %v3281
      %v3314 = vmul.f32 %v3058, %v3282
      %v3315 = vmul.f32 %v3059, %v3283
      %v3316 = vmul.f32 %v3060, %v3284
      %v3317 = vmul.f32 %v3061, %v3285
      %v3318 = vmul.f32 %v3062, %v3286
      %v3319 = vmul.f32 %v3063, %v3287
      %v3320 = vmul.f32 %v3064, %v3288
      %v3321 = vmul.f32 %v3065, %v3289
      %v3322 = vmul.f32 %v3066, %v3290
      %v3323 = vmul.f32 %v3067, %v3291
      %v3324 = vmul.f32 %v3068, %v3292
      %v3325 = vmul.f32 %v3069, %v3293
      %v3326 = vmul.f32 %v3070, %v3294
      %v3327 = vmul.f32 %v3071, %v3295
      %v3328 = vmul.f32 %v3072, %v3296
      %v3329 = vmul.f32 %v3073, %v3297
      %v3330 = vmul.f32 %v3074, %v3298
      %v3331 = vmul.f32 %v3075, %v3299
      %v3332 = vmul.f32 %v3076, %v3300
      %v3333 = vmul.f32 %v3077, %v3301
      %v3334 = vmul.f32 %v3078, %v3302
      %v3335 = vmul.f32 %v3079, %v3303
      %v3336 = vmul.f32 %v3080, %v3304
      %3337 = vst [vmem:[#allocation2] sm:$0xf] 0
      %3338 = vst [vmem:[#allocation2 + $0x4] sm:$0xf] 0
      %3339 = vst [vmem:[#allocation2 + $0x8] sm:$0xf] 0
      %3340 = vst [vmem:[#allocation2 + $0xc] sm:$0xf] 0
      %s3341 = scalar_lea.vmem [#allocation2], 272
      %3342 = vst [vmem:[%s3341] sm:$0xf] 0
      %3343 = vst [vmem:[%s3341 + $0x4] sm:$0xf] 0
      %3344 = vst [vmem:[%s3341 + $0x8] sm:$0xf] 0
      %3345 = vst [vmem:[%s3341 + $0xc] sm:$0xf] 0
      %s3346 = scalar_lea.vmem [#allocation2], 16
      %3347 = vst [vmem:[%s3346] sm:$0xf] 0
      %3348 = vst [vmem:[%s3346 + $0x10] sm:$0xf] 0
      %3349 = vst [vmem:[%s3346 + $0x20] sm:$0xf] 0
      %3350 = vst [vmem:[%s3346 + $0x30] sm:$0xf] 0
      %3351 = vst [vmem:[%s3346 + $0x40] sm:$0xf] 0
      %3352 = vst [vmem:[%s3346 + $0x50] sm:$0xf] 0
      %3353 = vst [vmem:[%s3346 + $0x60] sm:$0xf] 0
      %3354 = vst [vmem:[%s3346 + $0x70] sm:$0xf] 0
      %3355 = vst [vmem:[%s3346 + $0x80] sm:$0xf] 0
      %3356 = vst [vmem:[%s3346 + $0x90] sm:$0xf] 0
      %3357 = vst [vmem:[%s3346 + $0xa0] sm:$0xf] 0
      %3358 = vst [vmem:[%s3346 + $0xb0] sm:$0xf] 0
      %3359 = vst [vmem:[%s3346 + $0xc0] sm:$0xf] 0
      %3360 = vst [vmem:[%s3346 + $0xd0] sm:$0xf] 0
      %3361 = vst [vmem:[%s3346 + $0xe0] sm:$0xf] 0
      %3362 = vst [vmem:[%s3346 + $0xf0] sm:$0xf] 0
      %3363 = vst [vmem:[%s3346 + $0xc] sm:$0xf] 0
      %3364 = vst [vmem:[%s3346 + $0x1c] sm:$0xf] 0
      %3365 = vst [vmem:[%s3346 + $0x2c] sm:$0xf] 0
      %3366 = vst [vmem:[%s3346 + $0x3c] sm:$0xf] 0
      %3367 = vst [vmem:[%s3346 + $0x4c] sm:$0xf] 0
      %3368 = vst [vmem:[%s3346 + $0x5c] sm:$0xf] 0
      %3369 = vst [vmem:[%s3346 + $0x6c] sm:$0xf] 0
      %3370 = vst [vmem:[%s3346 + $0x7c] sm:$0xf] 0
      %3371 = vst [vmem:[%s3346 + $0x8c] sm:$0xf] 0
      %3372 = vst [vmem:[%s3346 + $0x9c] sm:$0xf] 0
      %3373 = vst [vmem:[%s3346 + $0xac] sm:$0xf] 0
      %3374 = vst [vmem:[%s3346 + $0xbc] sm:$0xf] 0
      %3375 = vst [vmem:[%s3346 + $0xcc] sm:$0xf] 0
      %3376 = vst [vmem:[%s3346 + $0xdc] sm:$0xf] 0
      %3377 = vst [vmem:[%s3346 + $0xec] sm:$0xf] 0
      %3378 = vst [vmem:[%s3346 + $0xfc] sm:$0xf] 0
      %v3379 = vpack.c.bf16 %v3305, %v3305
      %v3380 = vpack.c.bf16 %v3306, %v3306
      %v3381 = vpack.c.bf16 %v3307, %v3307
      %v3382 = vpack.c.bf16 %v3308, %v3308
      %v3383 = vpack.c.bf16 %v3309, %v3309
      %v3384 = vpack.c.bf16 %v3310, %v3310
      %v3385 = vpack.c.bf16 %v3311, %v3311
      %v3386 = vpack.c.bf16 %v3312, %v3312
      %v3387 = vpack.c.bf16 %v3313, %v3313
      %v3388 = vpack.c.bf16 %v3314, %v3314
      %v3389 = vpack.c.bf16 %v3315, %v3315
      %v3390 = vpack.c.bf16 %v3316, %v3316
      %v3391 = vpack.c.bf16 %v3317, %v3317
      %v3392 = vpack.c.bf16 %v3318, %v3318
      %v3393 = vpack.c.bf16 %v3319, %v3319
      %v3394 = vpack.c.bf16 %v3320, %v3320
      %v3395 = vpack.c.bf16 %v3321, %v3321
      %v3396 = vpack.c.bf16 %v3322, %v3322
      %v3397 = vpack.c.bf16 %v3323, %v3323
      %v3398 = vpack.c.bf16 %v3324, %v3324
      %v3399 = vpack.c.bf16 %v3325, %v3325
      %v3400 = vpack.c.bf16 %v3326, %v3326
      %v3401 = vpack.c.bf16 %v3327, %v3327
      %v3402 = vpack.c.bf16 %v3328, %v3328
      %v3403 = vpack.c.bf16 %v3329, %v3329
      %v3404 = vpack.c.bf16 %v3330, %v3330
      %v3405 = vpack.c.bf16 %v3331, %v3331
      %v3406 = vpack.c.bf16 %v3332, %v3332
      %v3407 = vpack.c.bf16 %v3333, %v3333
      %v3408 = vpack.c.bf16 %v3334, %v3334
      %v3409 = vpack.c.bf16 %v3335, %v3335
      %v3410 = vpack.c.bf16 %v3336, %v3336
      %3411 = vst [vmem:[%s3346 + $0x4] sm:$0xf] %v3379
      %3412 = vst [vmem:[%s3346 + $0x8] sm:$0xf] %v3380
      %3413 = vst [vmem:[%s3346 + $0x14] sm:$0xf] %v3381
      %3414 = vst [vmem:[%s3346 + $0x18] sm:$0xf] %v3382
      %3415 = vst [vmem:[%s3346 + $0x24] sm:$0xf] %v3383
      %3416 = vst [vmem:[%s3346 + $0x28] sm:$0xf] %v3384
      %3417 = vst [vmem:[%s3346 + $0x34] sm:$0xf] %v3385
      %3418 = vst [vmem:[%s3346 + $0x38] sm:$0xf] %v3386
      %3419 = vst [vmem:[%s3346 + $0x44] sm:$0xf] %v3387
      %3420 = vst [vmem:[%s3346 + $0x48] sm:$0xf] %v3388
      %3421 = vst [vmem:[%s3346 + $0x54] sm:$0xf] %v3389
      %3422 = vst [vmem:[%s3346 + $0x58] sm:$0xf] %v3390
      %3423 = vst [vmem:[%s3346 + $0x64] sm:$0xf] %v3391
      %3424 = vst [vmem:[%s3346 + $0x68] sm:$0xf] %v3392
      %3425 = vst [vmem:[%s3346 + $0x74] sm:$0xf] %v3393
      %3426 = vst [vmem:[%s3346 + $0x78] sm:$0xf] %v3394
      %3427 = vst [vmem:[%s3346 + $0x84] sm:$0xf] %v3395
      %3428 = vst [vmem:[%s3346 + $0x88] sm:$0xf] %v3396
      %3429 = vst [vmem:[%s3346 + $0x94] sm:$0xf] %v3397
      %3430 = vst [vmem:[%s3346 + $0x98] sm:$0xf] %v3398
      %3431 = vst [vmem:[%s3346 + $0xa4] sm:$0xf] %v3399
      %3432 = vst [vmem:[%s3346 + $0xa8] sm:$0xf] %v3400
      %3433 = vst [vmem:[%s3346 + $0xb4] sm:$0xf] %v3401
      %3434 = vst [vmem:[%s3346 + $0xb8] sm:$0xf] %v3402
      %3435 = vst [vmem:[%s3346 + $0xc4] sm:$0xf] %v3403
      %3436 = vst [vmem:[%s3346 + $0xc8] sm:$0xf] %v3404
      %3437 = vst [vmem:[%s3346 + $0xd4] sm:$0xf] %v3405
      %3438 = vst [vmem:[%s3346 + $0xd8] sm:$0xf] %v3406
      %3439 = vst [vmem:[%s3346 + $0xe4] sm:$0xf] %v3407
      %3440 = vst [vmem:[%s3346 + $0xe8] sm:$0xf] %v3408
      %3441 = vst [vmem:[%s3346 + $0xf4] sm:$0xf] %v3409
      %3442 = vst [vmem:[%s3346 + $0xf8] sm:$0xf] %v3410
      %v3443 = vld [vmem:[#allocation2] sm:$0xf]
      %v3444 = vld [vmem:[#allocation2 + $0x4] sm:$0xf]
      %v3445 = vld [vmem:[#allocation2 + $0x8] sm:$0xf]
      %v3446 = vld [vmem:[#allocation2 + $0xc] sm:$0xf]
      %v3447 = vld [vmem:[#allocation2 + $0x10] sm:$0xf]
      %v3448 = vld [vmem:[#allocation2 + $0x14] sm:$0xf]
      %v3449 = vld [vmem:[#allocation2 + $0x18] sm:$0xf]
      %v3450 = vld [vmem:[#allocation2 + $0x1c] sm:$0xf]
      %v3451 = vld [vmem:[#allocation2 + $0x20] sm:$0xf]
      %v3452 = vld [vmem:[#allocation2 + $0x24] sm:$0xf]
      %v3453 = vld [vmem:[#allocation2 + $0x28] sm:$0xf]
      %v3454 = vld [vmem:[#allocation2 + $0x2c] sm:$0xf]
      %v3455 = vld [vmem:[#allocation2 + $0x30] sm:$0xf]
      %v3456 = vld [vmem:[#allocation2 + $0x34] sm:$0xf]
      %v3457 = vld [vmem:[#allocation2 + $0x38] sm:$0xf]
      %v3458 = vld [vmem:[#allocation2 + $0x3c] sm:$0xf]
      %v3459 = vld [vmem:[#allocation2 + $0x40] sm:$0xf]
      %v3460 = vld [vmem:[#allocation2 + $0x44] sm:$0xf]
      %v3461 = vld [vmem:[#allocation2 + $0x48] sm:$0xf]
      %v3462 = vld [vmem:[#allocation2 + $0x4c] sm:$0xf]
      %v3463 = vld [vmem:[#allocation2 + $0x50] sm:$0xf]
      %v3464 = vld [vmem:[#allocation2 + $0x54] sm:$0xf]
      %v3465 = vld [vmem:[#allocation2 + $0x58] sm:$0xf]
      %v3466 = vld [vmem:[#allocation2 + $0x5c] sm:$0xf]
      %v3467 = vld [vmem:[#allocation2 + $0x60] sm:$0xf]
      %v3468 = vld [vmem:[#allocation2 + $0x64] sm:$0xf]
      %v3469 = vld [vmem:[#allocation2 + $0x68] sm:$0xf]
      %v3470 = vld [vmem:[#allocation2 + $0x6c] sm:$0xf]
      %v3471 = vld [vmem:[#allocation2 + $0x70] sm:$0xf]
      %v3472 = vld [vmem:[#allocation2 + $0x74] sm:$0xf]
      %v3473 = vld [vmem:[#allocation2 + $0x78] sm:$0xf]
      %v3474 = vld [vmem:[#allocation2 + $0x7c] sm:$0xf]
      %v3475 = vld [vmem:[#allocation2 + $0x80] sm:$0xf]
      %v3476 = vld [vmem:[#allocation2 + $0x84] sm:$0xf]
      %v3477 = vld [vmem:[#allocation2 + $0x88] sm:$0xf]
      %v3478 = vld [vmem:[#allocation2 + $0x8c] sm:$0xf]
      %v3479 = vld [vmem:[#allocation2 + $0x90] sm:$0xf]
      %v3480 = vld [vmem:[#allocation2 + $0x94] sm:$0xf]
      %v3481 = vld [vmem:[#allocation2 + $0x98] sm:$0xf]
      %v3482 = vld [vmem:[#allocation2 + $0x9c] sm:$0xf]
      %v3483 = vld [vmem:[#allocation2 + $0xa0] sm:$0xf]
      %v3484 = vld [vmem:[#allocation2 + $0xa4] sm:$0xf]
      %v3485 = vld [vmem:[#allocation2 + $0xa8] sm:$0xf]
      %v3486 = vld [vmem:[#allocation2 + $0xac] sm:$0xf]
      %v3487 = vld [vmem:[#allocation2 + $0xb0] sm:$0xf]
      %v3488 = vld [vmem:[#allocation2 + $0xb4] sm:$0xf]
      %v3489 = vld [vmem:[#allocation2 + $0xb8] sm:$0xf]
      %v3490 = vld [vmem:[#allocation2 + $0xbc] sm:$0xf]
      %v3491 = vld [vmem:[#allocation2 + $0xc0] sm:$0xf]
      %v3492 = vld [vmem:[#allocation2 + $0xc4] sm:$0xf]
      %v3493 = vld [vmem:[#allocation2 + $0xc8] sm:$0xf]
      %v3494 = vld [vmem:[#allocation2 + $0xcc] sm:$0xf]
      %v3495 = vld [vmem:[#allocation2 + $0xd0] sm:$0xf]
      %v3496 = vld [vmem:[#allocation2 + $0xd4] sm:$0xf]
      %v3497 = vld [vmem:[#allocation2 + $0xd8] sm:$0xf]
      %v3498 = vld [vmem:[#allocation2 + $0xdc] sm:$0xf]
      %v3499 = vld [vmem:[#allocation2 + $0xe0] sm:$0xf]
      %v3500 = vld [vmem:[#allocation2 + $0xe4] sm:$0xf]
      %v3501 = vld [vmem:[#allocation2 + $0xe8] sm:$0xf]
      %v3502 = vld [vmem:[#allocation2 + $0xec] sm:$0xf]
      %v3503 = vld [vmem:[#allocation2 + $0xf0] sm:$0xf]
      %v3504 = vld [vmem:[#allocation2 + $0xf4] sm:$0xf]
      %v3505 = vld [vmem:[#allocation2 + $0xf8] sm:$0xf]
      %v3506 = vld [vmem:[#allocation2 + $0xfc] sm:$0xf]
      %v3507 = vld [vmem:[#allocation2 + $0x100] sm:$0xf]
      %v3508 = vld [vmem:[#allocation2 + $0x104] sm:$0xf]
      %v3509 = vld [vmem:[#allocation2 + $0x108] sm:$0xf]
      %v3510 = vld [vmem:[#allocation2 + $0x10c] sm:$0xf]
      %v3511 = vld [vmem:[#allocation2 + $0x110] sm:$0xf]
      %v3512 = vld [vmem:[#allocation2 + $0x114] sm:$0xf]
      %v3513 = vld [vmem:[#allocation2 + $0x118] sm:$0xf]
      %v3514 = vld [vmem:[#allocation2 + $0x11c] sm:$0xf]
      %vm3515 = vsmask.f32 256
      %vm3516 = vsmask.f32 4368
      %vm3517 = vmor %vm3515, %vm3516
      %v3519 = vshrl.u32 %v3443, 16
      %v3521 = vrot.slane %v3519, 7
      %v3522 = vrot.slane %v3521, 4
      %v3524 = vshrl.u32 %v3444, 16
      %v3526 = vrot.slane %v3524, 7
      %v3527 = vshll.u32 %v3444, 16
      %v3529 = vor.u32 %v3526, %v3527
      %v3530 = vsel %vm3517, %v3522, %v3529
      %v3531 = vrot.slane %v3526, 4
      %v3533 = vshrl.u32 %v3445, 16
      %v3535 = vrot.slane %v3533, 7
      %v3536 = vshll.u32 %v3445, 16
      %v3538 = vor.u32 %v3535, %v3536
      %v3539 = vsel %vm3517, %v3531, %v3538
      %v3541 = vshrl.u32 %v3447, 16
      %v3543 = vrot.slane %v3541, 7
      %v3544 = vrot.slane %v3543, 4
      %v3546 = vshrl.u32 %v3448, 16
      %v3548 = vrot.slane %v3546, 7
      %v3549 = vshll.u32 %v3448, 16
      %v3551 = vor.u32 %v3548, %v3549
      %v3552 = vsel %vm3517, %v3544, %v3551
      %v3553 = vrot.slane %v3548, 4
      %v3555 = vshrl.u32 %v3449, 16
      %v3557 = vrot.slane %v3555, 7
      %v3558 = vshll.u32 %v3449, 16
      %v3560 = vor.u32 %v3557, %v3558
      %v3561 = vsel %vm3517, %v3553, %v3560
      %v3563 = vshrl.u32 %v3451, 16
      %v3565 = vrot.slane %v3563, 7
      %v3566 = vrot.slane %v3565, 4
      %v3568 = vshrl.u32 %v3452, 16
      %v3570 = vrot.slane %v3568, 7
      %v3571 = vshll.u32 %v3452, 16
      %v3573 = vor.u32 %v3570, %v3571
      %v3574 = vsel %vm3517, %v3566, %v3573
      %v3575 = vrot.slane %v3570, 4
      %v3577 = vshrl.u32 %v3453, 16
      %v3579 = vrot.slane %v3577, 7
      %v3580 = vshll.u32 %v3453, 16
      %v3582 = vor.u32 %v3579, %v3580
      %v3583 = vsel %vm3517, %v3575, %v3582
      %v3585 = vshrl.u32 %v3455, 16
      %v3587 = vrot.slane %v3585, 7
      %v3588 = vrot.slane %v3587, 4
      %v3590 = vshrl.u32 %v3456, 16
      %v3592 = vrot.slane %v3590, 7
      %v3593 = vshll.u32 %v3456, 16
      %v3595 = vor.u32 %v3592, %v3593
      %v3596 = vsel %vm3517, %v3588, %v3595
      %v3597 = vrot.slane %v3592, 4
      %v3599 = vshrl.u32 %v3457, 16
      %v3601 = vrot.slane %v3599, 7
      %v3602 = vshll.u32 %v3457, 16
      %v3604 = vor.u32 %v3601, %v3602
      %v3605 = vsel %vm3517, %v3597, %v3604
      %v3607 = vshrl.u32 %v3459, 16
      %v3609 = vrot.slane %v3607, 7
      %v3610 = vrot.slane %v3609, 4
      %v3612 = vshrl.u32 %v3460, 16
      %v3614 = vrot.slane %v3612, 7
      %v3615 = vshll.u32 %v3460, 16
      %v3617 = vor.u32 %v3614, %v3615
      %v3618 = vsel %vm3517, %v3610, %v3617
      %v3619 = vrot.slane %v3614, 4
      %v3621 = vshrl.u32 %v3461, 16
      %v3623 = vrot.slane %v3621, 7
      %v3624 = vshll.u32 %v3461, 16
      %v3626 = vor.u32 %v3623, %v3624
      %v3627 = vsel %vm3517, %v3619, %v3626
      %v3629 = vshrl.u32 %v3463, 16
      %v3631 = vrot.slane %v3629, 7
      %v3632 = vrot.slane %v3631, 4
      %v3634 = vshrl.u32 %v3464, 16
      %v3636 = vrot.slane %v3634, 7
      %v3637 = vshll.u32 %v3464, 16
      %v3639 = vor.u32 %v3636, %v3637
      %v3640 = vsel %vm3517, %v3632, %v3639
      %v3641 = vrot.slane %v3636, 4
      %v3643 = vshrl.u32 %v3465, 16
      %v3645 = vrot.slane %v3643, 7
      %v3646 = vshll.u32 %v3465, 16
      %v3648 = vor.u32 %v3645, %v3646
      %v3649 = vsel %vm3517, %v3641, %v3648
      %v3651 = vshrl.u32 %v3467, 16
      %v3653 = vrot.slane %v3651, 7
      %v3654 = vrot.slane %v3653, 4
      %v3656 = vshrl.u32 %v3468, 16
      %v3658 = vrot.slane %v3656, 7
      %v3659 = vshll.u32 %v3468, 16
      %v3661 = vor.u32 %v3658, %v3659
      %v3662 = vsel %vm3517, %v3654, %v3661
      %v3663 = vrot.slane %v3658, 4
      %v3665 = vshrl.u32 %v3469, 16
      %v3667 = vrot.slane %v3665, 7
      %v3668 = vshll.u32 %v3469, 16
      %v3670 = vor.u32 %v3667, %v3668
      %v3671 = vsel %vm3517, %v3663, %v3670
      %v3673 = vshrl.u32 %v3471, 16
      %v3675 = vrot.slane %v3673, 7
      %v3676 = vrot.slane %v3675, 4
      %v3678 = vshrl.u32 %v3472, 16
      %v3680 = vrot.slane %v3678, 7
      %v3681 = vshll.u32 %v3472, 16
      %v3683 = vor.u32 %v3680, %v3681
      %v3684 = vsel %vm3517, %v3676, %v3683
      %v3685 = vrot.slane %v3680, 4
      %v3687 = vshrl.u32 %v3473, 16
      %v3689 = vrot.slane %v3687, 7
      %v3690 = vshll.u32 %v3473, 16
      %v3692 = vor.u32 %v3689, %v3690
      %v3693 = vsel %vm3517, %v3685, %v3692
      %v3695 = vshrl.u32 %v3475, 16
      %v3697 = vrot.slane %v3695, 7
      %v3698 = vrot.slane %v3697, 4
      %v3700 = vshrl.u32 %v3476, 16
      %v3702 = vrot.slane %v3700, 7
      %v3703 = vshll.u32 %v3476, 16
      %v3705 = vor.u32 %v3702, %v3703
      %v3706 = vsel %vm3517, %v3698, %v3705
      %v3707 = vrot.slane %v3702, 4
      %v3709 = vshrl.u32 %v3477, 16
      %v3711 = vrot.slane %v3709, 7
      %v3712 = vshll.u32 %v3477, 16
      %v3714 = vor.u32 %v3711, %v3712
      %v3715 = vsel %vm3517, %v3707, %v3714
      %v3717 = vshrl.u32 %v3479, 16
      %v3719 = vrot.slane %v3717, 7
      %v3720 = vrot.slane %v3719, 4
      %v3722 = vshrl.u32 %v3480, 16
      %v3724 = vrot.slane %v3722, 7
      %v3725 = vshll.u32 %v3480, 16
      %v3727 = vor.u32 %v3724, %v3725
      %v3728 = vsel %vm3517, %v3720, %v3727
      %v3729 = vrot.slane %v3724, 4
      %v3731 = vshrl.u32 %v3481, 16
      %v3733 = vrot.slane %v3731, 7
      %v3734 = vshll.u32 %v3481, 16
      %v3736 = vor.u32 %v3733, %v3734
      %v3737 = vsel %vm3517, %v3729, %v3736
      %v3739 = vshrl.u32 %v3483, 16
      %v3741 = vrot.slane %v3739, 7
      %v3742 = vrot.slane %v3741, 4
      %v3744 = vshrl.u32 %v3484, 16
      %v3746 = vrot.slane %v3744, 7
      %v3747 = vshll.u32 %v3484, 16
      %v3749 = vor.u32 %v3746, %v3747
      %v3750 = vsel %vm3517, %v3742, %v3749
      %v3751 = vrot.slane %v3746, 4
      %v3753 = vshrl.u32 %v3485, 16
      %v3755 = vrot.slane %v3753, 7
      %v3756 = vshll.u32 %v3485, 16
      %v3758 = vor.u32 %v3755, %v3756
      %v3759 = vsel %vm3517, %v3751, %v3758
      %v3761 = vshrl.u32 %v3487, 16
      %v3763 = vrot.slane %v3761, 7
      %v3764 = vrot.slane %v3763, 4
      %v3766 = vshrl.u32 %v3488, 16
      %v3768 = vrot.slane %v3766, 7
      %v3769 = vshll.u32 %v3488, 16
      %v3771 = vor.u32 %v3768, %v3769
      %v3772 = vsel %vm3517, %v3764, %v3771
      %v3773 = vrot.slane %v3768, 4
      %v3775 = vshrl.u32 %v3489, 16
      %v3777 = vrot.slane %v3775, 7
      %v3778 = vshll.u32 %v3489, 16
      %v3780 = vor.u32 %v3777, %v3778
      %v3781 = vsel %vm3517, %v3773, %v3780
      %v3783 = vshrl.u32 %v3491, 16
      %v3785 = vrot.slane %v3783, 7
      %v3786 = vrot.slane %v3785, 4
      %v3788 = vshrl.u32 %v3492, 16
      %v3790 = vrot.slane %v3788, 7
      %v3791 = vshll.u32 %v3492, 16
      %v3793 = vor.u32 %v3790, %v3791
      %v3794 = vsel %vm3517, %v3786, %v3793
      %v3795 = vrot.slane %v3790, 4
      %v3797 = vshrl.u32 %v3493, 16
      %v3799 = vrot.slane %v3797, 7
      %v3800 = vshll.u32 %v3493, 16
      %v3802 = vor.u32 %v3799, %v3800
      %v3803 = vsel %vm3517, %v3795, %v3802
      %v3805 = vshrl.u32 %v3495, 16
      %v3807 = vrot.slane %v3805, 7
      %v3808 = vrot.slane %v3807, 4
      %v3810 = vshrl.u32 %v3496, 16
      %v3812 = vrot.slane %v3810, 7
      %v3813 = vshll.u32 %v3496, 16
      %v3815 = vor.u32 %v3812, %v3813
      %v3816 = vsel %vm3517, %v3808, %v3815
      %v3817 = vrot.slane %v3812, 4
      %v3819 = vshrl.u32 %v3497, 16
      %v3821 = vrot.slane %v3819, 7
      %v3822 = vshll.u32 %v3497, 16
      %v3824 = vor.u32 %v3821, %v3822
      %v3825 = vsel %vm3517, %v3817, %v3824
      %v3827 = vshrl.u32 %v3499, 16
      %v3829 = vrot.slane %v3827, 7
      %v3830 = vrot.slane %v3829, 4
      %v3832 = vshrl.u32 %v3500, 16
      %v3834 = vrot.slane %v3832, 7
      %v3835 = vshll.u32 %v3500, 16
      %v3837 = vor.u32 %v3834, %v3835
      %v3838 = vsel %vm3517, %v3830, %v3837
      %v3839 = vrot.slane %v3834, 4
      %v3841 = vshrl.u32 %v3501, 16
      %v3843 = vrot.slane %v3841, 7
      %v3844 = vshll.u32 %v3501, 16
      %v3846 = vor.u32 %v3843, %v3844
      %v3847 = vsel %vm3517, %v3839, %v3846
      %v3849 = vshrl.u32 %v3503, 16
      %v3851 = vrot.slane %v3849, 7
      %v3852 = vrot.slane %v3851, 4
      %v3854 = vshrl.u32 %v3504, 16
      %v3856 = vrot.slane %v3854, 7
      %v3857 = vshll.u32 %v3504, 16
      %v3859 = vor.u32 %v3856, %v3857
      %v3860 = vsel %vm3517, %v3852, %v3859
      %v3861 = vrot.slane %v3856, 4
      %v3863 = vshrl.u32 %v3505, 16
      %v3865 = vrot.slane %v3863, 7
      %v3866 = vshll.u32 %v3505, 16
      %v3868 = vor.u32 %v3865, %v3866
      %v3869 = vsel %vm3517, %v3861, %v3868
      %v3870 = vld [vmem:[%s4] sm:$0xf]
      %v3871 = vld [vmem:[%s4 + $0x4] sm:$0xf]
      %v3872 = vld [vmem:[%s4 + $0x8] sm:$0xf]
      %v3873 = vld [vmem:[%s4 + $0xc] sm:$0xf]
      %v3874 = vld [vmem:[%s4 + $0x10] sm:$0xf]
      %v3875 = vld [vmem:[%s4 + $0x14] sm:$0xf]
      %v3876 = vld [vmem:[%s4 + $0x18] sm:$0xf]
      %v3877 = vld [vmem:[%s4 + $0x1c] sm:$0xf]
      %v3878 = vld [vmem:[%s4 + $0x20] sm:$0xf]
      %v3879 = vld [vmem:[%s4 + $0x24] sm:$0xf]
      %v3880 = vld [vmem:[%s4 + $0x28] sm:$0xf]
      %v3881 = vld [vmem:[%s4 + $0x2c] sm:$0xf]
      %v3882 = vld [vmem:[%s4 + $0x30] sm:$0xf]
      %v3883 = vld [vmem:[%s4 + $0x34] sm:$0xf]
      %v3884 = vld [vmem:[%s4 + $0x38] sm:$0xf]
      %v3885 = vld [vmem:[%s4 + $0x3c] sm:$0xf]
      %s3886 = scalar_lea.vmem %s4, 64
      %v3887 = vld [vmem:[%s3886] sm:$0xf]
      %v3888 = vld [vmem:[%s3886 + $0x4] sm:$0xf]
      %v3889 = vld [vmem:[%s3886 + $0x8] sm:$0xf]
      %v3890 = vld [vmem:[%s3886 + $0xc] sm:$0xf]
      %v3891 = vld [vmem:[%s3886 + $0x10] sm:$0xf]
      %v3892 = vld [vmem:[%s3886 + $0x14] sm:$0xf]
      %v3893 = vld [vmem:[%s3886 + $0x18] sm:$0xf]
      %v3894 = vld [vmem:[%s3886 + $0x1c] sm:$0xf]
      %v3895 = vld [vmem:[%s3886 + $0x20] sm:$0xf]
      %v3896 = vld [vmem:[%s3886 + $0x24] sm:$0xf]
      %v3897 = vld [vmem:[%s3886 + $0x28] sm:$0xf]
      %v3898 = vld [vmem:[%s3886 + $0x2c] sm:$0xf]
      %v3899 = vld [vmem:[%s3886 + $0x30] sm:$0xf]
      %v3900 = vld [vmem:[%s3886 + $0x34] sm:$0xf]
      %v3901 = vld [vmem:[%s3886 + $0x38] sm:$0xf]
      %v3902 = vld [vmem:[%s3886 + $0x3c] sm:$0xf]
      %v3935 = vunpack.c.l.b16 %v3444
      %v3936 = vunpack.c.l.b16 %v3445
      %v3937 = vunpack.c.l.b16 %v3448
      %v3938 = vunpack.c.l.b16 %v3449
      %v3939 = vunpack.c.l.b16 %v3452
      %v3940 = vunpack.c.l.b16 %v3453
      %v3941 = vunpack.c.l.b16 %v3456
      %v3942 = vunpack.c.l.b16 %v3457
      %v3943 = vunpack.c.l.b16 %v3460
      %v3944 = vunpack.c.l.b16 %v3461
      %v3945 = vunpack.c.l.b16 %v3464
      %v3946 = vunpack.c.l.b16 %v3465
      %v3947 = vunpack.c.l.b16 %v3468
      %v3948 = vunpack.c.l.b16 %v3469
      %v3949 = vunpack.c.l.b16 %v3472
      %v3950 = vunpack.c.l.b16 %v3473
      %v3951 = vunpack.c.l.b16 %v3476
      %v3952 = vunpack.c.l.b16 %v3477
      %v3953 = vunpack.c.l.b16 %v3480
      %v3954 = vunpack.c.l.b16 %v3481
      %v3955 = vunpack.c.l.b16 %v3484
      %v3956 = vunpack.c.l.b16 %v3485
      %v3957 = vunpack.c.l.b16 %v3488
      %v3958 = vunpack.c.l.b16 %v3489
      %v3959 = vunpack.c.l.b16 %v3492
      %v3960 = vunpack.c.l.b16 %v3493
      %v3961 = vunpack.c.l.b16 %v3496
      %v3962 = vunpack.c.l.b16 %v3497
      %v3963 = vunpack.c.l.b16 %v3500
      %v3964 = vunpack.c.l.b16 %v3501
      %v3965 = vunpack.c.l.b16 %v3504
      %v3966 = vunpack.c.l.b16 %v3505
      %v3967 = vpack.c.b16 %v3936, %v3935
      %v3968 = vpack.c.b16 %v3938, %v3937
      %v3969 = vpack.c.b16 %v3940, %v3939
      %v3970 = vpack.c.b16 %v3942, %v3941
      %v3971 = vpack.c.b16 %v3944, %v3943
      %v3972 = vpack.c.b16 %v3946, %v3945
      %v3973 = vpack.c.b16 %v3948, %v3947
      %v3974 = vpack.c.b16 %v3950, %v3949
      %v3975 = vpack.c.b16 %v3952, %v3951
      %v3976 = vpack.c.b16 %v3954, %v3953
      %v3977 = vpack.c.b16 %v3956, %v3955
      %v3978 = vpack.c.b16 %v3958, %v3957
      %v3979 = vpack.c.b16 %v3960, %v3959
      %v3980 = vpack.c.b16 %v3962, %v3961
      %v3981 = vpack.c.b16 %v3964, %v3963
      %v3982 = vpack.c.b16 %v3966, %v3965
      %v4015 = vunpack.c.l.b16 %v3887
      %v4016 = vunpack.c.l.b16 %v3888
      %v4017 = vunpack.c.l.b16 %v3889
      %v4018 = vunpack.c.l.b16 %v3890
      %v4019 = vunpack.c.l.b16 %v3891
      %v4020 = vunpack.c.l.b16 %v3892
      %v4021 = vunpack.c.l.b16 %v3893
      %v4022 = vunpack.c.l.b16 %v3894
      %v4023 = vunpack.c.l.b16 %v3895
      %v4024 = vunpack.c.l.b16 %v3896
      %v4025 = vunpack.c.l.b16 %v3897
      %v4026 = vunpack.c.l.b16 %v3898
      %v4027 = vunpack.c.l.b16 %v3899
      %v4028 = vunpack.c.l.b16 %v3900
      %v4029 = vunpack.c.l.b16 %v3901
      %v4030 = vunpack.c.l.b16 %v3902
      %v4031 = vpack.c.b16 %v4016, %v4015
      %v4032 = vpack.c.b16 %v4018, %v4017
      %v4033 = vpack.c.b16 %v4020, %v4019
      %v4034 = vpack.c.b16 %v4022, %v4021
      %v4035 = vpack.c.b16 %v4024, %v4023
      %v4036 = vpack.c.b16 %v4026, %v4025
      %v4037 = vpack.c.b16 %v4028, %v4027
      %v4038 = vpack.c.b16 %v4030, %v4029
      %4047 = vmatpush.bf16.msra.mxu0 %v4038
      %4048 = vmatpush.bf16.msra.mxu0 %v4037
      %4049 = vmatpush.bf16.msra.mxu0 %v4036
      %4050 = vmatpush.bf16.msra.mxu0 %v4035
      %4051 = vmatpush.bf16.msra.mxu0 %v4034
      %4052 = vmatpush.bf16.msra.mxu0 %v4033
      %4053 = vmatpush.bf16.msra.mxu0 %v4032
      %4054 = vmatpush.bf16.msra.mxu0 %v4031
      %4055 = vmatmul.bf16.gmra.mxu0 %v3967
      %v4056 = vpop.f32.mrf.mxu0
      %v4057 = vadd.f32 0.0, %v4056
      %v4058 = vpop.f32.mrf.mxu0
      %v4059 = vadd.f32 0.0, %v4058
      %4060 = vmatmul.bf16.gmra.mxu0 %v3968
      %v4061 = vpop.f32.mrf.mxu0
      %v4062 = vadd.f32 0.0, %v4061
      %v4063 = vpop.f32.mrf.mxu0
      %v4064 = vadd.f32 0.0, %v4063
      %4065 = vmatmul.bf16.gmra.mxu0 %v3969
      %v4066 = vpop.f32.mrf.mxu0
      %v4067 = vadd.f32 0.0, %v4066
      %v4068 = vpop.f32.mrf.mxu0
      %v4069 = vadd.f32 0.0, %v4068
      %4070 = vmatmul.bf16.gmra.mxu0 %v3970
      %v4071 = vpop.f32.mrf.mxu0
      %v4072 = vadd.f32 0.0, %v4071
      %v4073 = vpop.f32.mrf.mxu0
      %v4074 = vadd.f32 0.0, %v4073
      %4075 = vmatmul.bf16.gmra.mxu0 %v3971
      %v4076 = vpop.f32.mrf.mxu0
      %v4077 = vadd.f32 0.0, %v4076
      %v4078 = vpop.f32.mrf.mxu0
      %v4079 = vadd.f32 0.0, %v4078
      %4080 = vmatmul.bf16.gmra.mxu0 %v3972
      %v4081 = vpop.f32.mrf.mxu0
      %v4082 = vadd.f32 0.0, %v4081
      %v4083 = vpop.f32.mrf.mxu0
      %v4084 = vadd.f32 0.0, %v4083
      %4085 = vmatmul.bf16.gmra.mxu0 %v3973
      %v4086 = vpop.f32.mrf.mxu0
      %v4087 = vadd.f32 0.0, %v4086
      %v4088 = vpop.f32.mrf.mxu0
      %v4089 = vadd.f32 0.0, %v4088
      %4090 = vmatmul.bf16.gmra.mxu0 %v3974
      %v4091 = vpop.f32.mrf.mxu0
      %v4092 = vadd.f32 0.0, %v4091
      %v4093 = vpop.f32.mrf.mxu0
      %v4094 = vadd.f32 0.0, %v4093
      %4095 = vmatmul.bf16.gmra.mxu0 %v3975
      %v4096 = vpop.f32.mrf.mxu0
      %v4097 = vadd.f32 0.0, %v4096
      %v4098 = vpop.f32.mrf.mxu0
      %v4099 = vadd.f32 0.0, %v4098
      %4100 = vmatmul.bf16.gmra.mxu0 %v3976
      %v4101 = vpop.f32.mrf.mxu0
      %v4102 = vadd.f32 0.0, %v4101
      %v4103 = vpop.f32.mrf.mxu0
      %v4104 = vadd.f32 0.0, %v4103
      %4105 = vmatmul.bf16.gmra.mxu0 %v3977
      %v4106 = vpop.f32.mrf.mxu0
      %v4107 = vadd.f32 0.0, %v4106
      %v4108 = vpop.f32.mrf.mxu0
      %v4109 = vadd.f32 0.0, %v4108
      %4110 = vmatmul.bf16.gmra.mxu0 %v3978
      %v4111 = vpop.f32.mrf.mxu0
      %v4112 = vadd.f32 0.0, %v4111
      %v4113 = vpop.f32.mrf.mxu0
      %v4114 = vadd.f32 0.0, %v4113
      %4115 = vmatmul.bf16.gmra.mxu0 %v3979
      %v4116 = vpop.f32.mrf.mxu0
      %v4117 = vadd.f32 0.0, %v4116
      %v4118 = vpop.f32.mrf.mxu0
      %v4119 = vadd.f32 0.0, %v4118
      %4120 = vmatmul.bf16.gmra.mxu0 %v3980
      %v4121 = vpop.f32.mrf.mxu0
      %v4122 = vadd.f32 0.0, %v4121
      %v4123 = vpop.f32.mrf.mxu0
      %v4124 = vadd.f32 0.0, %v4123
      %4125 = vmatmul.bf16.gmra.mxu0 %v3981
      %v4126 = vpop.f32.mrf.mxu0
      %v4127 = vadd.f32 0.0, %v4126
      %v4128 = vpop.f32.mrf.mxu0
      %v4129 = vadd.f32 0.0, %v4128
      %4130 = vmatmul.bf16.gmra.mxu0 %v3982
      %v4131 = vpop.f32.mrf.mxu0
      %v4132 = vadd.f32 0.0, %v4131
      %v4133 = vpop.f32.mrf.mxu0
      %v4134 = vadd.f32 0.0, %v4133
      %4135 = vdwg.mxu0
      %v4136 = vunpack.c.l.b16 %v3530
      %v4137 = vunpack.c.l.b16 %v3539
      %v4138 = vunpack.c.l.b16 %v3552
      %v4139 = vunpack.c.l.b16 %v3561
      %v4140 = vunpack.c.l.b16 %v3574
      %v4141 = vunpack.c.l.b16 %v3583
      %v4142 = vunpack.c.l.b16 %v3596
      %v4143 = vunpack.c.l.b16 %v3605
      %v4144 = vunpack.c.l.b16 %v3618
      %v4145 = vunpack.c.l.b16 %v3627
      %v4146 = vunpack.c.l.b16 %v3640
      %v4147 = vunpack.c.l.b16 %v3649
      %v4148 = vunpack.c.l.b16 %v3662
      %v4149 = vunpack.c.l.b16 %v3671
      %v4150 = vunpack.c.l.b16 %v3684
      %v4151 = vunpack.c.l.b16 %v3693
      %v4152 = vunpack.c.l.b16 %v3706
      %v4153 = vunpack.c.l.b16 %v3715
      %v4154 = vunpack.c.l.b16 %v3728
      %v4155 = vunpack.c.l.b16 %v3737
      %v4156 = vunpack.c.l.b16 %v3750
      %v4157 = vunpack.c.l.b16 %v3759
      %v4158 = vunpack.c.l.b16 %v3772
      %v4159 = vunpack.c.l.b16 %v3781
      %v4160 = vunpack.c.l.b16 %v3794
      %v4161 = vunpack.c.l.b16 %v3803
      %v4162 = vunpack.c.l.b16 %v3816
      %v4163 = vunpack.c.l.b16 %v3825
      %v4164 = vunpack.c.l.b16 %v3838
      %v4165 = vunpack.c.l.b16 %v3847
      %v4166 = vunpack.c.l.b16 %v3860
      %v4167 = vunpack.c.l.b16 %v3869
      %v4168 = vpack.c.b16 %v4137, %v4136
      %v4169 = vpack.c.b16 %v4139, %v4138
      %v4170 = vpack.c.b16 %v4141, %v4140
      %v4171 = vpack.c.b16 %v4143, %v4142
      %v4172 = vpack.c.b16 %v4145, %v4144
      %v4173 = vpack.c.b16 %v4147, %v4146
      %v4174 = vpack.c.b16 %v4149, %v4148
      %v4175 = vpack.c.b16 %v4151, %v4150
      %v4176 = vpack.c.b16 %v4153, %v4152
      %v4177 = vpack.c.b16 %v4155, %v4154
      %v4178 = vpack.c.b16 %v4157, %v4156
      %v4179 = vpack.c.b16 %v4159, %v4158
      %v4180 = vpack.c.b16 %v4161, %v4160
      %v4181 = vpack.c.b16 %v4163, %v4162
      %v4182 = vpack.c.b16 %v4165, %v4164
      %v4183 = vpack.c.b16 %v4167, %v4166
      %v4216 = vunpack.c.l.b16 %v3870
      %v4217 = vunpack.c.l.b16 %v3871
      %v4218 = vunpack.c.l.b16 %v3872
      %v4219 = vunpack.c.l.b16 %v3873
      %v4220 = vunpack.c.l.b16 %v3874
      %v4221 = vunpack.c.l.b16 %v3875
      %v4222 = vunpack.c.l.b16 %v3876
      %v4223 = vunpack.c.l.b16 %v3877
      %v4224 = vunpack.c.l.b16 %v3878
      %v4225 = vunpack.c.l.b16 %v3879
      %v4226 = vunpack.c.l.b16 %v3880
      %v4227 = vunpack.c.l.b16 %v3881
      %v4228 = vunpack.c.l.b16 %v3882
      %v4229 = vunpack.c.l.b16 %v3883
      %v4230 = vunpack.c.l.b16 %v3884
      %v4231 = vunpack.c.l.b16 %v3885
      %v4232 = vpack.c.b16 %v4217, %v4216
      %v4233 = vpack.c.b16 %v4219, %v4218
      %v4234 = vpack.c.b16 %v4221, %v4220
      %v4235 = vpack.c.b16 %v4223, %v4222
      %v4236 = vpack.c.b16 %v4225, %v4224
      %v4237 = vpack.c.b16 %v4227, %v4226
      %v4238 = vpack.c.b16 %v4229, %v4228
      %v4239 = vpack.c.b16 %v4231, %v4230
      %4248 = vmatpush.bf16.msra.mxu0 %v4239
      %4249 = vmatpush.bf16.msra.mxu0 %v4238
      %4250 = vmatpush.bf16.msra.mxu0 %v4237
      %4251 = vmatpush.bf16.msra.mxu0 %v4236
      %4252 = vmatpush.bf16.msra.mxu0 %v4235
      %4253 = vmatpush.bf16.msra.mxu0 %v4234
      %4254 = vmatpush.bf16.msra.mxu0 %v4233
      %4255 = vmatpush.bf16.msra.mxu0 %v4232
      %4256 = vmatmul.bf16.gmra.mxu0 %v4168
      %v4257 = vpop.f32.mrf.mxu0
      %v4258 = vadd.f32 %v4057, %v4257
      %v4259 = vpop.f32.mrf.mxu0
      %v4260 = vadd.f32 %v4059, %v4259
      %4261 = vmatmul.bf16.gmra.mxu0 %v4169
      %v4262 = vpop.f32.mrf.mxu0
      %v4263 = vadd.f32 %v4062, %v4262
      %v4264 = vpop.f32.mrf.mxu0
      %v4265 = vadd.f32 %v4064, %v4264
      %4266 = vmatmul.bf16.gmra.mxu0 %v4170
      %v4267 = vpop.f32.mrf.mxu0
      %v4268 = vadd.f32 %v4067, %v4267
      %v4269 = vpop.f32.mrf.mxu0
      %v4270 = vadd.f32 %v4069, %v4269
      %4271 = vmatmul.bf16.gmra.mxu0 %v4171
      %v4272 = vpop.f32.mrf.mxu0
      %v4273 = vadd.f32 %v4072, %v4272
      %v4274 = vpop.f32.mrf.mxu0
      %v4275 = vadd.f32 %v4074, %v4274
      %4276 = vmatmul.bf16.gmra.mxu0 %v4172
      %v4277 = vpop.f32.mrf.mxu0
      %v4278 = vadd.f32 %v4077, %v4277
      %v4279 = vpop.f32.mrf.mxu0
      %v4280 = vadd.f32 %v4079, %v4279
      %4281 = vmatmul.bf16.gmra.mxu0 %v4173
      %v4282 = vpop.f32.mrf.mxu0
      %v4283 = vadd.f32 %v4082, %v4282
      %v4284 = vpop.f32.mrf.mxu0
      %v4285 = vadd.f32 %v4084, %v4284
      %4286 = vmatmul.bf16.gmra.mxu0 %v4174
      %v4287 = vpop.f32.mrf.mxu0
      %v4288 = vadd.f32 %v4087, %v4287
      %v4289 = vpop.f32.mrf.mxu0
      %v4290 = vadd.f32 %v4089, %v4289
      %4291 = vmatmul.bf16.gmra.mxu0 %v4175
      %v4292 = vpop.f32.mrf.mxu0
      %v4293 = vadd.f32 %v4092, %v4292
      %v4294 = vpop.f32.mrf.mxu0
      %v4295 = vadd.f32 %v4094, %v4294
      %4296 = vmatmul.bf16.gmra.mxu0 %v4176
      %v4297 = vpop.f32.mrf.mxu0
      %v4298 = vadd.f32 %v4097, %v4297
      %v4299 = vpop.f32.mrf.mxu0
      %v4300 = vadd.f32 %v4099, %v4299
      %4301 = vmatmul.bf16.gmra.mxu0 %v4177
      %v4302 = vpop.f32.mrf.mxu0
      %v4303 = vadd.f32 %v4102, %v4302
      %v4304 = vpop.f32.mrf.mxu0
      %v4305 = vadd.f32 %v4104, %v4304
      %4306 = vmatmul.bf16.gmra.mxu0 %v4178
      %v4307 = vpop.f32.mrf.mxu0
      %v4308 = vadd.f32 %v4107, %v4307
      %v4309 = vpop.f32.mrf.mxu0
      %v4310 = vadd.f32 %v4109, %v4309
      %4311 = vmatmul.bf16.gmra.mxu0 %v4179
      %v4312 = vpop.f32.mrf.mxu0
      %v4313 = vadd.f32 %v4112, %v4312
      %v4314 = vpop.f32.mrf.mxu0
      %v4315 = vadd.f32 %v4114, %v4314
      %4316 = vmatmul.bf16.gmra.mxu0 %v4180
      %v4317 = vpop.f32.mrf.mxu0
      %v4318 = vadd.f32 %v4117, %v4317
      %v4319 = vpop.f32.mrf.mxu0
      %v4320 = vadd.f32 %v4119, %v4319
      %4321 = vmatmul.bf16.gmra.mxu0 %v4181
      %v4322 = vpop.f32.mrf.mxu0
      %v4323 = vadd.f32 %v4122, %v4322
      %v4324 = vpop.f32.mrf.mxu0
      %v4325 = vadd.f32 %v4124, %v4324
      %4326 = vmatmul.bf16.gmra.mxu0 %v4182
      %v4327 = vpop.f32.mrf.mxu0
      %v4328 = vadd.f32 %v4127, %v4327
      %v4329 = vpop.f32.mrf.mxu0
      %v4330 = vadd.f32 %v4129, %v4329
      %4331 = vmatmul.bf16.gmra.mxu0 %v4183
      %v4332 = vpop.f32.mrf.mxu0
      %v4333 = vadd.f32 %v4132, %v4332
      %v4334 = vpop.f32.mrf.mxu0
      %v4335 = vadd.f32 %v4134, %v4334
      %4336 = vdwg.mxu0
      %v4337 = vrot.slane %v3524, 4
      %v4338 = vrot.slane %v3527, 5
      %v4339 = vor.u32 %v4337, %v4338
      %v4340 = vrot.slane %v4339, 4
      %v4341 = vrot.slane %v3536, 5
      %v4342 = vsel %vm352, %v4340, %v4341
      %v4343 = vrot.slane %v3533, 4
      %v4344 = vor.u32 %v4343, %v4341
      %v4345 = vrot.slane %v4344, 4
      %v4347 = vshll.u32 %v3446, 16
      %v4349 = vrot.slane %v4347, 5
      %v4350 = vsel %vm352, %v4345, %v4349
      %v4351 = vrot.slane %v3546, 4
      %v4352 = vrot.slane %v3549, 5
      %v4353 = vor.u32 %v4351, %v4352
      %v4354 = vrot.slane %v4353, 4
      %v4355 = vrot.slane %v3558, 5
      %v4356 = vsel %vm352, %v4354, %v4355
      %v4357 = vrot.slane %v3555, 4
      %v4358 = vor.u32 %v4357, %v4355
      %v4359 = vrot.slane %v4358, 4
      %v4361 = vshll.u32 %v3450, 16
      %v4363 = vrot.slane %v4361, 5
      %v4364 = vsel %vm352, %v4359, %v4363
      %v4365 = vrot.slane %v3568, 4
      %v4366 = vrot.slane %v3571, 5
      %v4367 = vor.u32 %v4365, %v4366
      %v4368 = vrot.slane %v4367, 4
      %v4369 = vrot.slane %v3580, 5
      %v4370 = vsel %vm352, %v4368, %v4369
      %v4371 = vrot.slane %v3577, 4
      %v4372 = vor.u32 %v4371, %v4369
      %v4373 = vrot.slane %v4372, 4
      %v4375 = vshll.u32 %v3454, 16
      %v4377 = vrot.slane %v4375, 5
      %v4378 = vsel %vm352, %v4373, %v4377
      %v4379 = vrot.slane %v3590, 4
      %v4380 = vrot.slane %v3593, 5
      %v4381 = vor.u32 %v4379, %v4380
      %v4382 = vrot.slane %v4381, 4
      %v4383 = vrot.slane %v3602, 5
      %v4384 = vsel %vm352, %v4382, %v4383
      %v4385 = vrot.slane %v3599, 4
      %v4386 = vor.u32 %v4385, %v4383
      %v4387 = vrot.slane %v4386, 4
      %v4389 = vshll.u32 %v3458, 16
      %v4391 = vrot.slane %v4389, 5
      %v4392 = vsel %vm352, %v4387, %v4391
      %v4393 = vrot.slane %v3612, 4
      %v4394 = vrot.slane %v3615, 5
      %v4395 = vor.u32 %v4393, %v4394
      %v4396 = vrot.slane %v4395, 4
      %v4397 = vrot.slane %v3624, 5
      %v4398 = vsel %vm352, %v4396, %v4397
      %v4399 = vrot.slane %v3621, 4
      %v4400 = vor.u32 %v4399, %v4397
      %v4401 = vrot.slane %v4400, 4
      %v4403 = vshll.u32 %v3462, 16
      %v4405 = vrot.slane %v4403, 5
      %v4406 = vsel %vm352, %v4401, %v4405
      %v4407 = vrot.slane %v3634, 4
      %v4408 = vrot.slane %v3637, 5
      %v4409 = vor.u32 %v4407, %v4408
      %v4410 = vrot.slane %v4409, 4
      %v4411 = vrot.slane %v3646, 5
      %v4412 = vsel %vm352, %v4410, %v4411
      %v4413 = vrot.slane %v3643, 4
      %v4414 = vor.u32 %v4413, %v4411
      %v4415 = vrot.slane %v4414, 4
      %v4417 = vshll.u32 %v3466, 16
      %v4419 = vrot.slane %v4417, 5
      %v4420 = vsel %vm352, %v4415, %v4419
      %v4421 = vrot.slane %v3656, 4
      %v4422 = vrot.slane %v3659, 5
      %v4423 = vor.u32 %v4421, %v4422
      %v4424 = vrot.slane %v4423, 4
      %v4425 = vrot.slane %v3668, 5
      %v4426 = vsel %vm352, %v4424, %v4425
      %v4427 = vrot.slane %v3665, 4
      %v4428 = vor.u32 %v4427, %v4425
      %v4429 = vrot.slane %v4428, 4
      %v4431 = vshll.u32 %v3470, 16
      %v4433 = vrot.slane %v4431, 5
      %v4434 = vsel %vm352, %v4429, %v4433
      %v4435 = vrot.slane %v3678, 4
      %v4436 = vrot.slane %v3681, 5
      %v4437 = vor.u32 %v4435, %v4436
      %v4438 = vrot.slane %v4437, 4
      %v4439 = vrot.slane %v3690, 5
      %v4440 = vsel %vm352, %v4438, %v4439
      %v4441 = vrot.slane %v3687, 4
      %v4442 = vor.u32 %v4441, %v4439
      %v4443 = vrot.slane %v4442, 4
      %v4445 = vshll.u32 %v3474, 16
      %v4447 = vrot.slane %v4445, 5
      %v4448 = vsel %vm352, %v4443, %v4447
      %v4449 = vrot.slane %v3700, 4
      %v4450 = vrot.slane %v3703, 5
      %v4451 = vor.u32 %v4449, %v4450
      %v4452 = vrot.slane %v4451, 4
      %v4453 = vrot.slane %v3712, 5
      %v4454 = vsel %vm352, %v4452, %v4453
      %v4455 = vrot.slane %v3709, 4
      %v4456 = vor.u32 %v4455, %v4453
      %v4457 = vrot.slane %v4456, 4
      %v4459 = vshll.u32 %v3478, 16
      %v4461 = vrot.slane %v4459, 5
      %v4462 = vsel %vm352, %v4457, %v4461
      %v4463 = vrot.slane %v3722, 4
      %v4464 = vrot.slane %v3725, 5
      %v4465 = vor.u32 %v4463, %v4464
      %v4466 = vrot.slane %v4465, 4
      %v4467 = vrot.slane %v3734, 5
      %v4468 = vsel %vm352, %v4466, %v4467
      %v4469 = vrot.slane %v3731, 4
      %v4470 = vor.u32 %v4469, %v4467
      %v4471 = vrot.slane %v4470, 4
      %v4473 = vshll.u32 %v3482, 16
      %v4475 = vrot.slane %v4473, 5
      %v4476 = vsel %vm352, %v4471, %v4475
      %v4477 = vrot.slane %v3744, 4
      %v4478 = vrot.slane %v3747, 5
      %v4479 = vor.u32 %v4477, %v4478
      %v4480 = vrot.slane %v4479, 4
      %v4481 = vrot.slane %v3756, 5
      %v4482 = vsel %vm352, %v4480, %v4481
      %v4483 = vrot.slane %v3753, 4
      %v4484 = vor.u32 %v4483, %v4481
      %v4485 = vrot.slane %v4484, 4
      %v4487 = vshll.u32 %v3486, 16
      %v4489 = vrot.slane %v4487, 5
      %v4490 = vsel %vm352, %v4485, %v4489
      %v4491 = vrot.slane %v3766, 4
      %v4492 = vrot.slane %v3769, 5
      %v4493 = vor.u32 %v4491, %v4492
      %v4494 = vrot.slane %v4493, 4
      %v4495 = vrot.slane %v3778, 5
      %v4496 = vsel %vm352, %v4494, %v4495
      %v4497 = vrot.slane %v3775, 4
      %v4498 = vor.u32 %v4497, %v4495
      %v4499 = vrot.slane %v4498, 4
      %v4501 = vshll.u32 %v3490, 16
      %v4503 = vrot.slane %v4501, 5
      %v4504 = vsel %vm352, %v4499, %v4503
      %v4505 = vrot.slane %v3788, 4
      %v4506 = vrot.slane %v3791, 5
      %v4507 = vor.u32 %v4505, %v4506
      %v4508 = vrot.slane %v4507, 4
      %v4509 = vrot.slane %v3800, 5
      %v4510 = vsel %vm352, %v4508, %v4509
      %v4511 = vrot.slane %v3797, 4
      %v4512 = vor.u32 %v4511, %v4509
      %v4513 = vrot.slane %v4512, 4
      %v4515 = vshll.u32 %v3494, 16
      %v4517 = vrot.slane %v4515, 5
      %v4518 = vsel %vm352, %v4513, %v4517
      %v4519 = vrot.slane %v3810, 4
      %v4520 = vrot.slane %v3813, 5
      %v4521 = vor.u32 %v4519, %v4520
      %v4522 = vrot.slane %v4521, 4
      %v4523 = vrot.slane %v3822, 5
      %v4524 = vsel %vm352, %v4522, %v4523
      %v4525 = vrot.slane %v3819, 4
      %v4526 = vor.u32 %v4525, %v4523
      %v4527 = vrot.slane %v4526, 4
      %v4529 = vshll.u32 %v3498, 16
      %v4531 = vrot.slane %v4529, 5
      %v4532 = vsel %vm352, %v4527, %v4531
      %v4533 = vrot.slane %v3832, 4
      %v4534 = vrot.slane %v3835, 5
      %v4535 = vor.u32 %v4533, %v4534
      %v4536 = vrot.slane %v4535, 4
      %v4537 = vrot.slane %v3844, 5
      %v4538 = vsel %vm352, %v4536, %v4537
      %v4539 = vrot.slane %v3841, 4
      %v4540 = vor.u32 %v4539, %v4537
      %v4541 = vrot.slane %v4540, 4
      %v4543 = vshll.u32 %v3502, 16
      %v4545 = vrot.slane %v4543, 5
      %v4546 = vsel %vm352, %v4541, %v4545
      %v4547 = vrot.slane %v3854, 4
      %v4548 = vrot.slane %v3857, 5
      %v4549 = vor.u32 %v4547, %v4548
      %v4550 = vrot.slane %v4549, 4
      %v4551 = vrot.slane %v3866, 5
      %v4552 = vsel %vm352, %v4550, %v4551
      %v4553 = vrot.slane %v3863, 4
      %v4554 = vor.u32 %v4553, %v4551
      %v4555 = vrot.slane %v4554, 4
      %v4557 = vshll.u32 %v3506, 16
      %v4559 = vrot.slane %v4557, 5
      %v4560 = vsel %vm352, %v4555, %v4559
      %s4561 = scalar_lea.vmem %s4, 128
      %v4562 = vld [vmem:[%s4561] sm:$0xf]
      %v4563 = vld [vmem:[%s4561 + $0x4] sm:$0xf]
      %v4564 = vld [vmem:[%s4561 + $0x8] sm:$0xf]
      %v4565 = vld [vmem:[%s4561 + $0xc] sm:$0xf]
      %v4566 = vld [vmem:[%s4561 + $0x10] sm:$0xf]
      %v4567 = vld [vmem:[%s4561 + $0x14] sm:$0xf]
      %v4568 = vld [vmem:[%s4561 + $0x18] sm:$0xf]
      %v4569 = vld [vmem:[%s4561 + $0x1c] sm:$0xf]
      %v4570 = vld [vmem:[%s4561 + $0x20] sm:$0xf]
      %v4571 = vld [vmem:[%s4561 + $0x24] sm:$0xf]
      %v4572 = vld [vmem:[%s4561 + $0x28] sm:$0xf]
      %v4573 = vld [vmem:[%s4561 + $0x2c] sm:$0xf]
      %v4574 = vld [vmem:[%s4561 + $0x30] sm:$0xf]
      %v4575 = vld [vmem:[%s4561 + $0x34] sm:$0xf]
      %v4576 = vld [vmem:[%s4561 + $0x38] sm:$0xf]
      %v4577 = vld [vmem:[%s4561 + $0x3c] sm:$0xf]
      %v4578 = vunpack.c.l.b16 %v4342
      %v4579 = vunpack.c.l.b16 %v4350
      %v4580 = vunpack.c.l.b16 %v4356
      %v4581 = vunpack.c.l.b16 %v4364
      %v4582 = vunpack.c.l.b16 %v4370
      %v4583 = vunpack.c.l.b16 %v4378
      %v4584 = vunpack.c.l.b16 %v4384
      %v4585 = vunpack.c.l.b16 %v4392
      %v4586 = vunpack.c.l.b16 %v4398
      %v4587 = vunpack.c.l.b16 %v4406
      %v4588 = vunpack.c.l.b16 %v4412
      %v4589 = vunpack.c.l.b16 %v4420
      %v4590 = vunpack.c.l.b16 %v4426
      %v4591 = vunpack.c.l.b16 %v4434
      %v4592 = vunpack.c.l.b16 %v4440
      %v4593 = vunpack.c.l.b16 %v4448
      %v4594 = vunpack.c.l.b16 %v4454
      %v4595 = vunpack.c.l.b16 %v4462
      %v4596 = vunpack.c.l.b16 %v4468
      %v4597 = vunpack.c.l.b16 %v4476
      %v4598 = vunpack.c.l.b16 %v4482
      %v4599 = vunpack.c.l.b16 %v4490
      %v4600 = vunpack.c.l.b16 %v4496
      %v4601 = vunpack.c.l.b16 %v4504
      %v4602 = vunpack.c.l.b16 %v4510
      %v4603 = vunpack.c.l.b16 %v4518
      %v4604 = vunpack.c.l.b16 %v4524
      %v4605 = vunpack.c.l.b16 %v4532
      %v4606 = vunpack.c.l.b16 %v4538
      %v4607 = vunpack.c.l.b16 %v4546
      %v4608 = vunpack.c.l.b16 %v4552
      %v4609 = vunpack.c.l.b16 %v4560
      %v4610 = vpack.c.b16 %v4579, %v4578
      %v4611 = vpack.c.b16 %v4581, %v4580
      %v4612 = vpack.c.b16 %v4583, %v4582
      %v4613 = vpack.c.b16 %v4585, %v4584
      %v4614 = vpack.c.b16 %v4587, %v4586
      %v4615 = vpack.c.b16 %v4589, %v4588
      %v4616 = vpack.c.b16 %v4591, %v4590
      %v4617 = vpack.c.b16 %v4593, %v4592
      %v4618 = vpack.c.b16 %v4595, %v4594
      %v4619 = vpack.c.b16 %v4597, %v4596
      %v4620 = vpack.c.b16 %v4599, %v4598
      %v4621 = vpack.c.b16 %v4601, %v4600
      %v4622 = vpack.c.b16 %v4603, %v4602
      %v4623 = vpack.c.b16 %v4605, %v4604
      %v4624 = vpack.c.b16 %v4607, %v4606
      %v4625 = vpack.c.b16 %v4609, %v4608
      %v4658 = vunpack.c.l.b16 %v4562
      %v4659 = vunpack.c.l.b16 %v4563
      %v4660 = vunpack.c.l.b16 %v4564
      %v4661 = vunpack.c.l.b16 %v4565
      %v4662 = vunpack.c.l.b16 %v4566
      %v4663 = vunpack.c.l.b16 %v4567
      %v4664 = vunpack.c.l.b16 %v4568
      %v4665 = vunpack.c.l.b16 %v4569
      %v4666 = vunpack.c.l.b16 %v4570
      %v4667 = vunpack.c.l.b16 %v4571
      %v4668 = vunpack.c.l.b16 %v4572
      %v4669 = vunpack.c.l.b16 %v4573
      %v4670 = vunpack.c.l.b16 %v4574
      %v4671 = vunpack.c.l.b16 %v4575
      %v4672 = vunpack.c.l.b16 %v4576
      %v4673 = vunpack.c.l.b16 %v4577
      %v4674 = vpack.c.b16 %v4659, %v4658
      %v4675 = vpack.c.b16 %v4661, %v4660
      %v4676 = vpack.c.b16 %v4663, %v4662
      %v4677 = vpack.c.b16 %v4665, %v4664
      %v4678 = vpack.c.b16 %v4667, %v4666
      %v4679 = vpack.c.b16 %v4669, %v4668
      %v4680 = vpack.c.b16 %v4671, %v4670
      %v4681 = vpack.c.b16 %v4673, %v4672
      %4690 = vmatpush.bf16.msra.mxu0 %v4681
      %4691 = vmatpush.bf16.msra.mxu0 %v4680
      %4692 = vmatpush.bf16.msra.mxu0 %v4679
      %4693 = vmatpush.bf16.msra.mxu0 %v4678
      %4694 = vmatpush.bf16.msra.mxu0 %v4677
      %4695 = vmatpush.bf16.msra.mxu0 %v4676
      %4696 = vmatpush.bf16.msra.mxu0 %v4675
      %4697 = vmatpush.bf16.msra.mxu0 %v4674
      %4698 = vmatmul.bf16.gmra.mxu0 %v4610
      %v4699 = vpop.f32.mrf.mxu0
      %v4700 = vadd.f32 0.0, %v4699
      %v4701 = vpop.f32.mrf.mxu0
      %v4702 = vadd.f32 0.0, %v4701
      %4703 = vmatmul.bf16.gmra.mxu0 %v4611
      %v4704 = vpop.f32.mrf.mxu0
      %v4705 = vadd.f32 0.0, %v4704
      %v4706 = vpop.f32.mrf.mxu0
      %v4707 = vadd.f32 0.0, %v4706
      %4708 = vmatmul.bf16.gmra.mxu0 %v4612
      %v4709 = vpop.f32.mrf.mxu0
      %v4710 = vadd.f32 0.0, %v4709
      %v4711 = vpop.f32.mrf.mxu0
      %v4712 = vadd.f32 0.0, %v4711
      %4713 = vmatmul.bf16.gmra.mxu0 %v4613
      %v4714 = vpop.f32.mrf.mxu0
      %v4715 = vadd.f32 0.0, %v4714
      %v4716 = vpop.f32.mrf.mxu0
      %v4717 = vadd.f32 0.0, %v4716
      %4718 = vmatmul.bf16.gmra.mxu0 %v4614
      %v4719 = vpop.f32.mrf.mxu0
      %v4720 = vadd.f32 0.0, %v4719
      %v4721 = vpop.f32.mrf.mxu0
      %v4722 = vadd.f32 0.0, %v4721
      %4723 = vmatmul.bf16.gmra.mxu0 %v4615
      %v4724 = vpop.f32.mrf.mxu0
      %v4725 = vadd.f32 0.0, %v4724
      %v4726 = vpop.f32.mrf.mxu0
      %v4727 = vadd.f32 0.0, %v4726
      %4728 = vmatmul.bf16.gmra.mxu0 %v4616
      %v4729 = vpop.f32.mrf.mxu0
      %v4730 = vadd.f32 0.0, %v4729
      %v4731 = vpop.f32.mrf.mxu0
      %v4732 = vadd.f32 0.0, %v4731
      %4733 = vmatmul.bf16.gmra.mxu0 %v4617
      %v4734 = vpop.f32.mrf.mxu0
      %v4735 = vadd.f32 0.0, %v4734
      %v4736 = vpop.f32.mrf.mxu0
      %v4737 = vadd.f32 0.0, %v4736
      %4738 = vmatmul.bf16.gmra.mxu0 %v4618
      %v4739 = vpop.f32.mrf.mxu0
      %v4740 = vadd.f32 0.0, %v4739
      %v4741 = vpop.f32.mrf.mxu0
      %v4742 = vadd.f32 0.0, %v4741
      %4743 = vmatmul.bf16.gmra.mxu0 %v4619
      %v4744 = vpop.f32.mrf.mxu0
      %v4745 = vadd.f32 0.0, %v4744
      %v4746 = vpop.f32.mrf.mxu0
      %v4747 = vadd.f32 0.0, %v4746
      %4748 = vmatmul.bf16.gmra.mxu0 %v4620
      %v4749 = vpop.f32.mrf.mxu0
      %v4750 = vadd.f32 0.0, %v4749
      %v4751 = vpop.f32.mrf.mxu0
      %v4752 = vadd.f32 0.0, %v4751
      %4753 = vmatmul.bf16.gmra.mxu0 %v4621
      %v4754 = vpop.f32.mrf.mxu0
      %v4755 = vadd.f32 0.0, %v4754
      %v4756 = vpop.f32.mrf.mxu0
      %v4757 = vadd.f32 0.0, %v4756
      %4758 = vmatmul.bf16.gmra.mxu0 %v4622
      %v4759 = vpop.f32.mrf.mxu0
      %v4760 = vadd.f32 0.0, %v4759
      %v4761 = vpop.f32.mrf.mxu0
      %v4762 = vadd.f32 0.0, %v4761
      %4763 = vmatmul.bf16.gmra.mxu0 %v4623
      %v4764 = vpop.f32.mrf.mxu0
      %v4765 = vadd.f32 0.0, %v4764
      %v4766 = vpop.f32.mrf.mxu0
      %v4767 = vadd.f32 0.0, %v4766
      %4768 = vmatmul.bf16.gmra.mxu0 %v4624
      %v4769 = vpop.f32.mrf.mxu0
      %v4770 = vadd.f32 0.0, %v4769
      %v4771 = vpop.f32.mrf.mxu0
      %v4772 = vadd.f32 0.0, %v4771
      %4773 = vmatmul.bf16.gmra.mxu0 %v4625
      %v4774 = vpop.f32.mrf.mxu0
      %v4775 = vadd.f32 0.0, %v4774
      %v4776 = vpop.f32.mrf.mxu0
      %v4777 = vadd.f32 0.0, %v4776
      %4778 = vdwg.mxu0
      %v4779 = vadd.f32 %v4258, %v4700
      %v4780 = vadd.f32 %v4260, %v4702
      %v4781 = vadd.f32 %v4263, %v4705
      %v4782 = vadd.f32 %v4265, %v4707
      %v4783 = vadd.f32 %v4268, %v4710
      %v4784 = vadd.f32 %v4270, %v4712
      %v4785 = vadd.f32 %v4273, %v4715
      %v4786 = vadd.f32 %v4275, %v4717
      %v4787 = vadd.f32 %v4278, %v4720
      %v4788 = vadd.f32 %v4280, %v4722
      %v4789 = vadd.f32 %v4283, %v4725
      %v4790 = vadd.f32 %v4285, %v4727
      %v4791 = vadd.f32 %v4288, %v4730
      %v4792 = vadd.f32 %v4290, %v4732
      %v4793 = vadd.f32 %v4293, %v4735
      %v4794 = vadd.f32 %v4295, %v4737
      %v4795 = vadd.f32 %v4298, %v4740
      %v4796 = vadd.f32 %v4300, %v4742
      %v4797 = vadd.f32 %v4303, %v4745
      %v4798 = vadd.f32 %v4305, %v4747
      %v4799 = vadd.f32 %v4308, %v4750
      %v4800 = vadd.f32 %v4310, %v4752
      %v4801 = vadd.f32 %v4313, %v4755
      %v4802 = vadd.f32 %v4315, %v4757
      %v4803 = vadd.f32 %v4318, %v4760
      %v4804 = vadd.f32 %v4320, %v4762
      %v4805 = vadd.f32 %v4323, %v4765
      %v4806 = vadd.f32 %v4325, %v4767
      %v4807 = vadd.f32 %v4328, %v4770
      %v4808 = vadd.f32 %v4330, %v4772
      %v4809 = vadd.f32 %v4333, %v4775
      %v4810 = vadd.f32 %v4335, %v4777
      %v4812 = vshrl.u32 %v3507, 16
      %v4814 = vrot.slane %v4812, 7
      %v4815 = vrot.slane %v4814, 4
      %v4817 = vshrl.u32 %v3508, 16
      %v4819 = vrot.slane %v4817, 7
      %v4820 = vshll.u32 %v3508, 16
      %v4822 = vor.u32 %v4819, %v4820
      %v4823 = vsel %vm3517, %v4815, %v4822
      %v4824 = vrot.slane %v4819, 4
      %v4826 = vshrl.u32 %v3509, 16
      %v4828 = vrot.slane %v4826, 7
      %v4829 = vshll.u32 %v3509, 16
      %v4831 = vor.u32 %v4828, %v4829
      %v4832 = vsel %vm3517, %v4824, %v4831
      %s4833 = scalar_lea.vmem %s4, 192
      %v4834 = vld [vmem:[%s4833] sm:$0xf]
      %v4835 = vld [vmem:[%s4833 + $0x4] sm:$0xf]
      %v4836 = vld [vmem:[%s4833 + $0x8] sm:$0xf]
      %v4837 = vld [vmem:[%s4833 + $0xc] sm:$0xf]
      %v4838 = vld [vmem:[%s4833 + $0x10] sm:$0xf]
      %v4839 = vld [vmem:[%s4833 + $0x14] sm:$0xf]
      %v4840 = vld [vmem:[%s4833 + $0x18] sm:$0xf]
      %v4841 = vld [vmem:[%s4833 + $0x1c] sm:$0xf]
      %v4842 = vld [vmem:[%s4833 + $0x20] sm:$0xf]
      %v4843 = vld [vmem:[%s4833 + $0x24] sm:$0xf]
      %v4844 = vld [vmem:[%s4833 + $0x28] sm:$0xf]
      %v4845 = vld [vmem:[%s4833 + $0x2c] sm:$0xf]
      %v4846 = vld [vmem:[%s4833 + $0x30] sm:$0xf]
      %v4847 = vld [vmem:[%s4833 + $0x34] sm:$0xf]
      %v4848 = vld [vmem:[%s4833 + $0x38] sm:$0xf]
      %v4849 = vld [vmem:[%s4833 + $0x3c] sm:$0xf]
      %v4850 = vunpack.c.l.b16 %v4823
      %v4851 = vunpack.c.l.b16 %v4832
      %v4852 = vpack.c.b16 %v4851, %v4850
      %v4870 = vunpack.c.l.b16 %v4834
      %v4871 = vunpack.c.l.b16 %v4835
      %v4872 = vunpack.c.l.b16 %v4836
      %v4873 = vunpack.c.l.b16 %v4837
      %v4874 = vunpack.c.l.b16 %v4838
      %v4875 = vunpack.c.l.b16 %v4839
      %v4876 = vunpack.c.l.b16 %v4840
      %v4877 = vunpack.c.l.b16 %v4841
      %v4878 = vunpack.c.l.b16 %v4842
      %v4879 = vunpack.c.l.b16 %v4843
      %v4880 = vunpack.c.l.b16 %v4844
      %v4881 = vunpack.c.l.b16 %v4845
      %v4882 = vunpack.c.l.b16 %v4846
      %v4883 = vunpack.c.l.b16 %v4847
      %v4884 = vunpack.c.l.b16 %v4848
      %v4885 = vunpack.c.l.b16 %v4849
      %v4886 = vpack.c.b16 %v4871, %v4870
      %v4887 = vpack.c.b16 %v4873, %v4872
      %v4888 = vpack.c.b16 %v4875, %v4874
      %v4889 = vpack.c.b16 %v4877, %v4876
      %v4890 = vpack.c.b16 %v4879, %v4878
      %v4891 = vpack.c.b16 %v4881, %v4880
      %v4892 = vpack.c.b16 %v4883, %v4882
      %v4893 = vpack.c.b16 %v4885, %v4884
      %4902 = vmatpush.bf16.msra.mxu0 %v4893
      %4903 = vmatpush.bf16.msra.mxu0 %v4892
      %4904 = vmatpush.bf16.msra.mxu0 %v4891
      %4905 = vmatpush.bf16.msra.mxu0 %v4890
      %4906 = vmatpush.bf16.msra.mxu0 %v4889
      %4907 = vmatpush.bf16.msra.mxu0 %v4888
      %4908 = vmatpush.bf16.msra.mxu0 %v4887
      %4909 = vmatpush.bf16.msra.mxu0 %v4886
      %4910 = vmatmul.bf16.gmra.mxu0 %v4169
      %v4911 = vpop.f32.mrf.mxu0
      %v4912 = vadd.f32 0.0, %v4911
      %v4913 = vpop.f32.mrf.mxu0
      %v4914 = vadd.f32 0.0, %v4913
      %4915 = vmatmul.bf16.gmra.mxu0 %v4170
      %v4916 = vpop.f32.mrf.mxu0
      %v4917 = vadd.f32 0.0, %v4916
      %v4918 = vpop.f32.mrf.mxu0
      %v4919 = vadd.f32 0.0, %v4918
      %4920 = vmatmul.bf16.gmra.mxu0 %v4171
      %v4921 = vpop.f32.mrf.mxu0
      %v4922 = vadd.f32 0.0, %v4921
      %v4923 = vpop.f32.mrf.mxu0
      %v4924 = vadd.f32 0.0, %v4923
      %4925 = vmatmul.bf16.gmra.mxu0 %v4172
      %v4926 = vpop.f32.mrf.mxu0
      %v4927 = vadd.f32 0.0, %v4926
      %v4928 = vpop.f32.mrf.mxu0
      %v4929 = vadd.f32 0.0, %v4928
      %4930 = vmatmul.bf16.gmra.mxu0 %v4173
      %v4931 = vpop.f32.mrf.mxu0
      %v4932 = vadd.f32 0.0, %v4931
      %v4933 = vpop.f32.mrf.mxu0
      %v4934 = vadd.f32 0.0, %v4933
      %4935 = vmatmul.bf16.gmra.mxu0 %v4174
      %v4936 = vpop.f32.mrf.mxu0
      %v4937 = vadd.f32 0.0, %v4936
      %v4938 = vpop.f32.mrf.mxu0
      %v4939 = vadd.f32 0.0, %v4938
      %4940 = vmatmul.bf16.gmra.mxu0 %v4175
      %v4941 = vpop.f32.mrf.mxu0
      %v4942 = vadd.f32 0.0, %v4941
      %v4943 = vpop.f32.mrf.mxu0
      %v4944 = vadd.f32 0.0, %v4943
      %4945 = vmatmul.bf16.gmra.mxu0 %v4176
      %v4946 = vpop.f32.mrf.mxu0
      %v4947 = vadd.f32 0.0, %v4946
      %v4948 = vpop.f32.mrf.mxu0
      %v4949 = vadd.f32 0.0, %v4948
      %4950 = vmatmul.bf16.gmra.mxu0 %v4177
      %v4951 = vpop.f32.mrf.mxu0
      %v4952 = vadd.f32 0.0, %v4951
      %v4953 = vpop.f32.mrf.mxu0
      %v4954 = vadd.f32 0.0, %v4953
      %4955 = vmatmul.bf16.gmra.mxu0 %v4178
      %v4956 = vpop.f32.mrf.mxu0
      %v4957 = vadd.f32 0.0, %v4956
      %v4958 = vpop.f32.mrf.mxu0
      %v4959 = vadd.f32 0.0, %v4958
      %4960 = vmatmul.bf16.gmra.mxu0 %v4179
      %v4961 = vpop.f32.mrf.mxu0
      %v4962 = vadd.f32 0.0, %v4961
      %v4963 = vpop.f32.mrf.mxu0
      %v4964 = vadd.f32 0.0, %v4963
      %4965 = vmatmul.bf16.gmra.mxu0 %v4180
      %v4966 = vpop.f32.mrf.mxu0
      %v4967 = vadd.f32 0.0, %v4966
      %v4968 = vpop.f32.mrf.mxu0
      %v4969 = vadd.f32 0.0, %v4968
      %4970 = vmatmul.bf16.gmra.mxu0 %v4181
      %v4971 = vpop.f32.mrf.mxu0
      %v4972 = vadd.f32 0.0, %v4971
      %v4973 = vpop.f32.mrf.mxu0
      %v4974 = vadd.f32 0.0, %v4973
      %4975 = vmatmul.bf16.gmra.mxu0 %v4182
      %v4976 = vpop.f32.mrf.mxu0
      %v4977 = vadd.f32 0.0, %v4976
      %v4978 = vpop.f32.mrf.mxu0
      %v4979 = vadd.f32 0.0, %v4978
      %4980 = vmatmul.bf16.gmra.mxu0 %v4183
      %v4981 = vpop.f32.mrf.mxu0
      %v4982 = vadd.f32 0.0, %v4981
      %v4983 = vpop.f32.mrf.mxu0
      %v4984 = vadd.f32 0.0, %v4983
      %4985 = vmatmul.bf16.gmra.mxu0 %v4852
      %v4986 = vpop.f32.mrf.mxu0
      %v4987 = vadd.f32 0.0, %v4986
      %v4988 = vpop.f32.mrf.mxu0
      %v4989 = vadd.f32 0.0, %v4988
      %4990 = vdwg.mxu0
      %v4991 = vadd.f32 %v4779, %v4912
      %v4992 = vadd.f32 %v4780, %v4914
      %v4993 = vadd.f32 %v4781, %v4917
      %v4994 = vadd.f32 %v4782, %v4919
      %v4995 = vadd.f32 %v4783, %v4922
      %v4996 = vadd.f32 %v4784, %v4924
      %v4997 = vadd.f32 %v4785, %v4927
      %v4998 = vadd.f32 %v4786, %v4929
      %v4999 = vadd.f32 %v4787, %v4932
      %v5000 = vadd.f32 %v4788, %v4934
      %v5001 = vadd.f32 %v4789, %v4937
      %v5002 = vadd.f32 %v4790, %v4939
      %v5003 = vadd.f32 %v4791, %v4942
      %v5004 = vadd.f32 %v4792, %v4944
      %v5005 = vadd.f32 %v4793, %v4947
      %v5006 = vadd.f32 %v4794, %v4949
      %v5007 = vadd.f32 %v4795, %v4952
      %v5008 = vadd.f32 %v4796, %v4954
      %v5009 = vadd.f32 %v4797, %v4957
      %v5010 = vadd.f32 %v4798, %v4959
      %v5011 = vadd.f32 %v4799, %v4962
      %v5012 = vadd.f32 %v4800, %v4964
      %v5013 = vadd.f32 %v4801, %v4967
      %v5014 = vadd.f32 %v4802, %v4969
      %v5015 = vadd.f32 %v4803, %v4972
      %v5016 = vadd.f32 %v4804, %v4974
      %v5017 = vadd.f32 %v4805, %v4977
      %v5018 = vadd.f32 %v4806, %v4979
      %v5019 = vadd.f32 %v4807, %v4982
      %v5020 = vadd.f32 %v4808, %v4984
      %v5021 = vadd.f32 %v4809, %v4987
      %v5022 = vadd.f32 %v4810, %v4989
      %s5023 = scalar_lea.vmem %s4, 256
      %v5024 = vld [vmem:[%s5023] sm:$0xf]
      %v5025 = vld [vmem:[%s5023 + $0x4] sm:$0xf]
      %v5026 = vld [vmem:[%s5023 + $0x8] sm:$0xf]
      %v5027 = vld [vmem:[%s5023 + $0xc] sm:$0xf]
      %v5028 = vld [vmem:[%s5023 + $0x10] sm:$0xf]
      %v5029 = vld [vmem:[%s5023 + $0x14] sm:$0xf]
      %v5030 = vld [vmem:[%s5023 + $0x18] sm:$0xf]
      %v5031 = vld [vmem:[%s5023 + $0x1c] sm:$0xf]
      %v5032 = vld [vmem:[%s5023 + $0x20] sm:$0xf]
      %v5033 = vld [vmem:[%s5023 + $0x24] sm:$0xf]
      %v5034 = vld [vmem:[%s5023 + $0x28] sm:$0xf]
      %v5035 = vld [vmem:[%s5023 + $0x2c] sm:$0xf]
      %v5036 = vld [vmem:[%s5023 + $0x30] sm:$0xf]
      %v5037 = vld [vmem:[%s5023 + $0x34] sm:$0xf]
      %v5038 = vld [vmem:[%s5023 + $0x38] sm:$0xf]
      %v5039 = vld [vmem:[%s5023 + $0x3c] sm:$0xf]
      %v5042 = vunpack.c.l.b16 %v3508
      %v5043 = vunpack.c.l.b16 %v3509
      %v5044 = vpack.c.b16 %v5043, %v5042
      %v5062 = vunpack.c.l.b16 %v5024
      %v5063 = vunpack.c.l.b16 %v5025
      %v5064 = vunpack.c.l.b16 %v5026
      %v5065 = vunpack.c.l.b16 %v5027
      %v5066 = vunpack.c.l.b16 %v5028
      %v5067 = vunpack.c.l.b16 %v5029
      %v5068 = vunpack.c.l.b16 %v5030
      %v5069 = vunpack.c.l.b16 %v5031
      %v5070 = vunpack.c.l.b16 %v5032
      %v5071 = vunpack.c.l.b16 %v5033
      %v5072 = vunpack.c.l.b16 %v5034
      %v5073 = vunpack.c.l.b16 %v5035
      %v5074 = vunpack.c.l.b16 %v5036
      %v5075 = vunpack.c.l.b16 %v5037
      %v5076 = vunpack.c.l.b16 %v5038
      %v5077 = vunpack.c.l.b16 %v5039
      %v5078 = vpack.c.b16 %v5063, %v5062
      %v5079 = vpack.c.b16 %v5065, %v5064
      %v5080 = vpack.c.b16 %v5067, %v5066
      %v5081 = vpack.c.b16 %v5069, %v5068
      %v5082 = vpack.c.b16 %v5071, %v5070
      %v5083 = vpack.c.b16 %v5073, %v5072
      %v5084 = vpack.c.b16 %v5075, %v5074
      %v5085 = vpack.c.b16 %v5077, %v5076
      %5094 = vmatpush.bf16.msra.mxu0 %v5085
      %5095 = vmatpush.bf16.msra.mxu0 %v5084
      %5096 = vmatpush.bf16.msra.mxu0 %v5083
      %5097 = vmatpush.bf16.msra.mxu0 %v5082
      %5098 = vmatpush.bf16.msra.mxu0 %v5081
      %5099 = vmatpush.bf16.msra.mxu0 %v5080
      %5100 = vmatpush.bf16.msra.mxu0 %v5079
      %5101 = vmatpush.bf16.msra.mxu0 %v5078
      %5102 = vmatmul.bf16.gmra.mxu0 %v3968
      %v5103 = vpop.f32.mrf.mxu0
      %v5104 = vadd.f32 0.0, %v5103
      %v5105 = vpop.f32.mrf.mxu0
      %v5106 = vadd.f32 0.0, %v5105
      %5107 = vmatmul.bf16.gmra.mxu0 %v3969
      %v5108 = vpop.f32.mrf.mxu0
      %v5109 = vadd.f32 0.0, %v5108
      %v5110 = vpop.f32.mrf.mxu0
      %v5111 = vadd.f32 0.0, %v5110
      %5112 = vmatmul.bf16.gmra.mxu0 %v3970
      %v5113 = vpop.f32.mrf.mxu0
      %v5114 = vadd.f32 0.0, %v5113
      %v5115 = vpop.f32.mrf.mxu0
      %v5116 = vadd.f32 0.0, %v5115
      %5117 = vmatmul.bf16.gmra.mxu0 %v3971
      %v5118 = vpop.f32.mrf.mxu0
      %v5119 = vadd.f32 0.0, %v5118
      %v5120 = vpop.f32.mrf.mxu0
      %v5121 = vadd.f32 0.0, %v5120
      %5122 = vmatmul.bf16.gmra.mxu0 %v3972
      %v5123 = vpop.f32.mrf.mxu0
      %v5124 = vadd.f32 0.0, %v5123
      %v5125 = vpop.f32.mrf.mxu0
      %v5126 = vadd.f32 0.0, %v5125
      %5127 = vmatmul.bf16.gmra.mxu0 %v3973
      %v5128 = vpop.f32.mrf.mxu0
      %v5129 = vadd.f32 0.0, %v5128
      %v5130 = vpop.f32.mrf.mxu0
      %v5131 = vadd.f32 0.0, %v5130
      %5132 = vmatmul.bf16.gmra.mxu0 %v3974
      %v5133 = vpop.f32.mrf.mxu0
      %v5134 = vadd.f32 0.0, %v5133
      %v5135 = vpop.f32.mrf.mxu0
      %v5136 = vadd.f32 0.0, %v5135
      %5137 = vmatmul.bf16.gmra.mxu0 %v3975
      %v5138 = vpop.f32.mrf.mxu0
      %v5139 = vadd.f32 0.0, %v5138
      %v5140 = vpop.f32.mrf.mxu0
      %v5141 = vadd.f32 0.0, %v5140
      %5142 = vmatmul.bf16.gmra.mxu0 %v3976
      %v5143 = vpop.f32.mrf.mxu0
      %v5144 = vadd.f32 0.0, %v5143
      %v5145 = vpop.f32.mrf.mxu0
      %v5146 = vadd.f32 0.0, %v5145
      %5147 = vmatmul.bf16.gmra.mxu0 %v3977
      %v5148 = vpop.f32.mrf.mxu0
      %v5149 = vadd.f32 0.0, %v5148
      %v5150 = vpop.f32.mrf.mxu0
      %v5151 = vadd.f32 0.0, %v5150
      %5152 = vmatmul.bf16.gmra.mxu0 %v3978
      %v5153 = vpop.f32.mrf.mxu0
      %v5154 = vadd.f32 0.0, %v5153
      %v5155 = vpop.f32.mrf.mxu0
      %v5156 = vadd.f32 0.0, %v5155
      %5157 = vmatmul.bf16.gmra.mxu0 %v3979
      %v5158 = vpop.f32.mrf.mxu0
      %v5159 = vadd.f32 0.0, %v5158
      %v5160 = vpop.f32.mrf.mxu0
      %v5161 = vadd.f32 0.0, %v5160
      %5162 = vmatmul.bf16.gmra.mxu0 %v3980
      %v5163 = vpop.f32.mrf.mxu0
      %v5164 = vadd.f32 0.0, %v5163
      %v5165 = vpop.f32.mrf.mxu0
      %v5166 = vadd.f32 0.0, %v5165
      %5167 = vmatmul.bf16.gmra.mxu0 %v3981
      %v5168 = vpop.f32.mrf.mxu0
      %v5169 = vadd.f32 0.0, %v5168
      %v5170 = vpop.f32.mrf.mxu0
      %v5171 = vadd.f32 0.0, %v5170
      %5172 = vmatmul.bf16.gmra.mxu0 %v3982
      %v5173 = vpop.f32.mrf.mxu0
      %v5174 = vadd.f32 0.0, %v5173
      %v5175 = vpop.f32.mrf.mxu0
      %v5176 = vadd.f32 0.0, %v5175
      %5177 = vmatmul.bf16.gmra.mxu0 %v5044
      %v5178 = vpop.f32.mrf.mxu0
      %v5179 = vadd.f32 0.0, %v5178
      %v5180 = vpop.f32.mrf.mxu0
      %v5181 = vadd.f32 0.0, %v5180
      %5182 = vdwg.mxu0
      %v5183 = vadd.f32 %v4991, %v5104
      %v5184 = vadd.f32 %v4992, %v5106
      %v5185 = vadd.f32 %v4993, %v5109
      %v5186 = vadd.f32 %v4994, %v5111
      %v5187 = vadd.f32 %v4995, %v5114
      %v5188 = vadd.f32 %v4996, %v5116
      %v5189 = vadd.f32 %v4997, %v5119
      %v5190 = vadd.f32 %v4998, %v5121
      %v5191 = vadd.f32 %v4999, %v5124
      %v5192 = vadd.f32 %v5000, %v5126
      %v5193 = vadd.f32 %v5001, %v5129
      %v5194 = vadd.f32 %v5002, %v5131
      %v5195 = vadd.f32 %v5003, %v5134
      %v5196 = vadd.f32 %v5004, %v5136
      %v5197 = vadd.f32 %v5005, %v5139
      %v5198 = vadd.f32 %v5006, %v5141
      %v5199 = vadd.f32 %v5007, %v5144
      %v5200 = vadd.f32 %v5008, %v5146
      %v5201 = vadd.f32 %v5009, %v5149
      %v5202 = vadd.f32 %v5010, %v5151
      %v5203 = vadd.f32 %v5011, %v5154
      %v5204 = vadd.f32 %v5012, %v5156
      %v5205 = vadd.f32 %v5013, %v5159
      %v5206 = vadd.f32 %v5014, %v5161
      %v5207 = vadd.f32 %v5015, %v5164
      %v5208 = vadd.f32 %v5016, %v5166
      %v5209 = vadd.f32 %v5017, %v5169
      %v5210 = vadd.f32 %v5018, %v5171
      %v5211 = vadd.f32 %v5019, %v5174
      %v5212 = vadd.f32 %v5020, %v5176
      %v5213 = vadd.f32 %v5021, %v5179
      %v5214 = vadd.f32 %v5022, %v5181
      %v5215 = vrot.slane %v4817, 4
      %v5216 = vrot.slane %v4820, 5
      %v5217 = vor.u32 %v5215, %v5216
      %v5218 = vrot.slane %v5217, 4
      %v5219 = vrot.slane %v4829, 5
      %v5220 = vsel %vm352, %v5218, %v5219
      %v5221 = vrot.slane %v4826, 4
      %v5222 = vor.u32 %v5221, %v5219
      %v5223 = vrot.slane %v5222, 4
      %v5225 = vshll.u32 %v3510, 16
      %v5227 = vrot.slane %v5225, 5
      %v5228 = vsel %vm352, %v5223, %v5227
      %s5229 = scalar_lea.vmem %s4, 320
      %v5230 = vld [vmem:[%s5229] sm:$0xf]
      %v5231 = vld [vmem:[%s5229 + $0x4] sm:$0xf]
      %v5232 = vld [vmem:[%s5229 + $0x8] sm:$0xf]
      %v5233 = vld [vmem:[%s5229 + $0xc] sm:$0xf]
      %v5234 = vld [vmem:[%s5229 + $0x10] sm:$0xf]
      %v5235 = vld [vmem:[%s5229 + $0x14] sm:$0xf]
      %v5236 = vld [vmem:[%s5229 + $0x18] sm:$0xf]
      %v5237 = vld [vmem:[%s5229 + $0x1c] sm:$0xf]
      %v5238 = vld [vmem:[%s5229 + $0x20] sm:$0xf]
      %v5239 = vld [vmem:[%s5229 + $0x24] sm:$0xf]
      %v5240 = vld [vmem:[%s5229 + $0x28] sm:$0xf]
      %v5241 = vld [vmem:[%s5229 + $0x2c] sm:$0xf]
      %v5242 = vld [vmem:[%s5229 + $0x30] sm:$0xf]
      %v5243 = vld [vmem:[%s5229 + $0x34] sm:$0xf]
      %v5244 = vld [vmem:[%s5229 + $0x38] sm:$0xf]
      %v5245 = vld [vmem:[%s5229 + $0x3c] sm:$0xf]
      %v5246 = vunpack.c.l.b16 %v5220
      %v5247 = vunpack.c.l.b16 %v5228
      %v5248 = vpack.c.b16 %v5247, %v5246
      %v5266 = vunpack.c.l.b16 %v5230
      %v5267 = vunpack.c.l.b16 %v5231
      %v5268 = vunpack.c.l.b16 %v5232
      %v5269 = vunpack.c.l.b16 %v5233
      %v5270 = vunpack.c.l.b16 %v5234
      %v5271 = vunpack.c.l.b16 %v5235
      %v5272 = vunpack.c.l.b16 %v5236
      %v5273 = vunpack.c.l.b16 %v5237
      %v5274 = vunpack.c.l.b16 %v5238
      %v5275 = vunpack.c.l.b16 %v5239
      %v5276 = vunpack.c.l.b16 %v5240
      %v5277 = vunpack.c.l.b16 %v5241
      %v5278 = vunpack.c.l.b16 %v5242
      %v5279 = vunpack.c.l.b16 %v5243
      %v5280 = vunpack.c.l.b16 %v5244
      %v5281 = vunpack.c.l.b16 %v5245
      %v5282 = vpack.c.b16 %v5267, %v5266
      %v5283 = vpack.c.b16 %v5269, %v5268
      %v5284 = vpack.c.b16 %v5271, %v5270
      %v5285 = vpack.c.b16 %v5273, %v5272
      %v5286 = vpack.c.b16 %v5275, %v5274
      %v5287 = vpack.c.b16 %v5277, %v5276
      %v5288 = vpack.c.b16 %v5279, %v5278
      %v5289 = vpack.c.b16 %v5281, %v5280
      %5298 = vmatpush.bf16.msra.mxu0 %v5289
      %5299 = vmatpush.bf16.msra.mxu0 %v5288
      %5300 = vmatpush.bf16.msra.mxu0 %v5287
      %5301 = vmatpush.bf16.msra.mxu0 %v5286
      %5302 = vmatpush.bf16.msra.mxu0 %v5285
      %5303 = vmatpush.bf16.msra.mxu0 %v5284
      %5304 = vmatpush.bf16.msra.mxu0 %v5283
      %5305 = vmatpush.bf16.msra.mxu0 %v5282
      %5306 = vmatmul.bf16.gmra.mxu0 %v4611
      %v5307 = vpop.f32.mrf.mxu0
      %v5308 = vadd.f32 0.0, %v5307
      %v5309 = vpop.f32.mrf.mxu0
      %v5310 = vadd.f32 0.0, %v5309
      %5311 = vmatmul.bf16.gmra.mxu0 %v4612
      %v5312 = vpop.f32.mrf.mxu0
      %v5313 = vadd.f32 0.0, %v5312
      %v5314 = vpop.f32.mrf.mxu0
      %v5315 = vadd.f32 0.0, %v5314
      %5316 = vmatmul.bf16.gmra.mxu0 %v4613
      %v5317 = vpop.f32.mrf.mxu0
      %v5318 = vadd.f32 0.0, %v5317
      %v5319 = vpop.f32.mrf.mxu0
      %v5320 = vadd.f32 0.0, %v5319
      %5321 = vmatmul.bf16.gmra.mxu0 %v4614
      %v5322 = vpop.f32.mrf.mxu0
      %v5323 = vadd.f32 0.0, %v5322
      %v5324 = vpop.f32.mrf.mxu0
      %v5325 = vadd.f32 0.0, %v5324
      %5326 = vmatmul.bf16.gmra.mxu0 %v4615
      %v5327 = vpop.f32.mrf.mxu0
      %v5328 = vadd.f32 0.0, %v5327
      %v5329 = vpop.f32.mrf.mxu0
      %v5330 = vadd.f32 0.0, %v5329
      %5331 = vmatmul.bf16.gmra.mxu0 %v4616
      %v5332 = vpop.f32.mrf.mxu0
      %v5333 = vadd.f32 0.0, %v5332
      %v5334 = vpop.f32.mrf.mxu0
      %v5335 = vadd.f32 0.0, %v5334
      %5336 = vmatmul.bf16.gmra.mxu0 %v4617
      %v5337 = vpop.f32.mrf.mxu0
      %v5338 = vadd.f32 0.0, %v5337
      %v5339 = vpop.f32.mrf.mxu0
      %v5340 = vadd.f32 0.0, %v5339
      %5341 = vmatmul.bf16.gmra.mxu0 %v4618
      %v5342 = vpop.f32.mrf.mxu0
      %v5343 = vadd.f32 0.0, %v5342
      %v5344 = vpop.f32.mrf.mxu0
      %v5345 = vadd.f32 0.0, %v5344
      %5346 = vmatmul.bf16.gmra.mxu0 %v4619
      %v5347 = vpop.f32.mrf.mxu0
      %v5348 = vadd.f32 0.0, %v5347
      %v5349 = vpop.f32.mrf.mxu0
      %v5350 = vadd.f32 0.0, %v5349
      %5351 = vmatmul.bf16.gmra.mxu0 %v4620
      %v5352 = vpop.f32.mrf.mxu0
      %v5353 = vadd.f32 0.0, %v5352
      %v5354 = vpop.f32.mrf.mxu0
      %v5355 = vadd.f32 0.0, %v5354
      %5356 = vmatmul.bf16.gmra.mxu0 %v4621
      %v5357 = vpop.f32.mrf.mxu0
      %v5358 = vadd.f32 0.0, %v5357
      %v5359 = vpop.f32.mrf.mxu0
      %v5360 = vadd.f32 0.0, %v5359
      %5361 = vmatmul.bf16.gmra.mxu0 %v4622
      %v5362 = vpop.f32.mrf.mxu0
      %v5363 = vadd.f32 0.0, %v5362
      %v5364 = vpop.f32.mrf.mxu0
      %v5365 = vadd.f32 0.0, %v5364
      %5366 = vmatmul.bf16.gmra.mxu0 %v4623
      %v5367 = vpop.f32.mrf.mxu0
      %v5368 = vadd.f32 0.0, %v5367
      %v5369 = vpop.f32.mrf.mxu0
      %v5370 = vadd.f32 0.0, %v5369
      %5371 = vmatmul.bf16.gmra.mxu0 %v4624
      %v5372 = vpop.f32.mrf.mxu0
      %v5373 = vadd.f32 0.0, %v5372
      %v5374 = vpop.f32.mrf.mxu0
      %v5375 = vadd.f32 0.0, %v5374
      %5376 = vmatmul.bf16.gmra.mxu0 %v4625
      %v5377 = vpop.f32.mrf.mxu0
      %v5378 = vadd.f32 0.0, %v5377
      %v5379 = vpop.f32.mrf.mxu0
      %v5380 = vadd.f32 0.0, %v5379
      %5381 = vmatmul.bf16.gmra.mxu0 %v5248
      %v5382 = vpop.f32.mrf.mxu0
      %v5383 = vadd.f32 0.0, %v5382
      %v5384 = vpop.f32.mrf.mxu0
      %v5385 = vadd.f32 0.0, %v5384
      %5386 = vdwg.mxu0
      %v5387 = vadd.f32 %v5183, %v5308
      %v5388 = vadd.f32 %v5184, %v5310
      %v5389 = vadd.f32 %v5185, %v5313
      %v5390 = vadd.f32 %v5186, %v5315
      %v5391 = vadd.f32 %v5187, %v5318
      %v5392 = vadd.f32 %v5188, %v5320
      %v5393 = vadd.f32 %v5189, %v5323
      %v5394 = vadd.f32 %v5190, %v5325
      %v5395 = vadd.f32 %v5191, %v5328
      %v5396 = vadd.f32 %v5192, %v5330
      %v5397 = vadd.f32 %v5193, %v5333
      %v5398 = vadd.f32 %v5194, %v5335
      %v5399 = vadd.f32 %v5195, %v5338
      %v5400 = vadd.f32 %v5196, %v5340
      %v5401 = vadd.f32 %v5197, %v5343
      %v5402 = vadd.f32 %v5198, %v5345
      %v5403 = vadd.f32 %v5199, %v5348
      %v5404 = vadd.f32 %v5200, %v5350
      %v5405 = vadd.f32 %v5201, %v5353
      %v5406 = vadd.f32 %v5202, %v5355
      %v5407 = vadd.f32 %v5203, %v5358
      %v5408 = vadd.f32 %v5204, %v5360
      %v5409 = vadd.f32 %v5205, %v5363
      %v5410 = vadd.f32 %v5206, %v5365
      %v5411 = vadd.f32 %v5207, %v5368
      %v5412 = vadd.f32 %v5208, %v5370
      %v5413 = vadd.f32 %v5209, %v5373
      %v5414 = vadd.f32 %v5210, %v5375
      %v5415 = vadd.f32 %v5211, %v5378
      %v5416 = vadd.f32 %v5212, %v5380
      %v5417 = vadd.f32 %v5213, %v5383
      %v5418 = vadd.f32 %v5214, %v5385
      %v5420 = vshrl.u32 %v3511, 16
      %v5422 = vrot.slane %v5420, 7
      %v5423 = vrot.slane %v5422, 4
      %v5425 = vshrl.u32 %v3512, 16
      %v5427 = vrot.slane %v5425, 7
      %v5428 = vshll.u32 %v3512, 16
      %v5430 = vor.u32 %v5427, %v5428
      %v5431 = vsel %vm3517, %v5423, %v5430
      %v5432 = vrot.slane %v5427, 4
      %v5434 = vshrl.u32 %v3513, 16
      %v5436 = vrot.slane %v5434, 7
      %v5437 = vshll.u32 %v3513, 16
      %v5439 = vor.u32 %v5436, %v5437
      %v5440 = vsel %vm3517, %v5432, %v5439
      %s5441 = scalar_lea.vmem %s4, 384
      %v5442 = vld [vmem:[%s5441] sm:$0xf]
      %v5443 = vld [vmem:[%s5441 + $0x4] sm:$0xf]
      %v5444 = vld [vmem:[%s5441 + $0x8] sm:$0xf]
      %v5445 = vld [vmem:[%s5441 + $0xc] sm:$0xf]
      %v5446 = vld [vmem:[%s5441 + $0x10] sm:$0xf]
      %v5447 = vld [vmem:[%s5441 + $0x14] sm:$0xf]
      %v5448 = vld [vmem:[%s5441 + $0x18] sm:$0xf]
      %v5449 = vld [vmem:[%s5441 + $0x1c] sm:$0xf]
      %v5450 = vld [vmem:[%s5441 + $0x20] sm:$0xf]
      %v5451 = vld [vmem:[%s5441 + $0x24] sm:$0xf]
      %v5452 = vld [vmem:[%s5441 + $0x28] sm:$0xf]
      %v5453 = vld [vmem:[%s5441 + $0x2c] sm:$0xf]
      %v5454 = vld [vmem:[%s5441 + $0x30] sm:$0xf]
      %v5455 = vld [vmem:[%s5441 + $0x34] sm:$0xf]
      %v5456 = vld [vmem:[%s5441 + $0x38] sm:$0xf]
      %v5457 = vld [vmem:[%s5441 + $0x3c] sm:$0xf]
      %v5458 = vunpack.c.l.b16 %v5431
      %v5459 = vunpack.c.l.b16 %v5440
      %v5460 = vpack.c.b16 %v5459, %v5458
      %v5478 = vunpack.c.l.b16 %v5442
      %v5479 = vunpack.c.l.b16 %v5443
      %v5480 = vunpack.c.l.b16 %v5444
      %v5481 = vunpack.c.l.b16 %v5445
      %v5482 = vunpack.c.l.b16 %v5446
      %v5483 = vunpack.c.l.b16 %v5447
      %v5484 = vunpack.c.l.b16 %v5448
      %v5485 = vunpack.c.l.b16 %v5449
      %v5486 = vunpack.c.l.b16 %v5450
      %v5487 = vunpack.c.l.b16 %v5451
      %v5488 = vunpack.c.l.b16 %v5452
      %v5489 = vunpack.c.l.b16 %v5453
      %v5490 = vunpack.c.l.b16 %v5454
      %v5491 = vunpack.c.l.b16 %v5455
      %v5492 = vunpack.c.l.b16 %v5456
      %v5493 = vunpack.c.l.b16 %v5457
      %v5494 = vpack.c.b16 %v5479, %v5478
      %v5495 = vpack.c.b16 %v5481, %v5480
      %v5496 = vpack.c.b16 %v5483, %v5482
      %v5497 = vpack.c.b16 %v5485, %v5484
      %v5498 = vpack.c.b16 %v5487, %v5486
      %v5499 = vpack.c.b16 %v5489, %v5488
      %v5500 = vpack.c.b16 %v5491, %v5490
      %v5501 = vpack.c.b16 %v5493, %v5492
      %5510 = vmatpush.bf16.msra.mxu0 %v5501
      %5511 = vmatpush.bf16.msra.mxu0 %v5500
      %5512 = vmatpush.bf16.msra.mxu0 %v5499
      %5513 = vmatpush.bf16.msra.mxu0 %v5498
      %5514 = vmatpush.bf16.msra.mxu0 %v5497
      %5515 = vmatpush.bf16.msra.mxu0 %v5496
      %5516 = vmatpush.bf16.msra.mxu0 %v5495
      %5517 = vmatpush.bf16.msra.mxu0 %v5494
      %5518 = vmatmul.bf16.gmra.mxu0 %v4170
      %v5519 = vpop.f32.mrf.mxu0
      %v5520 = vadd.f32 0.0, %v5519
      %v5521 = vpop.f32.mrf.mxu0
      %v5522 = vadd.f32 0.0, %v5521
      %5523 = vmatmul.bf16.gmra.mxu0 %v4171
      %v5524 = vpop.f32.mrf.mxu0
      %v5525 = vadd.f32 0.0, %v5524
      %v5526 = vpop.f32.mrf.mxu0
      %v5527 = vadd.f32 0.0, %v5526
      %5528 = vmatmul.bf16.gmra.mxu0 %v4172
      %v5529 = vpop.f32.mrf.mxu0
      %v5530 = vadd.f32 0.0, %v5529
      %v5531 = vpop.f32.mrf.mxu0
      %v5532 = vadd.f32 0.0, %v5531
      %5533 = vmatmul.bf16.gmra.mxu0 %v4173
      %v5534 = vpop.f32.mrf.mxu0
      %v5535 = vadd.f32 0.0, %v5534
      %v5536 = vpop.f32.mrf.mxu0
      %v5537 = vadd.f32 0.0, %v5536
      %5538 = vmatmul.bf16.gmra.mxu0 %v4174
      %v5539 = vpop.f32.mrf.mxu0
      %v5540 = vadd.f32 0.0, %v5539
      %v5541 = vpop.f32.mrf.mxu0
      %v5542 = vadd.f32 0.0, %v5541
      %5543 = vmatmul.bf16.gmra.mxu0 %v4175
      %v5544 = vpop.f32.mrf.mxu0
      %v5545 = vadd.f32 0.0, %v5544
      %v5546 = vpop.f32.mrf.mxu0
      %v5547 = vadd.f32 0.0, %v5546
      %5548 = vmatmul.bf16.gmra.mxu0 %v4176
      %v5549 = vpop.f32.mrf.mxu0
      %v5550 = vadd.f32 0.0, %v5549
      %v5551 = vpop.f32.mrf.mxu0
      %v5552 = vadd.f32 0.0, %v5551
      %5553 = vmatmul.bf16.gmra.mxu0 %v4177
      %v5554 = vpop.f32.mrf.mxu0
      %v5555 = vadd.f32 0.0, %v5554
      %v5556 = vpop.f32.mrf.mxu0
      %v5557 = vadd.f32 0.0, %v5556
      %5558 = vmatmul.bf16.gmra.mxu0 %v4178
      %v5559 = vpop.f32.mrf.mxu0
      %v5560 = vadd.f32 0.0, %v5559
      %v5561 = vpop.f32.mrf.mxu0
      %v5562 = vadd.f32 0.0, %v5561
      %5563 = vmatmul.bf16.gmra.mxu0 %v4179
      %v5564 = vpop.f32.mrf.mxu0
      %v5565 = vadd.f32 0.0, %v5564
      %v5566 = vpop.f32.mrf.mxu0
      %v5567 = vadd.f32 0.0, %v5566
      %5568 = vmatmul.bf16.gmra.mxu0 %v4180
      %v5569 = vpop.f32.mrf.mxu0
      %v5570 = vadd.f32 0.0, %v5569
      %v5571 = vpop.f32.mrf.mxu0
      %v5572 = vadd.f32 0.0, %v5571
      %5573 = vmatmul.bf16.gmra.mxu0 %v4181
      %v5574 = vpop.f32.mrf.mxu0
      %v5575 = vadd.f32 0.0, %v5574
      %v5576 = vpop.f32.mrf.mxu0
      %v5577 = vadd.f32 0.0, %v5576
      %5578 = vmatmul.bf16.gmra.mxu0 %v4182
      %v5579 = vpop.f32.mrf.mxu0
      %v5580 = vadd.f32 0.0, %v5579
      %v5581 = vpop.f32.mrf.mxu0
      %v5582 = vadd.f32 0.0, %v5581
      %5583 = vmatmul.bf16.gmra.mxu0 %v4183
      %v5584 = vpop.f32.mrf.mxu0
      %v5585 = vadd.f32 0.0, %v5584
      %v5586 = vpop.f32.mrf.mxu0
      %v5587 = vadd.f32 0.0, %v5586
      %5588 = vmatmul.bf16.gmra.mxu0 %v4852
      %v5589 = vpop.f32.mrf.mxu0
      %v5590 = vadd.f32 0.0, %v5589
      %v5591 = vpop.f32.mrf.mxu0
      %v5592 = vadd.f32 0.0, %v5591
      %5593 = vmatmul.bf16.gmra.mxu0 %v5460
      %v5594 = vpop.f32.mrf.mxu0
      %v5595 = vadd.f32 0.0, %v5594
      %v5596 = vpop.f32.mrf.mxu0
      %v5597 = vadd.f32 0.0, %v5596
      %5598 = vdwg.mxu0
      %v5599 = vadd.f32 %v5387, %v5520
      %v5600 = vadd.f32 %v5388, %v5522
      %v5601 = vadd.f32 %v5389, %v5525
      %v5602 = vadd.f32 %v5390, %v5527
      %v5603 = vadd.f32 %v5391, %v5530
      %v5604 = vadd.f32 %v5392, %v5532
      %v5605 = vadd.f32 %v5393, %v5535
      %v5606 = vadd.f32 %v5394, %v5537
      %v5607 = vadd.f32 %v5395, %v5540
      %v5608 = vadd.f32 %v5396, %v5542
      %v5609 = vadd.f32 %v5397, %v5545
      %v5610 = vadd.f32 %v5398, %v5547
      %v5611 = vadd.f32 %v5399, %v5550
      %v5612 = vadd.f32 %v5400, %v5552
      %v5613 = vadd.f32 %v5401, %v5555
      %v5614 = vadd.f32 %v5402, %v5557
      %v5615 = vadd.f32 %v5403, %v5560
      %v5616 = vadd.f32 %v5404, %v5562
      %v5617 = vadd.f32 %v5405, %v5565
      %v5618 = vadd.f32 %v5406, %v5567
      %v5619 = vadd.f32 %v5407, %v5570
      %v5620 = vadd.f32 %v5408, %v5572
      %v5621 = vadd.f32 %v5409, %v5575
      %v5622 = vadd.f32 %v5410, %v5577
      %v5623 = vadd.f32 %v5411, %v5580
      %v5624 = vadd.f32 %v5412, %v5582
      %v5625 = vadd.f32 %v5413, %v5585
      %v5626 = vadd.f32 %v5414, %v5587
      %v5627 = vadd.f32 %v5415, %v5590
      %v5628 = vadd.f32 %v5416, %v5592
      %v5629 = vadd.f32 %v5417, %v5595
      %v5630 = vadd.f32 %v5418, %v5597
      %s5631 = scalar_lea.vmem %s4, 448
      %v5632 = vld [vmem:[%s5631] sm:$0xf]
      %v5633 = vld [vmem:[%s5631 + $0x4] sm:$0xf]
      %v5634 = vld [vmem:[%s5631 + $0x8] sm:$0xf]
      %v5635 = vld [vmem:[%s5631 + $0xc] sm:$0xf]
      %v5636 = vld [vmem:[%s5631 + $0x10] sm:$0xf]
      %v5637 = vld [vmem:[%s5631 + $0x14] sm:$0xf]
      %v5638 = vld [vmem:[%s5631 + $0x18] sm:$0xf]
      %v5639 = vld [vmem:[%s5631 + $0x1c] sm:$0xf]
      %v5640 = vld [vmem:[%s5631 + $0x20] sm:$0xf]
      %v5641 = vld [vmem:[%s5631 + $0x24] sm:$0xf]
      %v5642 = vld [vmem:[%s5631 + $0x28] sm:$0xf]
      %v5643 = vld [vmem:[%s5631 + $0x2c] sm:$0xf]
      %v5644 = vld [vmem:[%s5631 + $0x30] sm:$0xf]
      %v5645 = vld [vmem:[%s5631 + $0x34] sm:$0xf]
      %v5646 = vld [vmem:[%s5631 + $0x38] sm:$0xf]
      %v5647 = vld [vmem:[%s5631 + $0x3c] sm:$0xf]
      %v5650 = vunpack.c.l.b16 %v3512
      %v5651 = vunpack.c.l.b16 %v3513
      %v5652 = vpack.c.b16 %v5651, %v5650
      %v5670 = vunpack.c.l.b16 %v5632
      %v5671 = vunpack.c.l.b16 %v5633
      %v5672 = vunpack.c.l.b16 %v5634
      %v5673 = vunpack.c.l.b16 %v5635
      %v5674 = vunpack.c.l.b16 %v5636
      %v5675 = vunpack.c.l.b16 %v5637
      %v5676 = vunpack.c.l.b16 %v5638
      %v5677 = vunpack.c.l.b16 %v5639
      %v5678 = vunpack.c.l.b16 %v5640
      %v5679 = vunpack.c.l.b16 %v5641
      %v5680 = vunpack.c.l.b16 %v5642
      %v5681 = vunpack.c.l.b16 %v5643
      %v5682 = vunpack.c.l.b16 %v5644
      %v5683 = vunpack.c.l.b16 %v5645
      %v5684 = vunpack.c.l.b16 %v5646
      %v5685 = vunpack.c.l.b16 %v5647
      %v5686 = vpack.c.b16 %v5671, %v5670
      %v5687 = vpack.c.b16 %v5673, %v5672
      %v5688 = vpack.c.b16 %v5675, %v5674
      %v5689 = vpack.c.b16 %v5677, %v5676
      %v5690 = vpack.c.b16 %v5679, %v5678
      %v5691 = vpack.c.b16 %v5681, %v5680
      %v5692 = vpack.c.b16 %v5683, %v5682
      %v5693 = vpack.c.b16 %v5685, %v5684
      %5702 = vmatpush.bf16.msra.mxu0 %v5693
      %5703 = vmatpush.bf16.msra.mxu0 %v5692
      %5704 = vmatpush.bf16.msra.mxu0 %v5691
      %5705 = vmatpush.bf16.msra.mxu0 %v5690
      %5706 = vmatpush.bf16.msra.mxu0 %v5689
      %5707 = vmatpush.bf16.msra.mxu0 %v5688
      %5708 = vmatpush.bf16.msra.mxu0 %v5687
      %5709 = vmatpush.bf16.msra.mxu0 %v5686
      %5710 = vmatmul.bf16.gmra.mxu0 %v3969
      %v5711 = vpop.f32.mrf.mxu0
      %v5712 = vadd.f32 0.0, %v5711
      %v5713 = vpop.f32.mrf.mxu0
      %v5714 = vadd.f32 0.0, %v5713
      %5715 = vmatmul.bf16.gmra.mxu0 %v3970
      %v5716 = vpop.f32.mrf.mxu0
      %v5717 = vadd.f32 0.0, %v5716
      %v5718 = vpop.f32.mrf.mxu0
      %v5719 = vadd.f32 0.0, %v5718
      %5720 = vmatmul.bf16.gmra.mxu0 %v3971
      %v5721 = vpop.f32.mrf.mxu0
      %v5722 = vadd.f32 0.0, %v5721
      %v5723 = vpop.f32.mrf.mxu0
      %v5724 = vadd.f32 0.0, %v5723
      %5725 = vmatmul.bf16.gmra.mxu0 %v3972
      %v5726 = vpop.f32.mrf.mxu0
      %v5727 = vadd.f32 0.0, %v5726
      %v5728 = vpop.f32.mrf.mxu0
      %v5729 = vadd.f32 0.0, %v5728
      %5730 = vmatmul.bf16.gmra.mxu0 %v3973
      %v5731 = vpop.f32.mrf.mxu0
      %v5732 = vadd.f32 0.0, %v5731
      %v5733 = vpop.f32.mrf.mxu0
      %v5734 = vadd.f32 0.0, %v5733
      %5735 = vmatmul.bf16.gmra.mxu0 %v3974
      %v5736 = vpop.f32.mrf.mxu0
      %v5737 = vadd.f32 0.0, %v5736
      %v5738 = vpop.f32.mrf.mxu0
      %v5739 = vadd.f32 0.0, %v5738
      %5740 = vmatmul.bf16.gmra.mxu0 %v3975
      %v5741 = vpop.f32.mrf.mxu0
      %v5742 = vadd.f32 0.0, %v5741
      %v5743 = vpop.f32.mrf.mxu0
      %v5744 = vadd.f32 0.0, %v5743
      %5745 = vmatmul.bf16.gmra.mxu0 %v3976
      %v5746 = vpop.f32.mrf.mxu0
      %v5747 = vadd.f32 0.0, %v5746
      %v5748 = vpop.f32.mrf.mxu0
      %v5749 = vadd.f32 0.0, %v5748
      %5750 = vmatmul.bf16.gmra.mxu0 %v3977
      %v5751 = vpop.f32.mrf.mxu0
      %v5752 = vadd.f32 0.0, %v5751
      %v5753 = vpop.f32.mrf.mxu0
      %v5754 = vadd.f32 0.0, %v5753
      %5755 = vmatmul.bf16.gmra.mxu0 %v3978
      %v5756 = vpop.f32.mrf.mxu0
      %v5757 = vadd.f32 0.0, %v5756
      %v5758 = vpop.f32.mrf.mxu0
      %v5759 = vadd.f32 0.0, %v5758
      %5760 = vmatmul.bf16.gmra.mxu0 %v3979
      %v5761 = vpop.f32.mrf.mxu0
      %v5762 = vadd.f32 0.0, %v5761
      %v5763 = vpop.f32.mrf.mxu0
      %v5764 = vadd.f32 0.0, %v5763
      %5765 = vmatmul.bf16.gmra.mxu0 %v3980
      %v5766 = vpop.f32.mrf.mxu0
      %v5767 = vadd.f32 0.0, %v5766
      %v5768 = vpop.f32.mrf.mxu0
      %v5769 = vadd.f32 0.0, %v5768
      %5770 = vmatmul.bf16.gmra.mxu0 %v3981
      %v5771 = vpop.f32.mrf.mxu0
      %v5772 = vadd.f32 0.0, %v5771
      %v5773 = vpop.f32.mrf.mxu0
      %v5774 = vadd.f32 0.0, %v5773
      %5775 = vmatmul.bf16.gmra.mxu0 %v3982
      %v5776 = vpop.f32.mrf.mxu0
      %v5777 = vadd.f32 0.0, %v5776
      %v5778 = vpop.f32.mrf.mxu0
      %v5779 = vadd.f32 0.0, %v5778
      %5780 = vmatmul.bf16.gmra.mxu0 %v5044
      %v5781 = vpop.f32.mrf.mxu0
      %v5782 = vadd.f32 0.0, %v5781
      %v5783 = vpop.f32.mrf.mxu0
      %v5784 = vadd.f32 0.0, %v5783
      %5785 = vmatmul.bf16.gmra.mxu0 %v5652
      %v5786 = vpop.f32.mrf.mxu0
      %v5787 = vadd.f32 0.0, %v5786
      %v5788 = vpop.f32.mrf.mxu0
      %v5789 = vadd.f32 0.0, %v5788
      %5790 = vdwg.mxu0
      %v5791 = vadd.f32 %v5599, %v5712
      %v5792 = vadd.f32 %v5600, %v5714
      %v5793 = vadd.f32 %v5601, %v5717
      %v5794 = vadd.f32 %v5602, %v5719
      %v5795 = vadd.f32 %v5603, %v5722
      %v5796 = vadd.f32 %v5604, %v5724
      %v5797 = vadd.f32 %v5605, %v5727
      %v5798 = vadd.f32 %v5606, %v5729
      %v5799 = vadd.f32 %v5607, %v5732
      %v5800 = vadd.f32 %v5608, %v5734
      %v5801 = vadd.f32 %v5609, %v5737
      %v5802 = vadd.f32 %v5610, %v5739
      %v5803 = vadd.f32 %v5611, %v5742
      %v5804 = vadd.f32 %v5612, %v5744
      %v5805 = vadd.f32 %v5613, %v5747
      %v5806 = vadd.f32 %v5614, %v5749
      %v5807 = vadd.f32 %v5615, %v5752
      %v5808 = vadd.f32 %v5616, %v5754
      %v5809 = vadd.f32 %v5617, %v5757
      %v5810 = vadd.f32 %v5618, %v5759
      %v5811 = vadd.f32 %v5619, %v5762
      %v5812 = vadd.f32 %v5620, %v5764
      %v5813 = vadd.f32 %v5621, %v5767
      %v5814 = vadd.f32 %v5622, %v5769
      %v5815 = vadd.f32 %v5623, %v5772
      %v5816 = vadd.f32 %v5624, %v5774
      %v5817 = vadd.f32 %v5625, %v5777
      %v5818 = vadd.f32 %v5626, %v5779
      %v5819 = vadd.f32 %v5627, %v5782
      %v5820 = vadd.f32 %v5628, %v5784
      %v5821 = vadd.f32 %v5629, %v5787
      %v5822 = vadd.f32 %v5630, %v5789
      %v5823 = vrot.slane %v5425, 4
      %v5824 = vrot.slane %v5428, 5
      %v5825 = vor.u32 %v5823, %v5824
      %v5826 = vrot.slane %v5825, 4
      %v5827 = vrot.slane %v5437, 5
      %v5828 = vsel %vm352, %v5826, %v5827
      %v5829 = vrot.slane %v5434, 4
      %v5830 = vor.u32 %v5829, %v5827
      %v5831 = vrot.slane %v5830, 4
      %v5833 = vshll.u32 %v3514, 16
      %v5835 = vrot.slane %v5833, 5
      %v5836 = vsel %vm352, %v5831, %v5835
      %s5837 = scalar_lea.vmem %s4, 512
      %v5838 = vld [vmem:[%s5837] sm:$0xf]
      %v5839 = vld [vmem:[%s5837 + $0x4] sm:$0xf]
      %v5840 = vld [vmem:[%s5837 + $0x8] sm:$0xf]
      %v5841 = vld [vmem:[%s5837 + $0xc] sm:$0xf]
      %v5842 = vld [vmem:[%s5837 + $0x10] sm:$0xf]
      %v5843 = vld [vmem:[%s5837 + $0x14] sm:$0xf]
      %v5844 = vld [vmem:[%s5837 + $0x18] sm:$0xf]
      %v5845 = vld [vmem:[%s5837 + $0x1c] sm:$0xf]
      %v5846 = vld [vmem:[%s5837 + $0x20] sm:$0xf]
      %v5847 = vld [vmem:[%s5837 + $0x24] sm:$0xf]
      %v5848 = vld [vmem:[%s5837 + $0x28] sm:$0xf]
      %v5849 = vld [vmem:[%s5837 + $0x2c] sm:$0xf]
      %v5850 = vld [vmem:[%s5837 + $0x30] sm:$0xf]
      %v5851 = vld [vmem:[%s5837 + $0x34] sm:$0xf]
      %v5852 = vld [vmem:[%s5837 + $0x38] sm:$0xf]
      %v5853 = vld [vmem:[%s5837 + $0x3c] sm:$0xf]
      %v5854 = vunpack.c.l.b16 %v5828
      %v5855 = vunpack.c.l.b16 %v5836
      %v5856 = vpack.c.b16 %v5855, %v5854
      %v5874 = vunpack.c.l.b16 %v5838
      %v5875 = vunpack.c.l.b16 %v5839
      %v5876 = vunpack.c.l.b16 %v5840
      %v5877 = vunpack.c.l.b16 %v5841
      %v5878 = vunpack.c.l.b16 %v5842
      %v5879 = vunpack.c.l.b16 %v5843
      %v5880 = vunpack.c.l.b16 %v5844
      %v5881 = vunpack.c.l.b16 %v5845
      %v5882 = vunpack.c.l.b16 %v5846
      %v5883 = vunpack.c.l.b16 %v5847
      %v5884 = vunpack.c.l.b16 %v5848
      %v5885 = vunpack.c.l.b16 %v5849
      %v5886 = vunpack.c.l.b16 %v5850
      %v5887 = vunpack.c.l.b16 %v5851
      %v5888 = vunpack.c.l.b16 %v5852
      %v5889 = vunpack.c.l.b16 %v5853
      %v5890 = vpack.c.b16 %v5875, %v5874
      %v5891 = vpack.c.b16 %v5877, %v5876
      %v5892 = vpack.c.b16 %v5879, %v5878
      %v5893 = vpack.c.b16 %v5881, %v5880
      %v5894 = vpack.c.b16 %v5883, %v5882
      %v5895 = vpack.c.b16 %v5885, %v5884
      %v5896 = vpack.c.b16 %v5887, %v5886
      %v5897 = vpack.c.b16 %v5889, %v5888
      %5906 = vmatpush.bf16.msra.mxu0 %v5897
      %5907 = vmatpush.bf16.msra.mxu0 %v5896
      %5908 = vmatpush.bf16.msra.mxu0 %v5895
      %5909 = vmatpush.bf16.msra.mxu0 %v5894
      %5910 = vmatpush.bf16.msra.mxu0 %v5893
      %5911 = vmatpush.bf16.msra.mxu0 %v5892
      %5912 = vmatpush.bf16.msra.mxu0 %v5891
      %5913 = vmatpush.bf16.msra.mxu0 %v5890
      %5914 = vmatmul.bf16.gmra.mxu0 %v4612
      %v5915 = vpop.f32.mrf.mxu0
      %v5916 = vadd.f32 0.0, %v5915
      %v5917 = vpop.f32.mrf.mxu0
      %v5918 = vadd.f32 0.0, %v5917
      %5919 = vmatmul.bf16.gmra.mxu0 %v4613
      %v5920 = vpop.f32.mrf.mxu0
      %v5921 = vadd.f32 0.0, %v5920
      %v5922 = vpop.f32.mrf.mxu0
      %v5923 = vadd.f32 0.0, %v5922
      %5924 = vmatmul.bf16.gmra.mxu0 %v4614
      %v5925 = vpop.f32.mrf.mxu0
      %v5926 = vadd.f32 0.0, %v5925
      %v5927 = vpop.f32.mrf.mxu0
      %v5928 = vadd.f32 0.0, %v5927
      %5929 = vmatmul.bf16.gmra.mxu0 %v4615
      %v5930 = vpop.f32.mrf.mxu0
      %v5931 = vadd.f32 0.0, %v5930
      %v5932 = vpop.f32.mrf.mxu0
      %v5933 = vadd.f32 0.0, %v5932
      %5934 = vmatmul.bf16.gmra.mxu0 %v4616
      %v5935 = vpop.f32.mrf.mxu0
      %v5936 = vadd.f32 0.0, %v5935
      %v5937 = vpop.f32.mrf.mxu0
      %v5938 = vadd.f32 0.0, %v5937
      %5939 = vmatmul.bf16.gmra.mxu0 %v4617
      %v5940 = vpop.f32.mrf.mxu0
      %v5941 = vadd.f32 0.0, %v5940
      %v5942 = vpop.f32.mrf.mxu0
      %v5943 = vadd.f32 0.0, %v5942
      %5944 = vmatmul.bf16.gmra.mxu0 %v4618
      %v5945 = vpop.f32.mrf.mxu0
      %v5946 = vadd.f32 0.0, %v5945
      %v5947 = vpop.f32.mrf.mxu0
      %v5948 = vadd.f32 0.0, %v5947
      %5949 = vmatmul.bf16.gmra.mxu0 %v4619
      %v5950 = vpop.f32.mrf.mxu0
      %v5951 = vadd.f32 0.0, %v5950
      %v5952 = vpop.f32.mrf.mxu0
      %v5953 = vadd.f32 0.0, %v5952
      %5954 = vmatmul.bf16.gmra.mxu0 %v4620
      %v5955 = vpop.f32.mrf.mxu0
      %v5956 = vadd.f32 0.0, %v5955
      %v5957 = vpop.f32.mrf.mxu0
      %v5958 = vadd.f32 0.0, %v5957
      %5959 = vmatmul.bf16.gmra.mxu0 %v4621
      %v5960 = vpop.f32.mrf.mxu0
      %v5961 = vadd.f32 0.0, %v5960
      %v5962 = vpop.f32.mrf.mxu0
      %v5963 = vadd.f32 0.0, %v5962
      %5964 = vmatmul.bf16.gmra.mxu0 %v4622
      %v5965 = vpop.f32.mrf.mxu0
      %v5966 = vadd.f32 0.0, %v5965
      %v5967 = vpop.f32.mrf.mxu0
      %v5968 = vadd.f32 0.0, %v5967
      %5969 = vmatmul.bf16.gmra.mxu0 %v4623
      %v5970 = vpop.f32.mrf.mxu0
      %v5971 = vadd.f32 0.0, %v5970
      %v5972 = vpop.f32.mrf.mxu0
      %v5973 = vadd.f32 0.0, %v5972
      %5974 = vmatmul.bf16.gmra.mxu0 %v4624
      %v5975 = vpop.f32.mrf.mxu0
      %v5976 = vadd.f32 0.0, %v5975
      %v5977 = vpop.f32.mrf.mxu0
      %v5978 = vadd.f32 0.0, %v5977
      %5979 = vmatmul.bf16.gmra.mxu0 %v4625
      %v5980 = vpop.f32.mrf.mxu0
      %v5981 = vadd.f32 0.0, %v5980
      %v5982 = vpop.f32.mrf.mxu0
      %v5983 = vadd.f32 0.0, %v5982
      %5984 = vmatmul.bf16.gmra.mxu0 %v5248
      %v5985 = vpop.f32.mrf.mxu0
      %v5986 = vadd.f32 0.0, %v5985
      %v5987 = vpop.f32.mrf.mxu0
      %v5988 = vadd.f32 0.0, %v5987
      %5989 = vmatmul.bf16.gmra.mxu0 %v5856
      %v5990 = vpop.f32.mrf.mxu0
      %v5991 = vadd.f32 0.0, %v5990
      %v5992 = vpop.f32.mrf.mxu0
      %v5993 = vadd.f32 0.0, %v5992
      %5994 = vdwg.mxu0
      %v5995 = vadd.f32 %v5791, %v5916
      %v5996 = vadd.f32 %v5792, %v5918
      %v5997 = vadd.f32 %v5793, %v5921
      %v5998 = vadd.f32 %v5794, %v5923
      %v5999 = vadd.f32 %v5795, %v5926
      %v6000 = vadd.f32 %v5796, %v5928
      %v6001 = vadd.f32 %v5797, %v5931
      %v6002 = vadd.f32 %v5798, %v5933
      %v6003 = vadd.f32 %v5799, %v5936
      %v6004 = vadd.f32 %v5800, %v5938
      %v6005 = vadd.f32 %v5801, %v5941
      %v6006 = vadd.f32 %v5802, %v5943
      %v6007 = vadd.f32 %v5803, %v5946
      %v6008 = vadd.f32 %v5804, %v5948
      %v6009 = vadd.f32 %v5805, %v5951
      %v6010 = vadd.f32 %v5806, %v5953
      %v6011 = vadd.f32 %v5807, %v5956
      %v6012 = vadd.f32 %v5808, %v5958
      %v6013 = vadd.f32 %v5809, %v5961
      %v6014 = vadd.f32 %v5810, %v5963
      %v6015 = vadd.f32 %v5811, %v5966
      %v6016 = vadd.f32 %v5812, %v5968
      %v6017 = vadd.f32 %v5813, %v5971
      %v6018 = vadd.f32 %v5814, %v5973
      %v6019 = vadd.f32 %v5815, %v5976
      %v6020 = vadd.f32 %v5816, %v5978
      %v6021 = vadd.f32 %v5817, %v5981
      %v6022 = vadd.f32 %v5818, %v5983
      %v6023 = vadd.f32 %v5819, %v5986
      %v6024 = vadd.f32 %v5820, %v5988
      %v6025 = vadd.f32 %v5821, %v5991
      %v6026 = vadd.f32 %v5822, %v5993
      %v6027 = vld [vmem:[%s5] sm:$0x1]
      %v6028 = vld [vmem:[%s6] sm:$0x1]
      %vm6029 = vcmp.lt.s32.totalorder %v2812, 4
      %v6030 = vsel %vm6029, 1, 0
      %v6031 = vcvt.s32.f32 %v6030
      %v6032 = vadd.f32 %v5995, %v5996
      %v6033 = vadd.f32 %v6032, %v5997
      %v6034 = vadd.f32 %v6033, %v5998
      %v6035 = vadd.f32 %v6034, %v5999
      %v6036 = vadd.f32 %v6035, %v6000
      %v6037 = vadd.f32 %v6036, %v6001
      %v6038 = vadd.f32 %v6037, %v6002
      %v6039 = vadd.f32 %v6038, %v6003
      %v6040 = vadd.f32 %v6039, %v6004
      %v6041 = vadd.f32 %v6040, %v6005
      %v6042 = vadd.f32 %v6041, %v6006
      %v6043 = vadd.f32 %v6042, %v6007
      %v6044 = vadd.f32 %v6043, %v6008
      %v6045 = vadd.f32 %v6044, %v6009
      %v6046 = vadd.f32 %v6045, %v6010
      %v6047 = vadd.f32 %v6046, %v6011
      %v6048 = vadd.f32 %v6047, %v6012
      %v6049 = vadd.f32 %v6048, %v6013
      %v6050 = vadd.f32 %v6049, %v6014
      %v6051 = vadd.f32 %v6050, %v6015
      %v6052 = vadd.f32 %v6051, %v6016
      %v6053 = vadd.f32 %v6052, %v6017
      %v6054 = vadd.f32 %v6053, %v6018
      %v6055 = vadd.f32 %v6054, %v6019
      %v6056 = vadd.f32 %v6055, %v6020
      %v6057 = vadd.f32 %v6056, %v6021
      %v6058 = vadd.f32 %v6057, %v6022
      %v6059 = vadd.f32 %v6058, %v6023
      %v6060 = vadd.f32 %v6059, %v6024
      %v6061 = vadd.f32 %v6060, %v6025
      %v6062 = vadd.f32 %v6061, %v6026
      %6063 = vadd.xlane.f32.xlu0 %v6062
      %v6064 = vpop.xlane.xlu0 %6063
      %v6065 = vrot.slane %v6064, 4
      %v6066 = vadd.f32 %v6064, %v6065
      %v6067 = vrot.slane %v6066, 2
      %v6068 = vadd.f32 %v6066, %v6067
      %v6069 = vrot.slane %v6068, 1
      %v6070 = vadd.f32 %v6068, %v6069
      %s6071 = vtos %v6070
      %s6072 = smul.f32 %s6071, 0.0009765625
      %v6073 = vstv %s6072
      %v6074 = vmul.f32 %v6073, %v6031
      %v6075 = vsub.f32 %v5995, %v6074
      %v6076 = vsub.f32 %v5996, %v6074
      %v6077 = vsub.f32 %v5997, %v6074
      %v6078 = vsub.f32 %v5998, %v6074
      %v6079 = vsub.f32 %v5999, %v6074
      %v6080 = vsub.f32 %v6000, %v6074
      %v6081 = vsub.f32 %v6001, %v6074
      %v6082 = vsub.f32 %v6002, %v6074
      %v6083 = vsub.f32 %v6003, %v6074
      %v6084 = vsub.f32 %v6004, %v6074
      %v6085 = vsub.f32 %v6005, %v6074
      %v6086 = vsub.f32 %v6006, %v6074
      %v6087 = vsub.f32 %v6007, %v6074
      %v6088 = vsub.f32 %v6008, %v6074
      %v6089 = vsub.f32 %v6009, %v6074
      %v6090 = vsub.f32 %v6010, %v6074
      %v6091 = vsub.f32 %v6011, %v6074
      %v6092 = vsub.f32 %v6012, %v6074
      %v6093 = vsub.f32 %v6013, %v6074
      %v6094 = vsub.f32 %v6014, %v6074
      %v6095 = vsub.f32 %v6015, %v6074
      %v6096 = vsub.f32 %v6016, %v6074
      %v6097 = vsub.f32 %v6017, %v6074
      %v6098 = vsub.f32 %v6018, %v6074
      %v6099 = vsub.f32 %v6019, %v6074
      %v6100 = vsub.f32 %v6020, %v6074
      %v6101 = vsub.f32 %v6021, %v6074
      %v6102 = vsub.f32 %v6022, %v6074
      %v6103 = vsub.f32 %v6023, %v6074
      %v6104 = vsub.f32 %v6024, %v6074
      %v6105 = vsub.f32 %v6025, %v6074
      %v6106 = vsub.f32 %v6026, %v6074
      %v6107 = vmul.f32 %v6075, %v6075
      %v6108 = vmul.f32 %v6076, %v6076
      %v6109 = vmul.f32 %v6077, %v6077
      %v6110 = vmul.f32 %v6078, %v6078
      %v6111 = vmul.f32 %v6079, %v6079
      %v6112 = vmul.f32 %v6080, %v6080
      %v6113 = vmul.f32 %v6081, %v6081
      %v6114 = vmul.f32 %v6082, %v6082
      %v6115 = vmul.f32 %v6083, %v6083
      %v6116 = vmul.f32 %v6084, %v6084
      %v6117 = vmul.f32 %v6085, %v6085
      %v6118 = vmul.f32 %v6086, %v6086
      %v6119 = vmul.f32 %v6087, %v6087
      %v6120 = vmul.f32 %v6088, %v6088
      %v6121 = vmul.f32 %v6089, %v6089
      %v6122 = vmul.f32 %v6090, %v6090
      %v6123 = vmul.f32 %v6091, %v6091
      %v6124 = vmul.f32 %v6092, %v6092
      %v6125 = vmul.f32 %v6093, %v6093
      %v6126 = vmul.f32 %v6094, %v6094
      %v6127 = vmul.f32 %v6095, %v6095
      %v6128 = vmul.f32 %v6096, %v6096
      %v6129 = vmul.f32 %v6097, %v6097
      %v6130 = vmul.f32 %v6098, %v6098
      %v6131 = vmul.f32 %v6099, %v6099
      %v6132 = vmul.f32 %v6100, %v6100
      %v6133 = vmul.f32 %v6101, %v6101
      %v6134 = vmul.f32 %v6102, %v6102
      %v6135 = vmul.f32 %v6103, %v6103
      %v6136 = vmul.f32 %v6104, %v6104
      %v6137 = vmul.f32 %v6105, %v6105
      %v6138 = vmul.f32 %v6106, %v6106
      %v6139 = vadd.f32 %v6107, %v6108
      %v6140 = vadd.f32 %v6139, %v6109
      %v6141 = vadd.f32 %v6140, %v6110
      %v6142 = vadd.f32 %v6141, %v6111
      %v6143 = vadd.f32 %v6142, %v6112
      %v6144 = vadd.f32 %v6143, %v6113
      %v6145 = vadd.f32 %v6144, %v6114
      %v6146 = vadd.f32 %v6145, %v6115
      %v6147 = vadd.f32 %v6146, %v6116
      %v6148 = vadd.f32 %v6147, %v6117
      %v6149 = vadd.f32 %v6148, %v6118
      %v6150 = vadd.f32 %v6149, %v6119
      %v6151 = vadd.f32 %v6150, %v6120
      %v6152 = vadd.f32 %v6151, %v6121
      %v6153 = vadd.f32 %v6152, %v6122
      %v6154 = vadd.f32 %v6153, %v6123
      %v6155 = vadd.f32 %v6154, %v6124
      %v6156 = vadd.f32 %v6155, %v6125
      %v6157 = vadd.f32 %v6156, %v6126
      %v6158 = vadd.f32 %v6157, %v6127
      %v6159 = vadd.f32 %v6158, %v6128
      %v6160 = vadd.f32 %v6159, %v6129
      %v6161 = vadd.f32 %v6160, %v6130
      %v6162 = vadd.f32 %v6161, %v6131
      %v6163 = vadd.f32 %v6162, %v6132
      %v6164 = vadd.f32 %v6163, %v6133
      %v6165 = vadd.f32 %v6164, %v6134
      %v6166 = vadd.f32 %v6165, %v6135
      %v6167 = vadd.f32 %v6166, %v6136
      %v6168 = vadd.f32 %v6167, %v6137
      %v6169 = vadd.f32 %v6168, %v6138
      %6170 = vadd.xlane.f32.xlu0 %v6169
      %v6171 = vpop.xlane.xlu0 %6170
      %v6172 = vrot.slane %v6171, 4
      %v6173 = vadd.f32 %v6171, %v6172
      %v6174 = vrot.slane %v6173, 2
      %v6175 = vadd.f32 %v6173, %v6174
      %v6176 = vrot.slane %v6175, 1
      %v6177 = vadd.f32 %v6175, %v6176
      %s6178 = vtos %v6177
      %s6179 = smul.f32 %s6178, 0.0009765625
      %s6180 = sadd.f32 %s6179, 1e-05
      %v6181 = vstv %s6180
      %v6182 = vrsqrt.pop %v6181
      %v6183 = vmul.f32 %v6182, %v6181
      %v6184 = vmul.f32 %v6183, %v6182
      %v6185 = vmul.f32 0.5, %v6184
      %v6186 = vsub.f32 1.5, %v6185
      %v6187 = vmul.f32 %v6182, %v6186
      %vm6188 = vweird.f32 %v6181
      %vm6189 = vweird.f32 %v6182
      %vm6190 = vmor %vm6188, %vm6189
      %v6191 = vsel %vm6190, %v6182, %v6187
      %s6192 = vtos %v6191
      %v6193 = vstv %s6192
      %v6194 = vmul.f32 %v6027, %v6193
      %v6196 = vperm.slane %v6194, 0
      %v6198 = vmul.f32 %v6075, %v6196
      %v6199 = vmul.f32 %v6076, %v6196
      %v6200 = vmul.f32 %v6077, %v6196
      %v6201 = vmul.f32 %v6078, %v6196
      %v6202 = vmul.f32 %v6079, %v6196
      %v6203 = vmul.f32 %v6080, %v6196
      %v6204 = vmul.f32 %v6081, %v6196
      %v6205 = vmul.f32 %v6082, %v6196
      %v6206 = vmul.f32 %v6083, %v6196
      %v6207 = vmul.f32 %v6084, %v6196
      %v6208 = vmul.f32 %v6085, %v6196
      %v6209 = vmul.f32 %v6086, %v6196
      %v6210 = vmul.f32 %v6087, %v6196
      %v6211 = vmul.f32 %v6088, %v6196
      %v6212 = vmul.f32 %v6089, %v6196
      %v6213 = vmul.f32 %v6090, %v6196
      %v6214 = vmul.f32 %v6091, %v6196
      %v6215 = vmul.f32 %v6092, %v6196
      %v6216 = vmul.f32 %v6093, %v6196
      %v6217 = vmul.f32 %v6094, %v6196
      %v6218 = vmul.f32 %v6095, %v6196
      %v6219 = vmul.f32 %v6096, %v6196
      %v6220 = vmul.f32 %v6097, %v6196
      %v6221 = vmul.f32 %v6098, %v6196
      %v6222 = vmul.f32 %v6099, %v6196
      %v6223 = vmul.f32 %v6100, %v6196
      %v6224 = vmul.f32 %v6101, %v6196
      %v6225 = vmul.f32 %v6102, %v6196
      %v6226 = vmul.f32 %v6103, %v6196
      %v6227 = vmul.f32 %v6104, %v6196
      %v6228 = vmul.f32 %v6105, %v6196
      %v6229 = vmul.f32 %v6106, %v6196
      %v6231 = vperm.slane %v6028, 0
      %v6233 = vadd.f32 %v6198, %v6231
      %v6234 = vadd.f32 %v6199, %v6231
      %v6235 = vadd.f32 %v6200, %v6231
      %v6236 = vadd.f32 %v6201, %v6231
      %v6237 = vadd.f32 %v6202, %v6231
      %v6238 = vadd.f32 %v6203, %v6231
      %v6239 = vadd.f32 %v6204, %v6231
      %v6240 = vadd.f32 %v6205, %v6231
      %v6241 = vadd.f32 %v6206, %v6231
      %v6242 = vadd.f32 %v6207, %v6231
      %v6243 = vadd.f32 %v6208, %v6231
      %v6244 = vadd.f32 %v6209, %v6231
      %v6245 = vadd.f32 %v6210, %v6231
      %v6246 = vadd.f32 %v6211, %v6231
      %v6247 = vadd.f32 %v6212, %v6231
      %v6248 = vadd.f32 %v6213, %v6231
      %v6249 = vadd.f32 %v6214, %v6231
      %v6250 = vadd.f32 %v6215, %v6231
      %v6251 = vadd.f32 %v6216, %v6231
      %v6252 = vadd.f32 %v6217, %v6231
      %v6253 = vadd.f32 %v6218, %v6231
      %v6254 = vadd.f32 %v6219, %v6231
      %v6255 = vadd.f32 %v6220, %v6231
      %v6256 = vadd.f32 %v6221, %v6231
      %v6257 = vadd.f32 %v6222, %v6231
      %v6258 = vadd.f32 %v6223, %v6231
      %v6259 = vadd.f32 %v6224, %v6231
      %v6260 = vadd.f32 %v6225, %v6231
      %v6261 = vadd.f32 %v6226, %v6231
      %v6262 = vadd.f32 %v6227, %v6231
      %v6263 = vadd.f32 %v6228, %v6231
      %v6264 = vadd.f32 %v6229, %v6231
      %v6265 = vunpack.c.l.bf16 %v390
      %v6266 = vunpack.c.l.bf16 %v400
      %v6267 = vunpack.c.l.bf16 %v414
      %v6268 = vunpack.c.l.bf16 %v424
      %v6269 = vunpack.c.l.bf16 %v438
      %v6270 = vunpack.c.l.bf16 %v448
      %v6271 = vunpack.c.l.bf16 %v462
      %v6272 = vunpack.c.l.bf16 %v472
      %v6273 = vunpack.c.l.bf16 %v486
      %v6274 = vunpack.c.l.bf16 %v496
      %v6275 = vunpack.c.l.bf16 %v510
      %v6276 = vunpack.c.l.bf16 %v520
      %v6277 = vunpack.c.l.bf16 %v534
      %v6278 = vunpack.c.l.bf16 %v544
      %v6279 = vunpack.c.l.bf16 %v558
      %v6280 = vunpack.c.l.bf16 %v568
      %v6281 = vunpack.c.l.bf16 %v582
      %v6282 = vunpack.c.l.bf16 %v592
      %v6283 = vunpack.c.l.bf16 %v606
      %v6284 = vunpack.c.l.bf16 %v616
      %v6285 = vunpack.c.l.bf16 %v630
      %v6286 = vunpack.c.l.bf16 %v640
      %v6287 = vunpack.c.l.bf16 %v654
      %v6288 = vunpack.c.l.bf16 %v664
      %v6289 = vunpack.c.l.bf16 %v678
      %v6290 = vunpack.c.l.bf16 %v688
      %v6291 = vunpack.c.l.bf16 %v702
      %v6292 = vunpack.c.l.bf16 %v712
      %v6293 = vunpack.c.l.bf16 %v726
      %v6294 = vunpack.c.l.bf16 %v736
      %v6295 = vunpack.c.l.bf16 %v1774
      %v6296 = vunpack.c.l.bf16 %v1784
      %v6297 = vadd.f32 %v6265, %v6233
      %v6298 = vadd.f32 %v6266, %v6234
      %v6299 = vadd.f32 %v6267, %v6235
      %v6300 = vadd.f32 %v6268, %v6236
      %v6301 = vadd.f32 %v6269, %v6237
      %v6302 = vadd.f32 %v6270, %v6238
      %v6303 = vadd.f32 %v6271, %v6239
      %v6304 = vadd.f32 %v6272, %v6240
      %v6305 = vadd.f32 %v6273, %v6241
      %v6306 = vadd.f32 %v6274, %v6242
      %v6307 = vadd.f32 %v6275, %v6243
      %v6308 = vadd.f32 %v6276, %v6244
      %v6309 = vadd.f32 %v6277, %v6245
      %v6310 = vadd.f32 %v6278, %v6246
      %v6311 = vadd.f32 %v6279, %v6247
      %v6312 = vadd.f32 %v6280, %v6248
      %v6313 = vadd.f32 %v6281, %v6249
      %v6314 = vadd.f32 %v6282, %v6250
      %v6315 = vadd.f32 %v6283, %v6251
      %v6316 = vadd.f32 %v6284, %v6252
      %v6317 = vadd.f32 %v6285, %v6253
      %v6318 = vadd.f32 %v6286, %v6254
      %v6319 = vadd.f32 %v6287, %v6255
      %v6320 = vadd.f32 %v6288, %v6256
      %v6321 = vadd.f32 %v6289, %v6257
      %v6322 = vadd.f32 %v6290, %v6258
      %v6323 = vadd.f32 %v6291, %v6259
      %v6324 = vadd.f32 %v6292, %v6260
      %v6325 = vadd.f32 %v6293, %v6261
      %v6326 = vadd.f32 %v6294, %v6262
      %v6327 = vadd.f32 %v6295, %v6263
      %v6328 = vadd.f32 %v6296, %v6264
      %v6329 = vmul.f32 %v6297, 0.5
      %v6330 = vmul.f32 %v6298, 0.5
      %v6331 = vmul.f32 %v6299, 0.5
      %v6332 = vmul.f32 %v6300, 0.5
      %v6333 = vmul.f32 %v6301, 0.5
      %v6334 = vmul.f32 %v6302, 0.5
      %v6335 = vmul.f32 %v6303, 0.5
      %v6336 = vmul.f32 %v6304, 0.5
      %v6337 = vmul.f32 %v6305, 0.5
      %v6338 = vmul.f32 %v6306, 0.5
      %v6339 = vmul.f32 %v6307, 0.5
      %v6340 = vmul.f32 %v6308, 0.5
      %v6341 = vmul.f32 %v6309, 0.5
      %v6342 = vmul.f32 %v6310, 0.5
      %v6343 = vmul.f32 %v6311, 0.5
      %v6344 = vmul.f32 %v6312, 0.5
      %v6345 = vmul.f32 %v6313, 0.5
      %v6346 = vmul.f32 %v6314, 0.5
      %v6347 = vmul.f32 %v6315, 0.5
      %v6348 = vmul.f32 %v6316, 0.5
      %v6349 = vmul.f32 %v6317, 0.5
      %v6350 = vmul.f32 %v6318, 0.5
      %v6351 = vmul.f32 %v6319, 0.5
      %v6352 = vmul.f32 %v6320, 0.5
      %v6353 = vmul.f32 %v6321, 0.5
      %v6354 = vmul.f32 %v6322, 0.5
      %v6355 = vmul.f32 %v6323, 0.5
      %v6356 = vmul.f32 %v6324, 0.5
      %v6357 = vmul.f32 %v6325, 0.5
      %v6358 = vmul.f32 %v6326, 0.5
      %v6359 = vmul.f32 %v6327, 0.5
      %v6360 = vmul.f32 %v6328, 0.5
      %v6361 = vmul.f32 %v6297, 0.044715
      %v6362 = vmul.f32 %v6298, 0.044715
      %v6363 = vmul.f32 %v6299, 0.044715
      %v6364 = vmul.f32 %v6300, 0.044715
      %v6365 = vmul.f32 %v6301, 0.044715
      %v6366 = vmul.f32 %v6302, 0.044715
      %v6367 = vmul.f32 %v6303, 0.044715
      %v6368 = vmul.f32 %v6304, 0.044715
      %v6369 = vmul.f32 %v6305, 0.044715
      %v6370 = vmul.f32 %v6306, 0.044715
      %v6371 = vmul.f32 %v6307, 0.044715
      %v6372 = vmul.f32 %v6308, 0.044715
      %v6373 = vmul.f32 %v6309, 0.044715
      %v6374 = vmul.f32 %v6310, 0.044715
      %v6375 = vmul.f32 %v6311, 0.044715
      %v6376 = vmul.f32 %v6312, 0.044715
      %v6377 = vmul.f32 %v6313, 0.044715
      %v6378 = vmul.f32 %v6314, 0.044715
      %v6379 = vmul.f32 %v6315, 0.044715
      %v6380 = vmul.f32 %v6316, 0.044715
      %v6381 = vmul.f32 %v6317, 0.044715
      %v6382 = vmul.f32 %v6318, 0.044715
      %v6383 = vmul.f32 %v6319, 0.044715
      %v6384 = vmul.f32 %v6320, 0.044715
      %v6385 = vmul.f32 %v6321, 0.044715
      %v6386 = vmul.f32 %v6322, 0.044715
      %v6387 = vmul.f32 %v6323, 0.044715
      %v6388 = vmul.f32 %v6324, 0.044715
      %v6389 = vmul.f32 %v6325, 0.044715
      %v6390 = vmul.f32 %v6326, 0.044715
      %v6391 = vmul.f32 %v6327, 0.044715
      %v6392 = vmul.f32 %v6328, 0.044715
      %v6393 = vmul.f32 %v6361, %v6297
      %v6394 = vmul.f32 %v6362, %v6298
      %v6395 = vmul.f32 %v6363, %v6299
      %v6396 = vmul.f32 %v6364, %v6300
      %v6397 = vmul.f32 %v6365, %v6301
      %v6398 = vmul.f32 %v6366, %v6302
      %v6399 = vmul.f32 %v6367, %v6303
      %v6400 = vmul.f32 %v6368, %v6304
      %v6401 = vmul.f32 %v6369, %v6305
      %v6402 = vmul.f32 %v6370, %v6306
      %v6403 = vmul.f32 %v6371, %v6307
      %v6404 = vmul.f32 %v6372, %v6308
      %v6405 = vmul.f32 %v6373, %v6309
      %v6406 = vmul.f32 %v6374, %v6310
      %v6407 = vmul.f32 %v6375, %v6311
      %v6408 = vmul.f32 %v6376, %v6312
      %v6409 = vmul.f32 %v6377, %v6313
      %v6410 = vmul.f32 %v6378, %v6314
      %v6411 = vmul.f32 %v6379, %v6315
      %v6412 = vmul.f32 %v6380, %v6316
      %v6413 = vmul.f32 %v6381, %v6317
      %v6414 = vmul.f32 %v6382, %v6318
      %v6415 = vmul.f32 %v6383, %v6319
      %v6416 = vmul.f32 %v6384, %v6320
      %v6417 = vmul.f32 %v6385, %v6321
      %v6418 = vmul.f32 %v6386, %v6322
      %v6419 = vmul.f32 %v6387, %v6323
      %v6420 = vmul.f32 %v6388, %v6324
      %v6421 = vmul.f32 %v6389, %v6325
      %v6422 = vmul.f32 %v6390, %v6326
      %v6423 = vmul.f32 %v6391, %v6327
      %v6424 = vmul.f32 %v6392, %v6328
      %v6425 = vmul.f32 %v6393, %v6297
      %v6426 = vmul.f32 %v6394, %v6298
      %v6427 = vmul.f32 %v6395, %v6299
      %v6428 = vmul.f32 %v6396, %v6300
      %v6429 = vmul.f32 %v6397, %v6301
      %v6430 = vmul.f32 %v6398, %v6302
      %v6431 = vmul.f32 %v6399, %v6303
      %v6432 = vmul.f32 %v6400, %v6304
      %v6433 = vmul.f32 %v6401, %v6305
      %v6434 = vmul.f32 %v6402, %v6306
      %v6435 = vmul.f32 %v6403, %v6307
      %v6436 = vmul.f32 %v6404, %v6308
      %v6437 = vmul.f32 %v6405, %v6309
      %v6438 = vmul.f32 %v6406, %v6310
      %v6439 = vmul.f32 %v6407, %v6311
      %v6440 = vmul.f32 %v6408, %v6312
      %v6441 = vmul.f32 %v6409, %v6313
      %v6442 = vmul.f32 %v6410, %v6314
      %v6443 = vmul.f32 %v6411, %v6315
      %v6444 = vmul.f32 %v6412, %v6316
      %v6445 = vmul.f32 %v6413, %v6317
      %v6446 = vmul.f32 %v6414, %v6318
      %v6447 = vmul.f32 %v6415, %v6319
      %v6448 = vmul.f32 %v6416, %v6320
      %v6449 = vmul.f32 %v6417, %v6321
      %v6450 = vmul.f32 %v6418, %v6322
      %v6451 = vmul.f32 %v6419, %v6323
      %v6452 = vmul.f32 %v6420, %v6324
      %v6453 = vmul.f32 %v6421, %v6325
      %v6454 = vmul.f32 %v6422, %v6326
      %v6455 = vmul.f32 %v6423, %v6327
      %v6456 = vmul.f32 %v6424, %v6328
      %v6457 = vadd.f32 %v6297, %v6425
      %v6458 = vadd.f32 %v6298, %v6426
      %v6459 = vadd.f32 %v6299, %v6427
      %v6460 = vadd.f32 %v6300, %v6428
      %v6461 = vadd.f32 %v6301, %v6429
      %v6462 = vadd.f32 %v6302, %v6430
      %v6463 = vadd.f32 %v6303, %v6431
      %v6464 = vadd.f32 %v6304, %v6432
      %v6465 = vadd.f32 %v6305, %v6433
      %v6466 = vadd.f32 %v6306, %v6434
      %v6467 = vadd.f32 %v6307, %v6435
      %v6468 = vadd.f32 %v6308, %v6436
      %v6469 = vadd.f32 %v6309, %v6437
      %v6470 = vadd.f32 %v6310, %v6438
      %v6471 = vadd.f32 %v6311, %v6439
      %v6472 = vadd.f32 %v6312, %v6440
      %v6473 = vadd.f32 %v6313, %v6441
      %v6474 = vadd.f32 %v6314, %v6442
      %v6475 = vadd.f32 %v6315, %v6443
      %v6476 = vadd.f32 %v6316, %v6444
      %v6477 = vadd.f32 %v6317, %v6445
      %v6478 = vadd.f32 %v6318, %v6446
      %v6479 = vadd.f32 %v6319, %v6447
      %v6480 = vadd.f32 %v6320, %v6448
      %v6481 = vadd.f32 %v6321, %v6449
      %v6482 = vadd.f32 %v6322, %v6450
      %v6483 = vadd.f32 %v6323, %v6451
      %v6484 = vadd.f32 %v6324, %v6452
      %v6485 = vadd.f32 %v6325, %v6453
      %v6486 = vadd.f32 %v6326, %v6454
      %v6487 = vadd.f32 %v6327, %v6455
      %v6488 = vadd.f32 %v6328, %v6456
      %v6489 = vmul.f32 %v6457, 0.7978846
      %v6490 = vmul.f32 %v6458, 0.7978846
      %v6491 = vmul.f32 %v6459, 0.7978846
      %v6492 = vmul.f32 %v6460, 0.7978846
      %v6493 = vmul.f32 %v6461, 0.7978846
      %v6494 = vmul.f32 %v6462, 0.7978846
      %v6495 = vmul.f32 %v6463, 0.7978846
      %v6496 = vmul.f32 %v6464, 0.7978846
      %v6497 = vmul.f32 %v6465, 0.7978846
      %v6498 = vmul.f32 %v6466, 0.7978846
      %v6499 = vmul.f32 %v6467, 0.7978846
      %v6500 = vmul.f32 %v6468, 0.7978846
      %v6501 = vmul.f32 %v6469, 0.7978846
      %v6502 = vmul.f32 %v6470, 0.7978846
      %v6503 = vmul.f32 %v6471, 0.7978846
      %v6504 = vmul.f32 %v6472, 0.7978846
      %v6505 = vmul.f32 %v6473, 0.7978846
      %v6506 = vmul.f32 %v6474, 0.7978846
      %v6507 = vmul.f32 %v6475, 0.7978846
      %v6508 = vmul.f32 %v6476, 0.7978846
      %v6509 = vmul.f32 %v6477, 0.7978846
      %v6510 = vmul.f32 %v6478, 0.7978846
      %v6511 = vmul.f32 %v6479, 0.7978846
      %v6512 = vmul.f32 %v6480, 0.7978846
      %v6513 = vmul.f32 %v6481, 0.7978846
      %v6514 = vmul.f32 %v6482, 0.7978846
      %v6515 = vmul.f32 %v6483, 0.7978846
      %v6516 = vmul.f32 %v6484, 0.7978846
      %v6517 = vmul.f32 %v6485, 0.7978846
      %v6518 = vmul.f32 %v6486, 0.7978846
      %v6519 = vmul.f32 %v6487, 0.7978846
      %v6520 = vmul.f32 %v6488, 0.7978846
      %v6521 = vtanh.pop %v6489
      %v6522 = vtanh.pop %v6490
      %v6523 = vtanh.pop %v6491
      %v6524 = vtanh.pop %v6492
      %v6525 = vtanh.pop %v6493
      %v6526 = vtanh.pop %v6494
      %v6527 = vtanh.pop %v6495
      %v6528 = vtanh.pop %v6496
      %v6529 = vtanh.pop %v6497
      %v6530 = vtanh.pop %v6498
      %v6531 = vtanh.pop %v6499
      %v6532 = vtanh.pop %v6500
      %v6533 = vtanh.pop %v6501
      %v6534 = vtanh.pop %v6502
      %v6535 = vtanh.pop %v6503
      %v6536 = vtanh.pop %v6504
      %v6537 = vtanh.pop %v6505
      %v6538 = vtanh.pop %v6506
      %v6539 = vtanh.pop %v6507
      %v6540 = vtanh.pop %v6508
      %v6541 = vtanh.pop %v6509
      %v6542 = vtanh.pop %v6510
      %v6543 = vtanh.pop %v6511
      %v6544 = vtanh.pop %v6512
      %v6545 = vtanh.pop %v6513
      %v6546 = vtanh.pop %v6514
      %v6547 = vtanh.pop %v6515
      %v6548 = vtanh.pop %v6516
      %v6549 = vtanh.pop %v6517
      %v6550 = vtanh.pop %v6518
      %v6551 = vtanh.pop %v6519
      %v6552 = vtanh.pop %v6520
      %v6553 = vadd.f32 %v6521, 1.0
      %v6554 = vadd.f32 %v6522, 1.0
      %v6555 = vadd.f32 %v6523, 1.0
      %v6556 = vadd.f32 %v6524, 1.0
      %v6557 = vadd.f32 %v6525, 1.0
      %v6558 = vadd.f32 %v6526, 1.0
      %v6559 = vadd.f32 %v6527, 1.0
      %v6560 = vadd.f32 %v6528, 1.0
      %v6561 = vadd.f32 %v6529, 1.0
      %v6562 = vadd.f32 %v6530, 1.0
      %v6563 = vadd.f32 %v6531, 1.0
      %v6564 = vadd.f32 %v6532, 1.0
      %v6565 = vadd.f32 %v6533, 1.0
      %v6566 = vadd.f32 %v6534, 1.0
      %v6567 = vadd.f32 %v6535, 1.0
      %v6568 = vadd.f32 %v6536, 1.0
      %v6569 = vadd.f32 %v6537, 1.0
      %v6570 = vadd.f32 %v6538, 1.0
      %v6571 = vadd.f32 %v6539, 1.0
      %v6572 = vadd.f32 %v6540, 1.0
      %v6573 = vadd.f32 %v6541, 1.0
      %v6574 = vadd.f32 %v6542, 1.0
      %v6575 = vadd.f32 %v6543, 1.0
      %v6576 = vadd.f32 %v6544, 1.0
      %v6577 = vadd.f32 %v6545, 1.0
      %v6578 = vadd.f32 %v6546, 1.0
      %v6579 = vadd.f32 %v6547, 1.0
      %v6580 = vadd.f32 %v6548, 1.0
      %v6581 = vadd.f32 %v6549, 1.0
      %v6582 = vadd.f32 %v6550, 1.0
      %v6583 = vadd.f32 %v6551, 1.0
      %v6584 = vadd.f32 %v6552, 1.0
      %v6585 = vmul.f32 %v6329, %v6553
      %v6586 = vmul.f32 %v6330, %v6554
      %v6587 = vmul.f32 %v6331, %v6555
      %v6588 = vmul.f32 %v6332, %v6556
      %v6589 = vmul.f32 %v6333, %v6557
      %v6590 = vmul.f32 %v6334, %v6558
      %v6591 = vmul.f32 %v6335, %v6559
      %v6592 = vmul.f32 %v6336, %v6560
      %v6593 = vmul.f32 %v6337, %v6561
      %v6594 = vmul.f32 %v6338, %v6562
      %v6595 = vmul.f32 %v6339, %v6563
      %v6596 = vmul.f32 %v6340, %v6564
      %v6597 = vmul.f32 %v6341, %v6565
      %v6598 = vmul.f32 %v6342, %v6566
      %v6599 = vmul.f32 %v6343, %v6567
      %v6600 = vmul.f32 %v6344, %v6568
      %v6601 = vmul.f32 %v6345, %v6569
      %v6602 = vmul.f32 %v6346, %v6570
      %v6603 = vmul.f32 %v6347, %v6571
      %v6604 = vmul.f32 %v6348, %v6572
      %v6605 = vmul.f32 %v6349, %v6573
      %v6606 = vmul.f32 %v6350, %v6574
      %v6607 = vmul.f32 %v6351, %v6575
      %v6608 = vmul.f32 %v6352, %v6576
      %v6609 = vmul.f32 %v6353, %v6577
      %v6610 = vmul.f32 %v6354, %v6578
      %v6611 = vmul.f32 %v6355, %v6579
      %v6612 = vmul.f32 %v6356, %v6580
      %v6613 = vmul.f32 %v6357, %v6581
      %v6614 = vmul.f32 %v6358, %v6582
      %v6615 = vmul.f32 %v6359, %v6583
      %v6616 = vmul.f32 %v6360, %v6584
      %v6617 = vpack.c.bf16 %v6585, %v6585
      %v6618 = vpack.c.bf16 %v6586, %v6586
      %v6619 = vpack.c.bf16 %v6587, %v6587
      %v6620 = vpack.c.bf16 %v6588, %v6588
      %v6621 = vpack.c.bf16 %v6589, %v6589
      %v6622 = vpack.c.bf16 %v6590, %v6590
      %v6623 = vpack.c.bf16 %v6591, %v6591
      %v6624 = vpack.c.bf16 %v6592, %v6592
      %v6625 = vpack.c.bf16 %v6593, %v6593
      %v6626 = vpack.c.bf16 %v6594, %v6594
      %v6627 = vpack.c.bf16 %v6595, %v6595
      %v6628 = vpack.c.bf16 %v6596, %v6596
      %v6629 = vpack.c.bf16 %v6597, %v6597
      %v6630 = vpack.c.bf16 %v6598, %v6598
      %v6631 = vpack.c.bf16 %v6599, %v6599
      %v6632 = vpack.c.bf16 %v6600, %v6600
      %v6633 = vpack.c.bf16 %v6601, %v6601
      %v6634 = vpack.c.bf16 %v6602, %v6602
      %v6635 = vpack.c.bf16 %v6603, %v6603
      %v6636 = vpack.c.bf16 %v6604, %v6604
      %v6637 = vpack.c.bf16 %v6605, %v6605
      %v6638 = vpack.c.bf16 %v6606, %v6606
      %v6639 = vpack.c.bf16 %v6607, %v6607
      %v6640 = vpack.c.bf16 %v6608, %v6608
      %v6641 = vpack.c.bf16 %v6609, %v6609
      %v6642 = vpack.c.bf16 %v6610, %v6610
      %v6643 = vpack.c.bf16 %v6611, %v6611
      %v6644 = vpack.c.bf16 %v6612, %v6612
      %v6645 = vpack.c.bf16 %v6613, %v6613
      %v6646 = vpack.c.bf16 %v6614, %v6614
      %v6647 = vpack.c.bf16 %v6615, %v6615
      %v6648 = vpack.c.bf16 %v6616, %v6616
      %6649 = vst [vmem:[%s278] sm:$0xf] %v6617
      %6650 = vst [vmem:[%s278 + $0x4] sm:$0xf] %v6618
      %6651 = vst [vmem:[%s278 + $0x8] sm:$0xf] %v6619
      %6652 = vst [vmem:[%s278 + $0xc] sm:$0xf] %v6620
      %6653 = vst [vmem:[%s278 + $0x10] sm:$0xf] %v6621
      %6654 = vst [vmem:[%s278 + $0x14] sm:$0xf] %v6622
      %6655 = vst [vmem:[%s278 + $0x18] sm:$0xf] %v6623
      %6656 = vst [vmem:[%s278 + $0x1c] sm:$0xf] %v6624
      %6657 = vst [vmem:[%s278 + $0x20] sm:$0xf] %v6625
      %6658 = vst [vmem:[%s278 + $0x24] sm:$0xf] %v6626
      %6659 = vst [vmem:[%s278 + $0x28] sm:$0xf] %v6627
      %6660 = vst [vmem:[%s278 + $0x2c] sm:$0xf] %v6628
      %6661 = vst [vmem:[%s278 + $0x30] sm:$0xf] %v6629
      %6662 = vst [vmem:[%s278 + $0x34] sm:$0xf] %v6630
      %6663 = vst [vmem:[%s278 + $0x38] sm:$0xf] %v6631
      %6664 = vst [vmem:[%s278 + $0x3c] sm:$0xf] %v6632
      %6665 = vst [vmem:[%s278 + $0x40] sm:$0xf] %v6633
      %6666 = vst [vmem:[%s278 + $0x44] sm:$0xf] %v6634
      %6667 = vst [vmem:[%s278 + $0x48] sm:$0xf] %v6635
      %6668 = vst [vmem:[%s278 + $0x4c] sm:$0xf] %v6636
      %6669 = vst [vmem:[%s278 + $0x50] sm:$0xf] %v6637
      %6670 = vst [vmem:[%s278 + $0x54] sm:$0xf] %v6638
      %6671 = vst [vmem:[%s278 + $0x58] sm:$0xf] %v6639
      %6672 = vst [vmem:[%s278 + $0x5c] sm:$0xf] %v6640
      %6673 = vst [vmem:[%s278 + $0x60] sm:$0xf] %v6641
      %6674 = vst [vmem:[%s278 + $0x64] sm:$0xf] %v6642
      %6675 = vst [vmem:[%s278 + $0x68] sm:$0xf] %v6643
      %6676 = vst [vmem:[%s278 + $0x6c] sm:$0xf] %v6644
      %6677 = vst [vmem:[%s278 + $0x70] sm:$0xf] %v6645
      %6678 = vst [vmem:[%s278 + $0x74] sm:$0xf] %v6646
      %6679 = vst [vmem:[%s278 + $0x78] sm:$0xf] %v6647
      %6680 = vst [vmem:[%s278 + $0x7c] sm:$0xf] %v6648
      %p6681 = scmp.lt.s32.totalorder %s18, 1
      %s6682 = scalar_select %p6681, %s18, 1
      %s6683 = smul.addr %s6682, 32
      %s6684 = smul.addr %s6683, 4
      %s6685 = scalar_lea.vmem %s7, %s6684
      // Predicated region
      $region49: #{double_conv.1} parent=47 // pred_check
        %p6686 = pneg %p188
      $region50: #{double_conv.1} parent=47 // pred_check_branch
        %6688 = sbr.rel (%p6686) target = $region52
      $region51: #{double_conv.1} parent=47 // pred_region
        _
      $region52: #{double_conv.1} parent=47 // pred_fallthru
        _
    $region48: #{double_conv.1} parent=5 // pred_fallthru
      _
    %p6689 = scmp.le.s32.totalorder 2, %s13
    // Predicated region
    $region53: #{double_conv.1} parent=5 // pred_check
      %p6690 = pneg %p6689
    $region54: #{double_conv.1} parent=5 // pred_check_branch
      %6692 = sbr.rel (%p6690) target = $region56
    $region55: #{double_conv.1} parent=5 // pred_region
      %s6693 = ssub.s32 %s13, 2
      // Predicated region
      $region57: #{double_conv.1} parent=55 // pred_check
        %p6694 = pneg %p194
      $region58: #{double_conv.1} parent=55 // pred_check_branch
        %6696 = sbr.rel (%p6694) target = $region60
      $region59: #{double_conv.1} parent=55 // pred_region
        %p6697 = scmp.lt.s32.totalorder %s19, 1
        %s6698 = scalar_select %p6697, %s19, 1
        %s6699 = smul.addr %s6698, 32
        %s6700 = smul.addr %s6699, 4
        %s6701 = scalar_lea.vmem %s7, %s6700
      $region60: #{double_conv.1} parent=55 // pred_fallthru
        _
    $region56: #{double_conv.1} parent=5 // pred_fallthru
      _
  $region6: #{double_conv.1} parent=0 // loop_footer
    %s17 = sadd.s32 1, %s13
  $region7: #{double_conv.1} parent=0 // loop_footer_branch
    %12 = sbr.rel target = $region3
  $region8: #{double_conv.1} parent=0 // loop_exit
    _

</llo_original>
